<compile_context>
chip_gen: v7x
topology: tpu7x:2x2x1
jax: 0.10.0
libtpu: 0.0.40
codegen_flags: <defaults>
</compile_context>

<pallas_src>
import math

import numpy as np
import jax
import jax.numpy as jnp
from jax.experimental import pallas as pl
from jax.experimental.pallas import tpu as pltpu

BN_EPS = 1e-5
COUT = 64


# ------------------------------ static plan -------------------------------- #
def _build_plan(N, H, W, in_dim):
    """Per-block static constants + numpy masks / 0-1 selection matrices."""
    blocks = []

    # block 1: dense valid-row slab (im2col done in the wrapper), pad=0, pool.
    OH1, OW1 = H - 2, W - 2
    L1 = N * OH1 * OW1
    blocks.append(dict(cin=in_dim, pool=True, Wp=OW1, P=OH1 * OW1, L=L1,
                       OH=OH1, OW=OW1, count=L1,
                       out_h=OH1 // 2, out_w=OW1 // 2, src_len=L1 - 1 - OW1,
                       mask=np.ones((1, L1), np.float32)))
    ih, iw = blocks[0]["out_h"], blocks[0]["out_w"]

    # blocks 2-4: zero-padded-grid slabs, 3x3 patches built in-kernel.
    for pad, pool in [(0, True), (1, False), (1, False)]:
        Hp, Wp = ih + 2 * pad, iw + 2 * pad
        P = Hp * Wp
        L = N * P - (2 * Wp + 2)                 # conv-accumulator rows
        OH, OW = Hp - 2, Wp - 2                  # valid conv output size
        count = N * OH * OW                      # rows entering BN stats
        q = np.arange(L)
        yy, xx = (q % P) // Wp, q % Wp
        mask = ((yy < OH) & (xx < OW)).astype(np.float32).reshape(1, L)
        if pool:
            out_h, out_w, src_len = OH // 2, OW // 2, L - 1 - Wp
        else:
            out_h, out_w, src_len = OH, OW, L
        blocks.append(dict(cin=COUT, pad=pad, pool=pool, Hp=Hp, Wp=Wp, P=P, L=L,
                           OH=OH, OW=OW, count=count, mask=mask,
                           out_h=out_h, out_w=out_w, src_len=src_len))
        ih, iw = out_h, out_w

    # 0/1 selection matrices: re-layout (+ zero padding) between blocks and the
    # final lane-dense output selection.
    for bi, blk in enumerate(blocks):
        assert int(blk["mask"].sum()) == blk["count"]
        Wp, P = blk["Wp"], blk["P"]
        oh2, ow2, src_len = blk["out_h"], blk["out_w"], blk["src_len"]
        stride = 2 if blk["pool"] else 1
        if bi + 1 < len(blocks):
            nxt = blocks[bi + 1]
            pad_n, Hpn, Wpn = nxt["pad"], nxt["Hp"], nxt["Wp"]
            sel = np.zeros((N * Hpn * Wpn, src_len), np.float32)

            def dst_of(n, i, j, _p=pad_n, _h=Hpn, _w=Wpn):
                return n * _h * _w + (i + _p) * _w + (j + _p)
        else:
            # final output: ow-major groups of (N*out_h) rows -> lane-dense store
            sel = np.zeros((ow2 * N * oh2, src_len), np.float32)

            def dst_of(n, i, j, _oh=oh2):
                return j * (N * _oh) + n * _oh + i

        for n in range(N):
            for i in range(oh2):
                for j in range(ow2):
                    # make explicit: every conv row a selected pool window
                    # touches is a real (non-wrap-around) conv output.
                    assert stride * i + (stride - 1) < blk["OH"]
                    assert stride * j + (stride - 1) < blk["OW"]
                    src = n * P + (stride * i) * Wp + (stride * j)
                    assert 0 <= src < src_len
                    sel[dst_of(n, i, j), src] = 1.0
        blk["sel"] = sel
    return blocks


# ------------------------------ fused kernel ------------------------------- #
def _make_kernel(N, plan):
    p1, p2, p3, p4 = plan

    def conv_bn_relu(patch, w, prm, mask_row, count):
        # conv bias omitted: BN's mean subtraction cancels a per-channel bias.
        acc = jnp.dot(patch, w, preferred_element_type=jnp.float32)      # (L, 64)
        # BN stats on the MXU: lane-dense (1, L) mask row picks valid rows.
        s1 = jnp.dot(mask_row, acc, preferred_element_type=jnp.float32)  # (1, 64)
        mean = s1 * (1.0 / count)
        cen = acc - mean
        s2 = jnp.dot(mask_row, cen * cen, preferred_element_type=jnp.float32)
        inv = jax.lax.rsqrt(s2 * (1.0 / count) + BN_EPS)
        return jnp.maximum(cen * (inv * prm[0:1, :]) + prm[1:2, :], 0.0)  # ReLU

    def pool2(yv, wrow):
        # 2x2 max-pool (stride 2) = two shifted elementwise-max passes.
        m1 = jnp.maximum(yv[:-1, :], yv[1:, :])
        return jnp.maximum(m1[:-wrow, :], m1[wrow:, :])

    def patches(a, Wp, L):
        # implicit im2col: 9 shifted row slices concatenated along lanes ->
        # a single big-K (9*64 = 576) MXU matmul per block.
        return jnp.concatenate(
            [a[dy * Wp + dx:dy * Wp + dx + L, :]
             for dy in range(3) for dx in range(3)], axis=1)

    def kernel(x_ref, w1_ref, prm1_ref, mask1_ref,
               prm2_ref, mask2_ref, sel2_ref,
               prm3_ref, mask3_ref, sel3_ref,
               prm4_ref, mask4_ref, sel4_ref,
               sel1_hbm, w2_hbm, w3_hbm, w4_hbm,
               out_ref,
               sel1_v, w2_v, w3_v, w4_v, sem):
        # Prefetch the late-use constants; their DMAs overlap block-1/2 compute
        # instead of serializing in the pallas_call prologue.
        cp_sel1 = pltpu.make_async_copy(sel1_hbm, sel1_v, sem.at[0])
        cp_w2 = pltpu.make_async_copy(w2_hbm, w2_v, sem.at[1])
        cp_w3 = pltpu.make_async_copy(w3_hbm, w3_v, sem.at[2])
        cp_w4 = pltpu.make_async_copy(w4_hbm, w4_v, sem.at[3])
        cp_sel1.start(); cp_w2.start(); cp_w3.start(); cp_w4.start()

        # ---- block 1: Conv(pad=0)+BN+ReLU+MaxPool2  (dense wrapper im2col) --
        yv = conv_bn_relu(x_ref[...], w1_ref[...], prm1_ref[...],
                          mask1_ref[...], p1["count"])
        yv = pool2(yv, p1["Wp"])
        cp_sel1.wait()
        a = jnp.dot(sel1_v[...], yv, preferred_element_type=jnp.float32)

        # ---- block 2: Conv(pad=0)+BN+ReLU+MaxPool2 --------------------------
        cp_w2.wait()
        yv = conv_bn_relu(patches(a, p2["Wp"], p2["L"]), w2_v[...],
                          prm2_ref[...], mask2_ref[...], p2["count"])
        yv = pool2(yv, p2["Wp"])
        a = jnp.dot(sel2_ref[...], yv, preferred_element_type=jnp.float32)

        # ---- block 3: Conv(pad=1)+BN+ReLU ------------------------------------
        cp_w3.wait()
        yv = conv_bn_relu(patches(a, p3["Wp"], p3["L"]), w3_v[...],
                          prm3_ref[...], mask3_ref[...], p3["count"])
        a = jnp.dot(sel3_ref[...], yv, preferred_element_type=jnp.float32)

        # ---- block 4: Conv(pad=1)+BN+ReLU, single lane-dense 128-wide store --
        cp_w4.wait()
        yv = conv_bn_relu(patches(a, p4["Wp"], p4["L"]), w4_v[...],
                          prm4_ref[...], mask4_ref[...], p4["count"])
        r = jnp.dot(sel4_ref[...], yv, preferred_element_type=jnp.float32)
        rows = N * p4["out_h"]
        out_ref[...] = jnp.concatenate(
            [r[j * rows:(j + 1) * rows, :] for j in range(p4["out_w"])], axis=1)

    return kernel


# -------------------------------- wrapper ---------------------------------- #
def embedding_module_forward(x_nchw, params):
    N, cin, H, W = x_nchw.shape
    plan = _build_plan(N, H, W, cin)
    p1, p4 = plan[0], plan[-1]
    out_rows = N * p4["out_h"]
    out_cols = p4["out_w"] * COUT

    # wrapper-side im2col for block 1 (cin is tiny): dense (N*OH*OW, 9*cin)
    # patch matrix, columns ordered tap-major (dy, dx) then channel.
    xh = jnp.transpose(x_nchw, (0, 2, 3, 1))                       # NHWC
    OH1, OW1 = p1["OH"], p1["OW"]
    taps = [xh[:, dy:dy + OH1, dx:dx + OW1, :]
            for dy in range(3) for dx in range(3)]
    x_patch = jnp.concatenate(taps, axis=-1).reshape(
        N * OH1 * OW1, 9 * cin).astype(jnp.bfloat16)

    bf = lambda a: jnp.asarray(a, jnp.bfloat16)

    vmem_args = [
        x_patch,
        bf(params[0]["w_mat"]), params[0]["prm"], jnp.asarray(plan[0]["mask"]),
        params[1]["prm"], jnp.asarray(plan[1]["mask"]), bf(plan[1]["sel"]),
        params[2]["prm"], jnp.asarray(plan[2]["mask"]), bf(plan[2]["sel"]),
        params[3]["prm"], jnp.asarray(plan[3]["mask"]), bf(plan[3]["sel"]),
    ]
    hbm_args = [bf(plan[0]["sel"]), bf(params[1]["w_mat"]),
                bf(params[2]["w_mat"]), bf(params[3]["w_mat"])]

    in_specs = ([pl.BlockSpec(a.shape, lambda i: (0, 0)) for a in vmem_args]
                + [pl.BlockSpec(memory_space=pl.ANY)] * len(hbm_args))
    scratch_shapes = ([pltpu.VMEM(a.shape, jnp.bfloat16) for a in hbm_args]
                      + [pltpu.SemaphoreType.DMA((len(hbm_args),))])

    out = pl.pallas_call(
        _make_kernel(N, plan),
        out_shape=jax.ShapeDtypeStruct((out_rows, out_cols), jnp.float32),
        grid=(1,),
        in_specs=in_specs,
        out_specs=pl.BlockSpec((out_rows, out_cols), lambda i: (0, 0)),
        scratch_shapes=scratch_shapes,
        compiler_params=pltpu.CompilerParams(
            dimension_semantics=("arbitrary",)),
    )(*vmem_args, *hbm_args)

    # (N*OH, OW*C) -> (N, OH, OW, C) -> NCHW
    out = out.reshape(N, p4["out_h"], p4["out_w"], COUT)
    return jnp.transpose(out, (0, 3, 1, 2))


# ------------------------- deterministic parameters ------------------------ #
def init_conv_params(key, cin, cout=COUT):
    kw, kb, kg, kbe = jax.random.split(key, 4)
    fan_in = cin * 9
    w = jax.random.normal(kw, (cout, cin, 3, 3), jnp.float32) / math.sqrt(fan_in)
    b = 0.05 * jax.random.normal(kb, (cout,), jnp.float32)
    gamma = 1.0 + 0.1 * jax.random.normal(kg, (cout,), jnp.float32)
    beta = 0.1 * jax.random.normal(kbe, (cout,), jnp.float32)
    # (Cout,Cin,kh,kw) -> (kh,kw,Cin,Cout) -> (9*Cin, Cout); the Cin-row block
    # for 3x3 tap (dy, dx) starts at row (dy*3 + dx) * Cin.
    w_mat = jnp.transpose(w, (2, 3, 1, 0)).reshape(9 * cin, cout)
    # conv bias is NOT given to the kernel (BN mean subtraction cancels it).
    prm = jnp.stack([gamma, beta], axis=0)          # packed (2, Cout)
    return {"w_raw": w, "w_mat": w_mat, "prm": prm,
            "b": b, "gamma": gamma, "beta": beta}


# --------------------------- pure-JAX reference ---------------------------- #
def reference_forward(x_nchw, params):
    def block(x, p, pad, pool):
        y = jax.lax.conv_general_dilated(
            x, p["w_raw"], window_strides=(1, 1),
            padding=[(pad, pad), (pad, pad)],
            dimension_numbers=("NCHW", "OIHW", "NCHW"))
        y = y + p["b"].reshape(1, -1, 1, 1)
        mean = jnp.mean(y, axis=(0, 2, 3), keepdims=True)
        var = jnp.mean((y - mean) ** 2, axis=(0, 2, 3), keepdims=True)
        y = (y - mean) * jax.lax.rsqrt(var + BN_EPS)
        y = y * p["gamma"].reshape(1, -1, 1, 1) + p["beta"].reshape(1, -1, 1, 1)
        y = jnp.maximum(y, 0.0)
        if pool:
            N, C, H, W = y.shape
            y = y[:, :, :H // 2 * 2, :W // 2 * 2].reshape(
                N, C, H // 2, 2, W // 2, 2).max(axis=(3, 5))
        return y

    x = block(x_nchw, params[0], 0, True)
    x = block(x, params[1], 0, True)
    x = block(x, params[2], 1, False)
    x = block(x, params[3], 1, False)
    return x


# ----------------------------------- main ---------------------------------- #
if __name__ == "__main__":
    key = jax.random.PRNGKey(0)
    k_x, k1, k2, k3, k4 = jax.random.split(key, 5)

    in_dim = 4
    x = jax.random.normal(k_x, (2, in_dim, 16, 16), jnp.float32)  # NCHW

    params = [
        init_conv_params(k1, in_dim),   # block1
        init_conv_params(k2, 64),       # block2
        init_conv_params(k3, 64),       # block3
        init_conv_params(k4, 64),       # block4
    ]

    out = jax.block_until_ready(embedding_module_forward(x, params))
    ref = jax.block_until_ready(reference_forward(x, params))

    assert out.shape == (2, 64, 2, 2), out.shape
    assert jnp.allclose(out, ref, atol=2e-2, rtol=2e-2), float(
        jnp.max(jnp.abs(out - ref)))

    print("KERNEL_OK")
</pallas_src>

<mosaic_0001>
module attributes {stable_mosaic.version = 11 : i64} {
  func.func @kernel(%arg0: i32, %arg1: memref<392x36xbf16, #tpu.memory_space<vmem>>, %arg2: memref<36x64xbf16, #tpu.memory_space<vmem>>, %arg3: memref<2x64xf32, #tpu.memory_space<vmem>>, %arg4: memref<1x392xf32, #tpu.memory_space<vmem>>, %arg5: memref<2x64xf32, #tpu.memory_space<vmem>>, %arg6: memref<1x82xf32, #tpu.memory_space<vmem>>, %arg7: memref<32x74xbf16, #tpu.memory_space<vmem>>, %arg8: memref<2x64xf32, #tpu.memory_space<vmem>>, %arg9: memref<1x22xf32, #tpu.memory_space<vmem>>, %arg10: memref<32x22xbf16, #tpu.memory_space<vmem>>, %arg11: memref<2x64xf32, #tpu.memory_space<vmem>>, %arg12: memref<1x22xf32, #tpu.memory_space<vmem>>, %arg13: memref<8x22xbf16, #tpu.memory_space<vmem>>, %arg14: memref<98x377xbf16, #tpu.memory_space<any>>, %arg15: memref<576x64xbf16, #tpu.memory_space<any>>, %arg16: memref<576x64xbf16, #tpu.memory_space<any>>, %arg17: memref<576x64xbf16, #tpu.memory_space<any>>, %arg18: memref<4x128xf32, #tpu.memory_space<vmem>>, %arg19: memref<98x377xbf16, #tpu.memory_space<vmem>>, %arg20: memref<576x64xbf16, #tpu.memory_space<vmem>>, %arg21: memref<576x64xbf16, #tpu.memory_space<vmem>>, %arg22: memref<576x64xbf16, #tpu.memory_space<vmem>>, %arg23: memref<4x!tpu.dma_semaphore, #tpu.memory_space<semaphore_mem>>) attributes {dimension_semantics = [#tpu.dimension_semantics<arbitrary>], iteration_bounds = array<i64: 1>, scalar_prefetch = 0 : i64, scratch_operands = 5 : i64, tpu.core_type = #tpu.core_type<tc>, window_params = [{pipeline_mode = #tpu.pipeline_mode<synchronous>, transform_indices = @transform_0, window_bounds = array<i64: 392, 36>}, {pipeline_mode = #tpu.pipeline_mode<synchronous>, transform_indices = @transform_1, window_bounds = array<i64: 36, 64>}, {pipeline_mode = #tpu.pipeline_mode<synchronous>, transform_indices = @transform_2, window_bounds = array<i64: 2, 64>}, {pipeline_mode = #tpu.pipeline_mode<synchronous>, transform_indices = @transform_3, window_bounds = array<i64: 1, 392>}, {pipeline_mode = #tpu.pipeline_mode<synchronous>, transform_indices = @transform_4, window_bounds = array<i64: 2, 64>}, {pipeline_mode = #tpu.pipeline_mode<synchronous>, transform_indices = @transform_5, window_bounds = array<i64: 1, 82>}, {pipeline_mode = #tpu.pipeline_mode<synchronous>, transform_indices = @transform_6, window_bounds = array<i64: 32, 74>}, {pipeline_mode = #tpu.pipeline_mode<synchronous>, transform_indices = @transform_7, window_bounds = array<i64: 2, 64>}, {pipeline_mode = #tpu.pipeline_mode<synchronous>, transform_indices = @transform_8, window_bounds = array<i64: 1, 22>}, {pipeline_mode = #tpu.pipeline_mode<synchronous>, transform_indices = @transform_9, window_bounds = array<i64: 32, 22>}, {pipeline_mode = #tpu.pipeline_mode<synchronous>, transform_indices = @transform_10, window_bounds = array<i64: 2, 64>}, {pipeline_mode = #tpu.pipeline_mode<synchronous>, transform_indices = @transform_11, window_bounds = array<i64: 1, 22>}, {pipeline_mode = #tpu.pipeline_mode<synchronous>, transform_indices = @transform_12, window_bounds = array<i64: 8, 22>}, {}, {}, {}, {}, {pipeline_mode = #tpu.pipeline_mode<synchronous>, transform_indices = @transform_17, window_bounds = array<i64: 4, 128>}]} {
    %c0_i32 = arith.constant 0 : i32
    %0 = tpu.memref_slice %arg23[%c0_i32] : memref<4x!tpu.dma_semaphore, #tpu.memory_space<semaphore_mem>> -> memref<1x!tpu.dma_semaphore, #tpu.memory_space<semaphore_mem>>
    %1 = tpu.memref_squeeze %0 : memref<1x!tpu.dma_semaphore, #tpu.memory_space<semaphore_mem>> -> memref<!tpu.dma_semaphore, #tpu.memory_space<semaphore_mem>>
    tpu.enqueue_dma source(%arg14 : memref<98x377xbf16, #tpu.memory_space<any>>) target(%arg19 : memref<98x377xbf16, #tpu.memory_space<vmem>>) target_semaphore(%1 : memref<!tpu.dma_semaphore, #tpu.memory_space<semaphore_mem>>)
    %c1_i32 = arith.constant 1 : i32
    %2 = tpu.memref_slice %arg23[%c1_i32] : memref<4x!tpu.dma_semaphore, #tpu.memory_space<semaphore_mem>> -> memref<1x!tpu.dma_semaphore, #tpu.memory_space<semaphore_mem>>
    %3 = tpu.memref_squeeze %2 : memref<1x!tpu.dma_semaphore, #tpu.memory_space<semaphore_mem>> -> memref<!tpu.dma_semaphore, #tpu.memory_space<semaphore_mem>>
    tpu.enqueue_dma source(%arg15 : memref<576x64xbf16, #tpu.memory_space<any>>) target(%arg20 : memref<576x64xbf16, #tpu.memory_space<vmem>>) target_semaphore(%3 : memref<!tpu.dma_semaphore, #tpu.memory_space<semaphore_mem>>)
    %c2_i32 = arith.constant 2 : i32
    %4 = tpu.memref_slice %arg23[%c2_i32] : memref<4x!tpu.dma_semaphore, #tpu.memory_space<semaphore_mem>> -> memref<1x!tpu.dma_semaphore, #tpu.memory_space<semaphore_mem>>
    %5 = tpu.memref_squeeze %4 : memref<1x!tpu.dma_semaphore, #tpu.memory_space<semaphore_mem>> -> memref<!tpu.dma_semaphore, #tpu.memory_space<semaphore_mem>>
    tpu.enqueue_dma source(%arg16 : memref<576x64xbf16, #tpu.memory_space<any>>) target(%arg21 : memref<576x64xbf16, #tpu.memory_space<vmem>>) target_semaphore(%5 : memref<!tpu.dma_semaphore, #tpu.memory_space<semaphore_mem>>)
    %c3_i32 = arith.constant 3 : i32
    %6 = tpu.memref_slice %arg23[%c3_i32] : memref<4x!tpu.dma_semaphore, #tpu.memory_space<semaphore_mem>> -> memref<1x!tpu.dma_semaphore, #tpu.memory_space<semaphore_mem>>
    %7 = tpu.memref_squeeze %6 : memref<1x!tpu.dma_semaphore, #tpu.memory_space<semaphore_mem>> -> memref<!tpu.dma_semaphore, #tpu.memory_space<semaphore_mem>>
    tpu.enqueue_dma source(%arg17 : memref<576x64xbf16, #tpu.memory_space<any>>) target(%arg22 : memref<576x64xbf16, #tpu.memory_space<vmem>>) target_semaphore(%7 : memref<!tpu.dma_semaphore, #tpu.memory_space<semaphore_mem>>)
    %c0 = arith.constant 0 : index
    %c0_0 = arith.constant 0 : index
    %8 = vector.load %arg1[%c0, %c0_0] : memref<392x36xbf16, #tpu.memory_space<vmem>>, vector<392x36xbf16>
    %c0_1 = arith.constant 0 : index
    %c0_2 = arith.constant 0 : index
    %9 = vector.load %arg2[%c0_1, %c0_2] : memref<36x64xbf16, #tpu.memory_space<vmem>>, vector<36x64xbf16>
    %c0_3 = arith.constant 0 : index
    %c0_4 = arith.constant 0 : index
    %10 = vector.load %arg3[%c0_3, %c0_4] : memref<2x64xf32, #tpu.memory_space<vmem>>, vector<2x64xf32>
    %c0_5 = arith.constant 0 : index
    %c0_6 = arith.constant 0 : index
    %11 = vector.load %arg4[%c0_5, %c0_6] : memref<1x392xf32, #tpu.memory_space<vmem>>, vector<1x392xf32>
    %cst = arith.constant dense<0.000000e+00> : vector<392x64xf32>
    %12 = tpu.matmul %8, %9, %cst {dimension_numbers = #tpu.dot_dimension_numbers<[1], [0], [0], [1], [0, 0, 1, 1], [], []>} : vector<392x36xbf16>, vector<36x64xbf16>, vector<392x64xf32> -> vector<392x64xf32>
    %cst_7 = arith.constant dense<0.000000e+00> : vector<1x64xf32>
    %13 = tpu.matmul %11, %12, %cst_7 {dimension_numbers = #tpu.dot_dimension_numbers<[1], [0], [0], [1], [0, 0, 1, 1], [], []>} : vector<1x392xf32>, vector<392x64xf32>, vector<1x64xf32> -> vector<1x64xf32>
    %cst_8 = arith.constant 0.00255102036 : f32
    %14 = vector.broadcast %cst_8 : f32 to vector<1x64xf32>
    %15 = arith.mulf %13, %14 : vector<1x64xf32>
    %16 = vector.broadcast %15 : vector<1x64xf32> to vector<392x64xf32>
    %17 = arith.subf %12, %16 : vector<392x64xf32>
    %18 = arith.mulf %17, %17 : vector<392x64xf32>
    %cst_9 = arith.constant dense<0.000000e+00> : vector<1x64xf32>
    %19 = tpu.matmul %11, %18, %cst_9 {dimension_numbers = #tpu.dot_dimension_numbers<[1], [0], [0], [1], [0, 0, 1, 1], [], []>} : vector<1x392xf32>, vector<392x64xf32>, vector<1x64xf32> -> vector<1x64xf32>
    %cst_10 = arith.constant 0.00255102036 : f32
    %20 = vector.broadcast %cst_10 : f32 to vector<1x64xf32>
    %21 = arith.mulf %19, %20 : vector<1x64xf32>
    %cst_11 = arith.constant 9.99999974E-6 : f32
    %22 = vector.broadcast %cst_11 : f32 to vector<1x64xf32>
    %23 = arith.addf %21, %22 : vector<1x64xf32>
    %24 = math.rsqrt %23 : vector<1x64xf32>
    %25 = vector.extract_strided_slice %10 {offsets = [0, 0], sizes = [1, 64], strides = [1, 1]} : vector<2x64xf32> to vector<1x64xf32>
    %26 = arith.mulf %24, %25 : vector<1x64xf32>
    %27 = vector.broadcast %26 : vector<1x64xf32> to vector<392x64xf32>
    %28 = arith.mulf %17, %27 : vector<392x64xf32>
    %29 = vector.extract_strided_slice %10 {offsets = [1, 0], sizes = [1, 64], strides = [1, 1]} : vector<2x64xf32> to vector<1x64xf32>
    %30 = vector.broadcast %29 : vector<1x64xf32> to vector<392x64xf32>
    %31 = arith.addf %28, %30 : vector<392x64xf32>
    %cst_12 = arith.constant 0.000000e+00 : f32
    %32 = vector.broadcast %cst_12 : f32 to vector<392x64xf32>
    %33 = arith.maximumf %31, %32 : vector<392x64xf32>
    %34 = vector.extract_strided_slice %33 {offsets = [0, 0], sizes = [391, 64], strides = [1, 1]} : vector<392x64xf32> to vector<391x64xf32>
    %35 = vector.extract_strided_slice %33 {offsets = [1, 0], sizes = [391, 64], strides = [1, 1]} : vector<392x64xf32> to vector<391x64xf32>
    %36 = arith.maximumf %34, %35 : vector<391x64xf32>
    %37 = vector.extract_strided_slice %36 {offsets = [0, 0], sizes = [377, 64], strides = [1, 1]} : vector<391x64xf32> to vector<377x64xf32>
    %38 = vector.extract_strided_slice %36 {offsets = [14, 0], sizes = [377, 64], strides = [1, 1]} : vector<391x64xf32> to vector<377x64xf32>
    %39 = arith.maximumf %37, %38 : vector<377x64xf32>
    %c0_i32_13 = arith.constant 0 : i32
    %40 = tpu.memref_slice %arg23[%c0_i32_13] : memref<4x!tpu.dma_semaphore, #tpu.memory_space<semaphore_mem>> -> memref<1x!tpu.dma_semaphore, #tpu.memory_space<semaphore_mem>>
    %41 = tpu.memref_squeeze %40 : memref<1x!tpu.dma_semaphore, #tpu.memory_space<semaphore_mem>> -> memref<!tpu.dma_semaphore, #tpu.memory_space<semaphore_mem>>
    tpu.wait_dma2 semaphore(%41 : memref<!tpu.dma_semaphore, #tpu.memory_space<semaphore_mem>>) src(%arg14 : memref<98x377xbf16, #tpu.memory_space<any>>) dst(%arg19 : memref<98x377xbf16, #tpu.memory_space<vmem>>)
    %c0_14 = arith.constant 0 : index
    %c0_15 = arith.constant 0 : index
    %42 = vector.load %arg19[%c0_14, %c0_15] : memref<98x377xbf16, #tpu.memory_space<vmem>>, vector<98x377xbf16>
    %cst_16 = arith.constant dense<0.000000e+00> : vector<98x64xf32>
    %43 = tpu.matmul %42, %39, %cst_16 {dimension_numbers = #tpu.dot_dimension_numbers<[1], [0], [0], [1], [0, 0, 1, 1], [], []>} : vector<98x377xbf16>, vector<377x64xf32>, vector<98x64xf32> -> vector<98x64xf32>
    %c1_i32_17 = arith.constant 1 : i32
    %44 = tpu.memref_slice %arg23[%c1_i32_17] : memref<4x!tpu.dma_semaphore, #tpu.memory_space<semaphore_mem>> -> memref<1x!tpu.dma_semaphore, #tpu.memory_space<semaphore_mem>>
    %45 = tpu.memref_squeeze %44 : memref<1x!tpu.dma_semaphore, #tpu.memory_space<semaphore_mem>> -> memref<!tpu.dma_semaphore, #tpu.memory_space<semaphore_mem>>
    tpu.wait_dma2 semaphore(%45 : memref<!tpu.dma_semaphore, #tpu.memory_space<semaphore_mem>>) src(%arg15 : memref<576x64xbf16, #tpu.memory_space<any>>) dst(%arg20 : memref<576x64xbf16, #tpu.memory_space<vmem>>)
    %46 = vector.extract_strided_slice %43 {offsets = [0, 0], sizes = [82, 64], strides = [1, 1]} : vector<98x64xf32> to vector<82x64xf32>
    %47 = vector.extract_strided_slice %43 {offsets = [1, 0], sizes = [82, 64], strides = [1, 1]} : vector<98x64xf32> to vector<82x64xf32>
    %48 = vector.extract_strided_slice %43 {offsets = [2, 0], sizes = [82, 64], strides = [1, 1]} : vector<98x64xf32> to vector<82x64xf32>
    %49 = vector.extract_strided_slice %43 {offsets = [7, 0], sizes = [82, 64], strides = [1, 1]} : vector<98x64xf32> to vector<82x64xf32>
    %50 = vector.extract_strided_slice %43 {offsets = [8, 0], sizes = [82, 64], strides = [1, 1]} : vector<98x64xf32> to vector<82x64xf32>
    %51 = vector.extract_strided_slice %43 {offsets = [9, 0], sizes = [82, 64], strides = [1, 1]} : vector<98x64xf32> to vector<82x64xf32>
    %52 = vector.extract_strided_slice %43 {offsets = [14, 0], sizes = [82, 64], strides = [1, 1]} : vector<98x64xf32> to vector<82x64xf32>
    %53 = vector.extract_strided_slice %43 {offsets = [15, 0], sizes = [82, 64], strides = [1, 1]} : vector<98x64xf32> to vector<82x64xf32>
    %54 = vector.extract_strided_slice %43 {offsets = [16, 0], sizes = [82, 64], strides = [1, 1]} : vector<98x64xf32> to vector<82x64xf32>
    %55 = tpu.concatenate %46, %47, %48, %49, %50, %51, %52, %53, %54 in 1 : vector<82x64xf32>, vector<82x64xf32>, vector<82x64xf32>, vector<82x64xf32>, vector<82x64xf32>, vector<82x64xf32>, vector<82x64xf32>, vector<82x64xf32>, vector<82x64xf32> -> vector<82x576xf32>
    %c0_18 = arith.constant 0 : index
    %c0_19 = arith.constant 0 : index
    %56 = vector.load %arg20[%c0_18, %c0_19] : memref<576x64xbf16, #tpu.memory_space<vmem>>, vector<576x64xbf16>
    %c0_20 = arith.constant 0 : index
    %c0_21 = arith.constant 0 : index
    %57 = vector.load %arg5[%c0_20, %c0_21] : memref<2x64xf32, #tpu.memory_space<vmem>>, vector<2x64xf32>
    %c0_22 = arith.constant 0 : index
    %c0_23 = arith.constant 0 : index
    %58 = vector.load %arg6[%c0_22, %c0_23] : memref<1x82xf32, #tpu.memory_space<vmem>>, vector<1x82xf32>
    %cst_24 = arith.constant dense<0.000000e+00> : vector<82x64xf32>
    %59 = tpu.matmul %55, %56, %cst_24 {dimension_numbers = #tpu.dot_dimension_numbers<[1], [0], [0], [1], [0, 0, 1, 1], [], []>} : vector<82x576xf32>, vector<576x64xbf16>, vector<82x64xf32> -> vector<82x64xf32>
    %cst_25 = arith.constant dense<0.000000e+00> : vector<1x64xf32>
    %60 = tpu.matmul %58, %59, %cst_25 {dimension_numbers = #tpu.dot_dimension_numbers<[1], [0], [0], [1], [0, 0, 1, 1], [], []>} : vector<1x82xf32>, vector<82x64xf32>, vector<1x64xf32> -> vector<1x64xf32>
    %cst_26 = arith.constant 2.000000e-02 : f32
    %61 = vector.broadcast %cst_26 : f32 to vector<1x64xf32>
    %62 = arith.mulf %60, %61 : vector<1x64xf32>
    %63 = vector.broadcast %62 : vector<1x64xf32> to vector<82x64xf32>
    %64 = arith.subf %59, %63 : vector<82x64xf32>
    %65 = arith.mulf %64, %64 : vector<82x64xf32>
    %cst_27 = arith.constant dense<0.000000e+00> : vector<1x64xf32>
    %66 = tpu.matmul %58, %65, %cst_27 {dimension_numbers = #tpu.dot_dimension_numbers<[1], [0], [0], [1], [0, 0, 1, 1], [], []>} : vector<1x82xf32>, vector<82x64xf32>, vector<1x64xf32> -> vector<1x64xf32>
    %cst_28 = arith.constant 2.000000e-02 : f32
    %67 = vector.broadcast %cst_28 : f32 to vector<1x64xf32>
    %68 = arith.mulf %66, %67 : vector<1x64xf32>
    %cst_29 = arith.constant 9.99999974E-6 : f32
    %69 = vector.broadcast %cst_29 : f32 to vector<1x64xf32>
    %70 = arith.addf %68, %69 : vector<1x64xf32>
    %71 = math.rsqrt %70 : vector<1x64xf32>
    %72 = vector.extract_strided_slice %57 {offsets = [0, 0], sizes = [1, 64], strides = [1, 1]} : vector<2x64xf32> to vector<1x64xf32>
    %73 = arith.mulf %71, %72 : vector<1x64xf32>
    %74 = vector.broadcast %73 : vector<1x64xf32> to vector<82x64xf32>
    %75 = arith.mulf %64, %74 : vector<82x64xf32>
    %76 = vector.extract_strided_slice %57 {offsets = [1, 0], sizes = [1, 64], strides = [1, 1]} : vector<2x64xf32> to vector<1x64xf32>
    %77 = vector.broadcast %76 : vector<1x64xf32> to vector<82x64xf32>
    %78 = arith.addf %75, %77 : vector<82x64xf32>
    %cst_30 = arith.constant 0.000000e+00 : f32
    %79 = vector.broadcast %cst_30 : f32 to vector<82x64xf32>
    %80 = arith.maximumf %78, %79 : vector<82x64xf32>
    %81 = vector.extract_strided_slice %80 {offsets = [0, 0], sizes = [81, 64], strides = [1, 1]} : vector<82x64xf32> to vector<81x64xf32>
    %82 = vector.extract_strided_slice %80 {offsets = [1, 0], sizes = [81, 64], strides = [1, 1]} : vector<82x64xf32> to vector<81x64xf32>
    %83 = arith.maximumf %81, %82 : vector<81x64xf32>
    %84 = vector.extract_strided_slice %83 {offsets = [0, 0], sizes = [74, 64], strides = [1, 1]} : vector<81x64xf32> to vector<74x64xf32>
    %85 = vector.extract_strided_slice %83 {offsets = [7, 0], sizes = [74, 64], strides = [1, 1]} : vector<81x64xf32> to vector<74x64xf32>
    %86 = arith.maximumf %84, %85 : vector<74x64xf32>
    %c0_31 = arith.constant 0 : index
    %c0_32 = arith.constant 0 : index
    %87 = vector.load %arg7[%c0_31, %c0_32] : memref<32x74xbf16, #tpu.memory_space<vmem>>, vector<32x74xbf16>
    %cst_33 = arith.constant dense<0.000000e+00> : vector<32x64xf32>
    %88 = tpu.matmul %87, %86, %cst_33 {dimension_numbers = #tpu.dot_dimension_numbers<[1], [0], [0], [1], [0, 0, 1, 1], [], []>} : vector<32x74xbf16>, vector<74x64xf32>, vector<32x64xf32> -> vector<32x64xf32>
    %c2_i32_34 = arith.constant 2 : i32
    %89 = tpu.memref_slice %arg23[%c2_i32_34] : memref<4x!tpu.dma_semaphore, #tpu.memory_space<semaphore_mem>> -> memref<1x!tpu.dma_semaphore, #tpu.memory_space<semaphore_mem>>
    %90 = tpu.memref_squeeze %89 : memref<1x!tpu.dma_semaphore, #tpu.memory_space<semaphore_mem>> -> memref<!tpu.dma_semaphore, #tpu.memory_space<semaphore_mem>>
    tpu.wait_dma2 semaphore(%90 : memref<!tpu.dma_semaphore, #tpu.memory_space<semaphore_mem>>) src(%arg16 : memref<576x64xbf16, #tpu.memory_space<any>>) dst(%arg21 : memref<576x64xbf16, #tpu.memory_space<vmem>>)
    %91 = vector.extract_strided_slice %88 {offsets = [0, 0], sizes = [22, 64], strides = [1, 1]} : vector<32x64xf32> to vector<22x64xf32>
    %92 = vector.extract_strided_slice %88 {offsets = [1, 0], sizes = [22, 64], strides = [1, 1]} : vector<32x64xf32> to vector<22x64xf32>
    %93 = vector.extract_strided_slice %88 {offsets = [2, 0], sizes = [22, 64], strides = [1, 1]} : vector<32x64xf32> to vector<22x64xf32>
    %94 = vector.extract_strided_slice %88 {offsets = [4, 0], sizes = [22, 64], strides = [1, 1]} : vector<32x64xf32> to vector<22x64xf32>
    %95 = vector.extract_strided_slice %88 {offsets = [5, 0], sizes = [22, 64], strides = [1, 1]} : vector<32x64xf32> to vector<22x64xf32>
    %96 = vector.extract_strided_slice %88 {offsets = [6, 0], sizes = [22, 64], strides = [1, 1]} : vector<32x64xf32> to vector<22x64xf32>
    %97 = vector.extract_strided_slice %88 {offsets = [8, 0], sizes = [22, 64], strides = [1, 1]} : vector<32x64xf32> to vector<22x64xf32>
    %98 = vector.extract_strided_slice %88 {offsets = [9, 0], sizes = [22, 64], strides = [1, 1]} : vector<32x64xf32> to vector<22x64xf32>
    %99 = vector.extract_strided_slice %88 {offsets = [10, 0], sizes = [22, 64], strides = [1, 1]} : vector<32x64xf32> to vector<22x64xf32>
    %100 = tpu.concatenate %91, %92, %93, %94, %95, %96, %97, %98, %99 in 1 : vector<22x64xf32>, vector<22x64xf32>, vector<22x64xf32>, vector<22x64xf32>, vector<22x64xf32>, vector<22x64xf32>, vector<22x64xf32>, vector<22x64xf32>, vector<22x64xf32> -> vector<22x576xf32>
    %c0_35 = arith.constant 0 : index
    %c0_36 = arith.constant 0 : index
    %101 = vector.load %arg21[%c0_35, %c0_36] : memref<576x64xbf16, #tpu.memory_space<vmem>>, vector<576x64xbf16>
    %c0_37 = arith.constant 0 : index
    %c0_38 = arith.constant 0 : index
    %102 = vector.load %arg8[%c0_37, %c0_38] : memref<2x64xf32, #tpu.memory_space<vmem>>, vector<2x64xf32>
    %c0_39 = arith.constant 0 : index
    %c0_40 = arith.constant 0 : index
    %103 = vector.load %arg9[%c0_39, %c0_40] : memref<1x22xf32, #tpu.memory_space<vmem>>, vector<1x22xf32>
    %cst_41 = arith.constant dense<0.000000e+00> : vector<22x64xf32>
    %104 = tpu.matmul %100, %101, %cst_41 {dimension_numbers = #tpu.dot_dimension_numbers<[1], [0], [0], [1], [0, 0, 1, 1], [], []>} : vector<22x576xf32>, vector<576x64xbf16>, vector<22x64xf32> -> vector<22x64xf32>
    %cst_42 = arith.constant dense<0.000000e+00> : vector<1x64xf32>
    %105 = tpu.matmul %103, %104, %cst_42 {dimension_numbers = #tpu.dot_dimension_numbers<[1], [0], [0], [1], [0, 0, 1, 1], [], []>} : vector<1x22xf32>, vector<22x64xf32>, vector<1x64xf32> -> vector<1x64xf32>
    %cst_43 = arith.constant 1.250000e-01 : f32
    %106 = vector.broadcast %cst_43 : f32 to vector<1x64xf32>
    %107 = arith.mulf %105, %106 : vector<1x64xf32>
    %108 = vector.broadcast %107 : vector<1x64xf32> to vector<22x64xf32>
    %109 = arith.subf %104, %108 : vector<22x64xf32>
    %110 = arith.mulf %109, %109 : vector<22x64xf32>
    %cst_44 = arith.constant dense<0.000000e+00> : vector<1x64xf32>
    %111 = tpu.matmul %103, %110, %cst_44 {dimension_numbers = #tpu.dot_dimension_numbers<[1], [0], [0], [1], [0, 0, 1, 1], [], []>} : vector<1x22xf32>, vector<22x64xf32>, vector<1x64xf32> -> vector<1x64xf32>
    %cst_45 = arith.constant 1.250000e-01 : f32
    %112 = vector.broadcast %cst_45 : f32 to vector<1x64xf32>
    %113 = arith.mulf %111, %112 : vector<1x64xf32>
    %cst_46 = arith.constant 9.99999974E-6 : f32
    %114 = vector.broadcast %cst_46 : f32 to vector<1x64xf32>
    %115 = arith.addf %113, %114 : vector<1x64xf32>
    %116 = math.rsqrt %115 : vector<1x64xf32>
    %117 = vector.extract_strided_slice %102 {offsets = [0, 0], sizes = [1, 64], strides = [1, 1]} : vector<2x64xf32> to vector<1x64xf32>
    %118 = arith.mulf %116, %117 : vector<1x64xf32>
    %119 = vector.broadcast %118 : vector<1x64xf32> to vector<22x64xf32>
    %120 = arith.mulf %109, %119 : vector<22x64xf32>
    %121 = vector.extract_strided_slice %102 {offsets = [1, 0], sizes = [1, 64], strides = [1, 1]} : vector<2x64xf32> to vector<1x64xf32>
    %122 = vector.broadcast %121 : vector<1x64xf32> to vector<22x64xf32>
    %123 = arith.addf %120, %122 : vector<22x64xf32>
    %cst_47 = arith.constant 0.000000e+00 : f32
    %124 = vector.broadcast %cst_47 : f32 to vector<22x64xf32>
    %125 = arith.maximumf %123, %124 : vector<22x64xf32>
    %c0_48 = arith.constant 0 : index
    %c0_49 = arith.constant 0 : index
    %126 = vector.load %arg10[%c0_48, %c0_49] : memref<32x22xbf16, #tpu.memory_space<vmem>>, vector<32x22xbf16>
    %cst_50 = arith.constant dense<0.000000e+00> : vector<32x64xf32>
    %127 = tpu.matmul %126, %125, %cst_50 {dimension_numbers = #tpu.dot_dimension_numbers<[1], [0], [0], [1], [0, 0, 1, 1], [], []>} : vector<32x22xbf16>, vector<22x64xf32>, vector<32x64xf32> -> vector<32x64xf32>
    %c3_i32_51 = arith.constant 3 : i32
    %128 = tpu.memref_slice %arg23[%c3_i32_51] : memref<4x!tpu.dma_semaphore, #tpu.memory_space<semaphore_mem>> -> memref<1x!tpu.dma_semaphore, #tpu.memory_space<semaphore_mem>>
    %129 = tpu.memref_squeeze %128 : memref<1x!tpu.dma_semaphore, #tpu.memory_space<semaphore_mem>> -> memref<!tpu.dma_semaphore, #tpu.memory_space<semaphore_mem>>
    tpu.wait_dma2 semaphore(%129 : memref<!tpu.dma_semaphore, #tpu.memory_space<semaphore_mem>>) src(%arg17 : memref<576x64xbf16, #tpu.memory_space<any>>) dst(%arg22 : memref<576x64xbf16, #tpu.memory_space<vmem>>)
    %130 = vector.extract_strided_slice %127 {offsets = [0, 0], sizes = [22, 64], strides = [1, 1]} : vector<32x64xf32> to vector<22x64xf32>
    %131 = vector.extract_strided_slice %127 {offsets = [1, 0], sizes = [22, 64], strides = [1, 1]} : vector<32x64xf32> to vector<22x64xf32>
    %132 = vector.extract_strided_slice %127 {offsets = [2, 0], sizes = [22, 64], strides = [1, 1]} : vector<32x64xf32> to vector<22x64xf32>
    %133 = vector.extract_strided_slice %127 {offsets = [4, 0], sizes = [22, 64], strides = [1, 1]} : vector<32x64xf32> to vector<22x64xf32>
    %134 = vector.extract_strided_slice %127 {offsets = [5, 0], sizes = [22, 64], strides = [1, 1]} : vector<32x64xf32> to vector<22x64xf32>
    %135 = vector.extract_strided_slice %127 {offsets = [6, 0], sizes = [22, 64], strides = [1, 1]} : vector<32x64xf32> to vector<22x64xf32>
    %136 = vector.extract_strided_slice %127 {offsets = [8, 0], sizes = [22, 64], strides = [1, 1]} : vector<32x64xf32> to vector<22x64xf32>
    %137 = vector.extract_strided_slice %127 {offsets = [9, 0], sizes = [22, 64], strides = [1, 1]} : vector<32x64xf32> to vector<22x64xf32>
    %138 = vector.extract_strided_slice %127 {offsets = [10, 0], sizes = [22, 64], strides = [1, 1]} : vector<32x64xf32> to vector<22x64xf32>
    %139 = tpu.concatenate %130, %131, %132, %133, %134, %135, %136, %137, %138 in 1 : vector<22x64xf32>, vector<22x64xf32>, vector<22x64xf32>, vector<22x64xf32>, vector<22x64xf32>, vector<22x64xf32>, vector<22x64xf32>, vector<22x64xf32>, vector<22x64xf32> -> vector<22x576xf32>
    %c0_52 = arith.constant 0 : index
    %c0_53 = arith.constant 0 : index
    %140 = vector.load %arg22[%c0_52, %c0_53] : memref<576x64xbf16, #tpu.memory_space<vmem>>, vector<576x64xbf16>
    %c0_54 = arith.constant 0 : index
    %c0_55 = arith.constant 0 : index
    %141 = vector.load %arg11[%c0_54, %c0_55] : memref<2x64xf32, #tpu.memory_space<vmem>>, vector<2x64xf32>
    %c0_56 = arith.constant 0 : index
    %c0_57 = arith.constant 0 : index
    %142 = vector.load %arg12[%c0_56, %c0_57] : memref<1x22xf32, #tpu.memory_space<vmem>>, vector<1x22xf32>
    %cst_58 = arith.constant dense<0.000000e+00> : vector<22x64xf32>
    %143 = tpu.matmul %139, %140, %cst_58 {dimension_numbers = #tpu.dot_dimension_numbers<[1], [0], [0], [1], [0, 0, 1, 1], [], []>} : vector<22x576xf32>, vector<576x64xbf16>, vector<22x64xf32> -> vector<22x64xf32>
    %cst_59 = arith.constant dense<0.000000e+00> : vector<1x64xf32>
    %144 = tpu.matmul %142, %143, %cst_59 {dimension_numbers = #tpu.dot_dimension_numbers<[1], [0], [0], [1], [0, 0, 1, 1], [], []>} : vector<1x22xf32>, vector<22x64xf32>, vector<1x64xf32> -> vector<1x64xf32>
    %cst_60 = arith.constant 1.250000e-01 : f32
    %145 = vector.broadcast %cst_60 : f32 to vector<1x64xf32>
    %146 = arith.mulf %144, %145 : vector<1x64xf32>
    %147 = vector.broadcast %146 : vector<1x64xf32> to vector<22x64xf32>
    %148 = arith.subf %143, %147 : vector<22x64xf32>
    %149 = arith.mulf %148, %148 : vector<22x64xf32>
    %cst_61 = arith.constant dense<0.000000e+00> : vector<1x64xf32>
    %150 = tpu.matmul %142, %149, %cst_61 {dimension_numbers = #tpu.dot_dimension_numbers<[1], [0], [0], [1], [0, 0, 1, 1], [], []>} : vector<1x22xf32>, vector<22x64xf32>, vector<1x64xf32> -> vector<1x64xf32>
    %cst_62 = arith.constant 1.250000e-01 : f32
    %151 = vector.broadcast %cst_62 : f32 to vector<1x64xf32>
    %152 = arith.mulf %150, %151 : vector<1x64xf32>
    %cst_63 = arith.constant 9.99999974E-6 : f32
    %153 = vector.broadcast %cst_63 : f32 to vector<1x64xf32>
    %154 = arith.addf %152, %153 : vector<1x64xf32>
    %155 = math.rsqrt %154 : vector<1x64xf32>
    %156 = vector.extract_strided_slice %141 {offsets = [0, 0], sizes = [1, 64], strides = [1, 1]} : vector<2x64xf32> to vector<1x64xf32>
    %157 = arith.mulf %155, %156 : vector<1x64xf32>
    %158 = vector.broadcast %157 : vector<1x64xf32> to vector<22x64xf32>
    %159 = arith.mulf %148, %158 : vector<22x64xf32>
    %160 = vector.extract_strided_slice %141 {offsets = [1, 0], sizes = [1, 64], strides = [1, 1]} : vector<2x64xf32> to vector<1x64xf32>
    %161 = vector.broadcast %160 : vector<1x64xf32> to vector<22x64xf32>
    %162 = arith.addf %159, %161 : vector<22x64xf32>
    %cst_64 = arith.constant 0.000000e+00 : f32
    %163 = vector.broadcast %cst_64 : f32 to vector<22x64xf32>
    %164 = arith.maximumf %162, %163 : vector<22x64xf32>
    %c0_65 = arith.constant 0 : index
    %c0_66 = arith.constant 0 : index
    %165 = vector.load %arg13[%c0_65, %c0_66] : memref<8x22xbf16, #tpu.memory_space<vmem>>, vector<8x22xbf16>
    %cst_67 = arith.constant dense<0.000000e+00> : vector<8x64xf32>
    %166 = tpu.matmul %165, %164, %cst_67 {dimension_numbers = #tpu.dot_dimension_numbers<[1], [0], [0], [1], [0, 0, 1, 1], [], []>} : vector<8x22xbf16>, vector<22x64xf32>, vector<8x64xf32> -> vector<8x64xf32>
    %167 = vector.extract_strided_slice %166 {offsets = [0, 0], sizes = [4, 64], strides = [1, 1]} : vector<8x64xf32> to vector<4x64xf32>
    %168 = vector.extract_strided_slice %166 {offsets = [4, 0], sizes = [4, 64], strides = [1, 1]} : vector<8x64xf32> to vector<4x64xf32>
    %169 = tpu.concatenate %167, %168 in 1 : vector<4x64xf32>, vector<4x64xf32> -> vector<4x128xf32>
    %c0_68 = arith.constant 0 : index
    %c0_69 = arith.constant 0 : index
    %170 = vector.load %arg18[%c0_68, %c0_69] : memref<4x128xf32, #tpu.memory_space<vmem>>, vector<4x128xf32>
    tpu.vector_store %arg18[%c0_68, %c0_69], %169 {strides = array<i32>} : memref<4x128xf32, #tpu.memory_space<vmem>>, vector<4x128xf32>,
    return
  }
  func.func @transform_0(%arg0: i32) -> (i32, i32) {
    %c0_i32 = arith.constant 0 : i32
    %c0_i32_0 = arith.constant 0 : i32
    %c0_i32_1 = arith.constant 0 : i32
    return %c0_i32, %c0_i32_0 : i32, i32
  }
  func.func @transform_1(%arg0: i32) -> (i32, i32) {
    %c0_i32 = arith.constant 0 : i32
    %c0_i32_0 = arith.constant 0 : i32
    %c0_i32_1 = arith.constant 0 : i32
    return %c0_i32, %c0_i32_0 : i32, i32
  }
  func.func @transform_2(%arg0: i32) -> (i32, i32) {
    %c0_i32 = arith.constant 0 : i32
    %c0_i32_0 = arith.constant 0 : i32
    %c0_i32_1 = arith.constant 0 : i32
    return %c0_i32, %c0_i32_0 : i32, i32
  }
  func.func @transform_3(%arg0: i32) -> (i32, i32) {
    %c0_i32 = arith.constant 0 : i32
    %c0_i32_0 = arith.constant 0 : i32
    %c0_i32_1 = arith.constant 0 : i32
    return %c0_i32, %c0_i32_0 : i32, i32
  }
  func.func @transform_4(%arg0: i32) -> (i32, i32) {
    %c0_i32 = arith.constant 0 : i32
    %c0_i32_0 = arith.constant 0 : i32
    %c0_i32_1 = arith.constant 0 : i32
    return %c0_i32, %c0_i32_0 : i32, i32
  }
  func.func @transform_5(%arg0: i32) -> (i32, i32) {
    %c0_i32 = arith.constant 0 : i32
    %c0_i32_0 = arith.constant 0 : i32
    %c0_i32_1 = arith.constant 0 : i32
    return %c0_i32, %c0_i32_0 : i32, i32
  }
  func.func @transform_6(%arg0: i32) -> (i32, i32) {
    %c0_i32 = arith.constant 0 : i32
    %c0_i32_0 = arith.constant 0 : i32
    %c0_i32_1 = arith.constant 0 : i32
    return %c0_i32, %c0_i32_0 : i32, i32
  }
  func.func @transform_7(%arg0: i32) -> (i32, i32) {
    %c0_i32 = arith.constant 0 : i32
    %c0_i32_0 = arith.constant 0 : i32
    %c0_i32_1 = arith.constant 0 : i32
    return %c0_i32, %c0_i32_0 : i32, i32
  }
  func.func @transform_8(%arg0: i32) -> (i32, i32) {
    %c0_i32 = arith.constant 0 : i32
    %c0_i32_0 = arith.constant 0 : i32
    %c0_i32_1 = arith.constant 0 : i32
    return %c0_i32, %c0_i32_0 : i32, i32
  }
  func.func @transform_9(%arg0: i32) -> (i32, i32) {
    %c0_i32 = arith.constant 0 : i32
    %c0_i32_0 = arith.constant 0 : i32
    %c0_i32_1 = arith.constant 0 : i32
    return %c0_i32, %c0_i32_0 : i32, i32
  }
  func.func @transform_10(%arg0: i32) -> (i32, i32) {
    %c0_i32 = arith.constant 0 : i32
    %c0_i32_0 = arith.constant 0 : i32
    %c0_i32_1 = arith.constant 0 : i32
    return %c0_i32, %c0_i32_0 : i32, i32
  }
  func.func @transform_11(%arg0: i32) -> (i32, i32) {
    %c0_i32 = arith.constant 0 : i32
    %c0_i32_0 = arith.constant 0 : i32
    %c0_i32_1 = arith.constant 0 : i32
    return %c0_i32, %c0_i32_0 : i32, i32
  }
  func.func @transform_12(%arg0: i32) -> (i32, i32) {
    %c0_i32 = arith.constant 0 : i32
    %c0_i32_0 = arith.constant 0 : i32
    %c0_i32_1 = arith.constant 0 : i32
    return %c0_i32, %c0_i32_0 : i32, i32
  }
  func.func @transform_17(%arg0: i32) -> (i32, i32) {
    %c0_i32 = arith.constant 0 : i32
    %c0_i32_0 = arith.constant 0 : i32
    %c0_i32_1 = arith.constant 0 : i32
    return %c0_i32, %c0_i32_0 : i32, i32
  }
}

</mosaic_0001>

<llo_original>
// kernel: tpu_custom_call.1
$region0: #{tpu_custom_call.1}
  #allocation0 [shape = 'u32[]', space=smem, size = 0x4, offset = 0x4, fixed_abs, tag = 'smem constant byte address 0x4 - core index']
  #allocation1 [shape = 'u32[144,128]{1,0:T(1,128)}', space=vmem, size = 0x12000, scoped, tag = 'internal scratch']
  #allocation2 [shape = 'bf16[98,377]{1,0:T(8,128)(2,1)}', space=vmem, size = 0x13800, scoped, tag = 'scratch operand']
  #allocation3 [shape = 'bf16[576,64]{1,0:T(16,128)(2,1)}', space=vmem, size = 0x24000, scoped, tag = 'scratch operand']
  #allocation4 [shape = 'bf16[576,64]{1,0:T(16,128)(2,1)}', space=vmem, size = 0x24000, scoped, tag = 'scratch operand']
  #allocation5 [shape = 'bf16[576,64]{1,0:T(16,128)(2,1)}', space=vmem, size = 0x24000, scoped, tag = 'scratch operand']
  #allocation6 [shape = 's32[4]{0}', space=sflag, size = 0x10, scoped, tag = 'scratch operand']
  #allocation9 [shape = 's32[]', space=sflag, size = 0x4, offset = 0, fixed_abs, tag = 'sflag constant byte address 0x0 - dummy sync flag']
  #allocation10 [shape = 's32[]', space=sflag, size = 0x4, offset = 0, fixed_abs, tag = 'sflag constant byte address 0x0 - dummy sync flag']
  #allocation11 [shape = 's32[]', space=sflag, size = 0x4, offset = 0, fixed_abs, tag = 'sflag constant byte address 0x0 - dummy sync flag']
  #allocation12 [shape = 's32[]', space=sflag, size = 0x4, offset = 0, fixed_abs, tag = 'sflag constant byte address 0x0 - dummy sync flag']
  %s0 = inlined_call_operand.vmem [shape: bf16[392,36], index: 0, kind: input, shape index: {}]
  %s1 = inlined_call_operand.vmem [shape: bf16[36,64], index: 1, kind: input, shape index: {}]
  %s2 = inlined_call_operand.vmem [shape: f32[2,64], index: 2, kind: input, shape index: {}]
  %s3 = inlined_call_operand.vmem [shape: f32[1,392], index: 3, kind: input, shape index: {}]
  %s4 = inlined_call_operand.vmem [shape: f32[2,64], index: 4, kind: input, shape index: {}]
  %s5 = inlined_call_operand.vmem [shape: f32[1,82], index: 5, kind: input, shape index: {}]
  %s6 = inlined_call_operand.vmem [shape: bf16[32,74], index: 6, kind: input, shape index: {}]
  %s7 = inlined_call_operand.vmem [shape: f32[2,64], index: 7, kind: input, shape index: {}]
  %s8 = inlined_call_operand.vmem [shape: f32[1,22], index: 8, kind: input, shape index: {}]
  %s9 = inlined_call_operand.vmem [shape: bf16[32,22], index: 9, kind: input, shape index: {}]
  %s10 = inlined_call_operand.vmem [shape: f32[2,64], index: 10, kind: input, shape index: {}]
  %s11 = inlined_call_operand.vmem [shape: f32[1,22], index: 11, kind: input, shape index: {}]
  %s12 = inlined_call_operand.vmem [shape: bf16[8,22], index: 12, kind: input, shape index: {}]
  %s13 = inlined_call_operand.vmem [shape: bf16[98,377], index: 13, kind: input, shape index: {}]
  %s14 = inlined_call_operand.vmem [shape: bf16[576,64], index: 14, kind: input, shape index: {}]
  %s15 = inlined_call_operand.vmem [shape: bf16[576,64], index: 15, kind: input, shape index: {}]
  %s16 = inlined_call_operand.vmem [shape: bf16[576,64], index: 16, kind: input, shape index: {}]
  %s17 = inlined_call_operand.hbm [shape: f32[4,128], index: 17, kind: output, shape index: {}]
  %s18 = sld [smem:[#allocation0]]
  $region201: #{tpu_custom_call.1} parent=0
    _
  %s20 = ssub.s32 1, %s18
  %s21 = scalar_select 0, %s20, %s18
  $region1: #{tpu_custom_call.1} parent=0
    #allocation7 [shape = 'u8[2048]{0}', space=vmem, size = 0x800, scoped, tag = 'output window, operand 0, single buffered']
    #allocation8 [shape = 's32[1]{0}', space=sflag, size = 0x4, scoped, tag = 'scoped memory for tpu_custom_call.1']
    %22 = vsyncpa [#allocation8], 0
    // Predicated region
    $region2: #{tpu_custom_call.1} parent=1 // pred_check
      _
    $region3: #{tpu_custom_call.1} parent=1 // pred_check_branch
      %24 = sbr.rel (0) target = $region5
    $region4: #{tpu_custom_call.1} parent=1 // pred_region
      _
    $region5: #{tpu_custom_call.1} parent=1 // pred_fallthru
      _
    // Predicated region
    $region6: #{tpu_custom_call.1} parent=1 // pred_check
      _
    $region7: #{tpu_custom_call.1} parent=1 // pred_check_branch
      %26 = sbr.rel (0) target = $region9
    $region8: #{tpu_custom_call.1} parent=1 // pred_region
      _
    $region9: #{tpu_custom_call.1} parent=1 // pred_fallthru
      _
    // Predicated region
    $region10: #{tpu_custom_call.1} parent=1 // pred_check
      _
    $region11: #{tpu_custom_call.1} parent=1 // pred_check_branch
      %28 = sbr.rel (0) target = $region13
    $region12: #{tpu_custom_call.1} parent=1 // pred_region
      _
    $region13: #{tpu_custom_call.1} parent=1 // pred_fallthru
      _
    // Predicated region
    $region14: #{tpu_custom_call.1} parent=1 // pred_check
      _
    $region15: #{tpu_custom_call.1} parent=1 // pred_check_branch
      %30 = sbr.rel (0) target = $region17
    $region16: #{tpu_custom_call.1} parent=1 // pred_region
      _
    $region17: #{tpu_custom_call.1} parent=1 // pred_fallthru
      _
    // Predicated region
    $region18: #{tpu_custom_call.1} parent=1 // pred_check
      _
    $region19: #{tpu_custom_call.1} parent=1 // pred_check_branch
      %32 = sbr.rel (0) target = $region21
    $region20: #{tpu_custom_call.1} parent=1 // pred_region
      _
    $region21: #{tpu_custom_call.1} parent=1 // pred_fallthru
      _
    // Predicated region
    $region22: #{tpu_custom_call.1} parent=1 // pred_check
      _
    $region23: #{tpu_custom_call.1} parent=1 // pred_check_branch
      %34 = sbr.rel (0) target = $region25
    $region24: #{tpu_custom_call.1} parent=1 // pred_region
      _
    $region25: #{tpu_custom_call.1} parent=1 // pred_fallthru
      _
    // Predicated region
    $region26: #{tpu_custom_call.1} parent=1 // pred_check
      _
    $region27: #{tpu_custom_call.1} parent=1 // pred_check_branch
      %36 = sbr.rel (0) target = $region29
    $region28: #{tpu_custom_call.1} parent=1 // pred_region
      _
    $region29: #{tpu_custom_call.1} parent=1 // pred_fallthru
      _
    // Predicated region
    $region30: #{tpu_custom_call.1} parent=1 // pred_check
      _
    $region31: #{tpu_custom_call.1} parent=1 // pred_check_branch
      %38 = sbr.rel (0) target = $region33
    $region32: #{tpu_custom_call.1} parent=1 // pred_region
      _
    $region33: #{tpu_custom_call.1} parent=1 // pred_fallthru
      _
    // Predicated region
    $region34: #{tpu_custom_call.1} parent=1 // pred_check
      _
    $region35: #{tpu_custom_call.1} parent=1 // pred_check_branch
      %40 = sbr.rel (0) target = $region37
    $region36: #{tpu_custom_call.1} parent=1 // pred_region
      _
    $region37: #{tpu_custom_call.1} parent=1 // pred_fallthru
      _
    // Predicated region
    $region38: #{tpu_custom_call.1} parent=1 // pred_check
      _
    $region39: #{tpu_custom_call.1} parent=1 // pred_check_branch
      %42 = sbr.rel (0) target = $region41
    $region40: #{tpu_custom_call.1} parent=1 // pred_region
      _
    $region41: #{tpu_custom_call.1} parent=1 // pred_fallthru
      _
    // Predicated region
    $region42: #{tpu_custom_call.1} parent=1 // pred_check
      _
    $region43: #{tpu_custom_call.1} parent=1 // pred_check_branch
      %44 = sbr.rel (0) target = $region45
    $region44: #{tpu_custom_call.1} parent=1 // pred_region
      _
    $region45: #{tpu_custom_call.1} parent=1 // pred_fallthru
      _
    // Predicated region
    $region46: #{tpu_custom_call.1} parent=1 // pred_check
      _
    $region47: #{tpu_custom_call.1} parent=1 // pred_check_branch
      %46 = sbr.rel (0) target = $region49
    $region48: #{tpu_custom_call.1} parent=1 // pred_region
      _
    $region49: #{tpu_custom_call.1} parent=1 // pred_fallthru
      _
    // Predicated region
    $region50: #{tpu_custom_call.1} parent=1 // pred_check
      _
    $region51: #{tpu_custom_call.1} parent=1 // pred_check_branch
      %48 = sbr.rel (0) target = $region53
    $region52: #{tpu_custom_call.1} parent=1 // pred_region
      _
    $region53: #{tpu_custom_call.1} parent=1 // pred_fallthru
      _
    %p51 = scmp.lt.u32.totalorder 156, 8
    %p52 = pneg %p51
    // Predicated region
    $region54: #{tpu_custom_call.1} parent=1 // pred_check
      _
    $region55: #{tpu_custom_call.1} parent=1 // pred_check_branch
      %54 = sbr.rel (%p51) target = $region57
    $region56: #{tpu_custom_call.1} parent=1 // pred_region
      %s69 = sand.u32 156, 7
      %p70 = scmp.eq.s32.totalorder %s69, 0
      %p71 = pneg %p70
      // Predicated region
      $region69: #{tpu_custom_call.1} parent=56 // pred_check
        _
      $region70: #{tpu_custom_call.1} parent=56 // pred_check_branch
        %73 = sbr.rel (%p70) target = $region72
      $region71: #{tpu_custom_call.1} parent=56 // pred_region
        %s74 = sand.u32 156, 7
        %s75 = ssub.s32 156, %s74
        %s76 = scalar_lea.vmem %s13, %s75
        %s77 = ssub.s32 156, %s74
        %s78 = scalar_lea.vmem [#allocation2], %s77
        loop: start=0, step=1, limit=1
        $region73: #{tpu_custom_call.1} parent=71 // loop_pre_header
          _
        $region74: #{tpu_custom_call.1} parent=71 // loop_header
          %s80 = sphi 0, %s84
          %p81 = scmp.ge.s32.totalorder %s80, 1
          %s85 = sphi %s13, %s13
          %s86 = sphi [#allocation2], [#allocation2]
        $region75: #{tpu_custom_call.1} parent=71 // loop_header_branch
          %83 = sbr.rel (%p81) target = $region79
        $region76: #{tpu_custom_call.1} parent=71 // loop_body
          %v87 = vld [vmem:[%s85] sm:$0xff]
          %88 = vst [vmem:[%s86] sm:$0xff] %v87
          %v89 = vld [vmem:[%s85 + $0x8] sm:$0xff]
          %90 = vst [vmem:[%s86 + $0x8] sm:$0xff] %v89
          %v91 = vld [vmem:[%s85 + $0x10] sm:$0xff]
          %92 = vst [vmem:[%s86 + $0x10] sm:$0xff] %v91
          %v93 = vld [vmem:[%s85 + $0x18] sm:$0xff]
          %94 = vst [vmem:[%s86 + $0x18] sm:$0xff] %v93
          %v95 = vld [vmem:[%s85 + $0x20] sm:$0xff]
          %96 = vst [vmem:[%s86 + $0x20] sm:$0xff] %v95
          %v97 = vld [vmem:[%s85 + $0x28] sm:$0xff]
          %98 = vst [vmem:[%s86 + $0x28] sm:$0xff] %v97
          %v99 = vld [vmem:[%s85 + $0x30] sm:$0xff]
          %100 = vst [vmem:[%s86 + $0x30] sm:$0xff] %v99
          %v101 = vld [vmem:[%s85 + $0x38] sm:$0xff]
          %102 = vst [vmem:[%s86 + $0x38] sm:$0xff] %v101
          %v103 = vld [vmem:[%s85 + $0x40] sm:$0xff]
          %104 = vst [vmem:[%s86 + $0x40] sm:$0xff] %v103
          %v105 = vld [vmem:[%s85 + $0x48] sm:$0xff]
          %106 = vst [vmem:[%s86 + $0x48] sm:$0xff] %v105
          %v107 = vld [vmem:[%s85 + $0x50] sm:$0xff]
          %108 = vst [vmem:[%s86 + $0x50] sm:$0xff] %v107
          %v109 = vld [vmem:[%s85 + $0x58] sm:$0xff]
          %110 = vst [vmem:[%s86 + $0x58] sm:$0xff] %v109
          %v111 = vld [vmem:[%s85 + $0x60] sm:$0xff]
          %112 = vst [vmem:[%s86 + $0x60] sm:$0xff] %v111
          %v113 = vld [vmem:[%s85 + $0x68] sm:$0xff]
          %114 = vst [vmem:[%s86 + $0x68] sm:$0xff] %v113
          %v115 = vld [vmem:[%s85 + $0x70] sm:$0xff]
          %116 = vst [vmem:[%s86 + $0x70] sm:$0xff] %v115
          %v117 = vld [vmem:[%s85 + $0x78] sm:$0xff]
          %118 = vst [vmem:[%s86 + $0x78] sm:$0xff] %v117
          %v119 = vld [vmem:[%s85 + $0x80] sm:$0xff]
          %120 = vst [vmem:[%s86 + $0x80] sm:$0xff] %v119
          %v121 = vld [vmem:[%s85 + $0x88] sm:$0xff]
          %122 = vst [vmem:[%s86 + $0x88] sm:$0xff] %v121
          %v123 = vld [vmem:[%s85 + $0x90] sm:$0xff]
          %124 = vst [vmem:[%s86 + $0x90] sm:$0xff] %v123
        $region77: #{tpu_custom_call.1} parent=71 // loop_footer
          %s84 = sadd.s32 1, %s80
        $region78: #{tpu_custom_call.1} parent=71 // loop_footer_branch
          %79 = sbr.rel target = $region74
        $region79: #{tpu_custom_call.1} parent=71 // loop_exit
          _
        %s125 = sshllo.u32 0, %s74
        loop: start=0, step=1, limit=1
        $region80: #{tpu_custom_call.1} parent=71 // loop_pre_header
          _
        $region81: #{tpu_custom_call.1} parent=71 // loop_header
          %s127 = sphi 0, %s131
          %p128 = scmp.ge.s32.totalorder %s127, 1
          %s132 = sphi %s76, %s76
          %s133 = sphi %s78, %s78
        $region82: #{tpu_custom_call.1} parent=71 // loop_header_branch
          %130 = sbr.rel (%p128) target = $region86
        $region83: #{tpu_custom_call.1} parent=71 // loop_body
          %v134 = vld [vmem:[%s132] sm:%s125]
          %135 = vst [vmem:[%s133] sm:%s125] %v134
        $region84: #{tpu_custom_call.1} parent=71 // loop_footer
          %s131 = sadd.s32 1, %s127
        $region85: #{tpu_custom_call.1} parent=71 // loop_footer_branch
          %126 = sbr.rel target = $region81
        $region86: #{tpu_custom_call.1} parent=71 // loop_exit
          _
      $region72: #{tpu_custom_call.1} parent=56 // pred_fallthru
        _
    $region57: #{tpu_custom_call.1} parent=1 // pred_fallthru
      _
    // Predicated region
    $region58: #{tpu_custom_call.1} parent=1 // pred_check
      %p55 = pneg %p51
    $region59: #{tpu_custom_call.1} parent=1 // pred_check_branch
      %57 = sbr.rel (%p55) target = $region61
    $region60: #{tpu_custom_call.1} parent=1 // pred_region
      %s58 = sshllo.u32 0, 156
      loop: start=0, step=1, limit=1
      $region62: #{tpu_custom_call.1} parent=60 // loop_pre_header
        _
      $region63: #{tpu_custom_call.1} parent=60 // loop_header
        %s60 = sphi 0, %s64
        %p61 = scmp.ge.s32.totalorder %s60, 1
        %s65 = sphi %s13, %s13
        %s66 = sphi [#allocation2], [#allocation2]
      $region64: #{tpu_custom_call.1} parent=60 // loop_header_branch
        %63 = sbr.rel (%p61) target = $region68
      $region65: #{tpu_custom_call.1} parent=60 // loop_body
        %v67 = vld [vmem:[%s65] sm:%s58]
        %68 = vst [vmem:[%s66] sm:%s58] %v67
      $region66: #{tpu_custom_call.1} parent=60 // loop_footer
        %s64 = sadd.s32 1, %s60
      $region67: #{tpu_custom_call.1} parent=60 // loop_footer_branch
        %59 = sbr.rel target = $region63
      $region68: #{tpu_custom_call.1} parent=60 // loop_exit
        _
    $region61: #{tpu_custom_call.1} parent=1 // pred_fallthru
      _
    // Predicated region
    $region87: #{tpu_custom_call.1} parent=1 // pred_check
      _
    $region88: #{tpu_custom_call.1} parent=1 // pred_check_branch
      %138 = sbr.rel (0) target = $region90
    $region89: #{tpu_custom_call.1} parent=1 // pred_region
      %139 = vsyncadd [#allocation6], 2496
    $region90: #{tpu_custom_call.1} parent=1 // pred_fallthru
      _
    %s140 = scalar_lea.sflag [#allocation6], 1
    %p142 = scmp.lt.u32.totalorder 288, 8
    %p143 = pneg %p142
    // Predicated region
    $region91: #{tpu_custom_call.1} parent=1 // pred_check
      _
    $region92: #{tpu_custom_call.1} parent=1 // pred_check_branch
      %145 = sbr.rel (%p142) target = $region94
    $region93: #{tpu_custom_call.1} parent=1 // pred_region
      %s160 = sand.u32 288, 7
      %p161 = scmp.eq.s32.totalorder %s160, 0
      // Predicated region
      $region106: #{tpu_custom_call.1} parent=93 // pred_check
        %p162 = pneg %p161
      $region107: #{tpu_custom_call.1} parent=93 // pred_check_branch
        %164 = sbr.rel (%p162) target = $region109
      $region108: #{tpu_custom_call.1} parent=93 // pred_region
        loop: start=0, step=1, limit=1
        $region110: #{tpu_custom_call.1} parent=108 // loop_pre_header
          _
        $region111: #{tpu_custom_call.1} parent=108 // loop_header
          %s166 = sphi 0, %s170
          %p167 = scmp.ge.s32.totalorder %s166, 1
          %s171 = sphi %s14, %s14
          %s172 = sphi [#allocation3], [#allocation3]
        $region112: #{tpu_custom_call.1} parent=108 // loop_header_branch
          %169 = sbr.rel (%p167) target = $region116
        $region113: #{tpu_custom_call.1} parent=108 // loop_body
          %v173 = vld [vmem:[%s171] sm:$0xff]
          %174 = vst [vmem:[%s172] sm:$0xff] %v173
          %v175 = vld [vmem:[%s171 + $0x8] sm:$0xff]
          %176 = vst [vmem:[%s172 + $0x8] sm:$0xff] %v175
          %v177 = vld [vmem:[%s171 + $0x10] sm:$0xff]
          %178 = vst [vmem:[%s172 + $0x10] sm:$0xff] %v177
          %v179 = vld [vmem:[%s171 + $0x18] sm:$0xff]
          %180 = vst [vmem:[%s172 + $0x18] sm:$0xff] %v179
          %v181 = vld [vmem:[%s171 + $0x20] sm:$0xff]
          %182 = vst [vmem:[%s172 + $0x20] sm:$0xff] %v181
          %v183 = vld [vmem:[%s171 + $0x28] sm:$0xff]
          %184 = vst [vmem:[%s172 + $0x28] sm:$0xff] %v183
          %v185 = vld [vmem:[%s171 + $0x30] sm:$0xff]
          %186 = vst [vmem:[%s172 + $0x30] sm:$0xff] %v185
          %v187 = vld [vmem:[%s171 + $0x38] sm:$0xff]
          %188 = vst [vmem:[%s172 + $0x38] sm:$0xff] %v187
          %v189 = vld [vmem:[%s171 + $0x40] sm:$0xff]
          %190 = vst [vmem:[%s172 + $0x40] sm:$0xff] %v189
          %v191 = vld [vmem:[%s171 + $0x48] sm:$0xff]
          %192 = vst [vmem:[%s172 + $0x48] sm:$0xff] %v191
          %v193 = vld [vmem:[%s171 + $0x50] sm:$0xff]
          %194 = vst [vmem:[%s172 + $0x50] sm:$0xff] %v193
          %v195 = vld [vmem:[%s171 + $0x58] sm:$0xff]
          %196 = vst [vmem:[%s172 + $0x58] sm:$0xff] %v195
          %v197 = vld [vmem:[%s171 + $0x60] sm:$0xff]
          %198 = vst [vmem:[%s172 + $0x60] sm:$0xff] %v197
          %v199 = vld [vmem:[%s171 + $0x68] sm:$0xff]
          %200 = vst [vmem:[%s172 + $0x68] sm:$0xff] %v199
          %v201 = vld [vmem:[%s171 + $0x70] sm:$0xff]
          %202 = vst [vmem:[%s172 + $0x70] sm:$0xff] %v201
          %v203 = vld [vmem:[%s171 + $0x78] sm:$0xff]
          %204 = vst [vmem:[%s172 + $0x78] sm:$0xff] %v203
          %v205 = vld [vmem:[%s171 + $0x80] sm:$0xff]
          %206 = vst [vmem:[%s172 + $0x80] sm:$0xff] %v205
          %v207 = vld [vmem:[%s171 + $0x88] sm:$0xff]
          %208 = vst [vmem:[%s172 + $0x88] sm:$0xff] %v207
          %v209 = vld [vmem:[%s171 + $0x90] sm:$0xff]
          %210 = vst [vmem:[%s172 + $0x90] sm:$0xff] %v209
          %v211 = vld [vmem:[%s171 + $0x98] sm:$0xff]
          %212 = vst [vmem:[%s172 + $0x98] sm:$0xff] %v211
          %v213 = vld [vmem:[%s171 + $0xa0] sm:$0xff]
          %214 = vst [vmem:[%s172 + $0xa0] sm:$0xff] %v213
          %v215 = vld [vmem:[%s171 + $0xa8] sm:$0xff]
          %216 = vst [vmem:[%s172 + $0xa8] sm:$0xff] %v215
          %v217 = vld [vmem:[%s171 + $0xb0] sm:$0xff]
          %218 = vst [vmem:[%s172 + $0xb0] sm:$0xff] %v217
          %v219 = vld [vmem:[%s171 + $0xb8] sm:$0xff]
          %220 = vst [vmem:[%s172 + $0xb8] sm:$0xff] %v219
          %v221 = vld [vmem:[%s171 + $0xc0] sm:$0xff]
          %222 = vst [vmem:[%s172 + $0xc0] sm:$0xff] %v221
          %v223 = vld [vmem:[%s171 + $0xc8] sm:$0xff]
          %224 = vst [vmem:[%s172 + $0xc8] sm:$0xff] %v223
          %v225 = vld [vmem:[%s171 + $0xd0] sm:$0xff]
          %226 = vst [vmem:[%s172 + $0xd0] sm:$0xff] %v225
          %v227 = vld [vmem:[%s171 + $0xd8] sm:$0xff]
          %228 = vst [vmem:[%s172 + $0xd8] sm:$0xff] %v227
          %v229 = vld [vmem:[%s171 + $0xe0] sm:$0xff]
          %230 = vst [vmem:[%s172 + $0xe0] sm:$0xff] %v229
          %v231 = vld [vmem:[%s171 + $0xe8] sm:$0xff]
          %232 = vst [vmem:[%s172 + $0xe8] sm:$0xff] %v231
          %v233 = vld [vmem:[%s171 + $0xf0] sm:$0xff]
          %234 = vst [vmem:[%s172 + $0xf0] sm:$0xff] %v233
          %v235 = vld [vmem:[%s171 + $0xf8] sm:$0xff]
          %236 = vst [vmem:[%s172 + $0xf8] sm:$0xff] %v235
          %v237 = vld [vmem:[%s171 + $0x100] sm:$0xff]
          %238 = vst [vmem:[%s172 + $0x100] sm:$0xff] %v237
          %v239 = vld [vmem:[%s171 + $0x108] sm:$0xff]
          %240 = vst [vmem:[%s172 + $0x108] sm:$0xff] %v239
          %v241 = vld [vmem:[%s171 + $0x110] sm:$0xff]
          %242 = vst [vmem:[%s172 + $0x110] sm:$0xff] %v241
          %v243 = vld [vmem:[%s171 + $0x118] sm:$0xff]
          %244 = vst [vmem:[%s172 + $0x118] sm:$0xff] %v243
        $region114: #{tpu_custom_call.1} parent=108 // loop_footer
          %s170 = sadd.s32 1, %s166
        $region115: #{tpu_custom_call.1} parent=108 // loop_footer_branch
          %165 = sbr.rel target = $region111
        $region116: #{tpu_custom_call.1} parent=108 // loop_exit
          _
      $region109: #{tpu_custom_call.1} parent=93 // pred_fallthru
        _
      %p245 = pneg %p161
      // Predicated region
      $region117: #{tpu_custom_call.1} parent=93 // pred_check
        _
      $region118: #{tpu_custom_call.1} parent=93 // pred_check_branch
        %247 = sbr.rel (%p161) target = $region120
      $region119: #{tpu_custom_call.1} parent=93 // pred_region
        %s248 = sand.u32 288, 7
      $region120: #{tpu_custom_call.1} parent=93 // pred_fallthru
        _
    $region94: #{tpu_custom_call.1} parent=1 // pred_fallthru
      _
    // Predicated region
    $region95: #{tpu_custom_call.1} parent=1 // pred_check
      %p146 = pneg %p142
    $region96: #{tpu_custom_call.1} parent=1 // pred_check_branch
      %148 = sbr.rel (%p146) target = $region98
    $region97: #{tpu_custom_call.1} parent=1 // pred_region
      %s149 = sshllo.u32 0, 288
      loop: start=0, step=1, limit=1
      $region99: #{tpu_custom_call.1} parent=97 // loop_pre_header
        _
      $region100: #{tpu_custom_call.1} parent=97 // loop_header
        %s151 = sphi 0, %s155
        %p152 = scmp.ge.s32.totalorder %s151, 1
        %s156 = sphi %s14, %s14
        %s157 = sphi [#allocation3], [#allocation3]
      $region101: #{tpu_custom_call.1} parent=97 // loop_header_branch
        %154 = sbr.rel (%p152) target = $region105
      $region102: #{tpu_custom_call.1} parent=97 // loop_body
        %v158 = vld [vmem:[%s156] sm:%s149]
        %159 = vst [vmem:[%s157] sm:%s149] %v158
      $region103: #{tpu_custom_call.1} parent=97 // loop_footer
        %s155 = sadd.s32 1, %s151
      $region104: #{tpu_custom_call.1} parent=97 // loop_footer_branch
        %150 = sbr.rel target = $region100
      $region105: #{tpu_custom_call.1} parent=97 // loop_exit
        _
    $region98: #{tpu_custom_call.1} parent=1 // pred_fallthru
      _
    // Predicated region
    $region121: #{tpu_custom_call.1} parent=1 // pred_check
      _
    $region122: #{tpu_custom_call.1} parent=1 // pred_check_branch
      %251 = sbr.rel (0) target = $region124
    $region123: #{tpu_custom_call.1} parent=1 // pred_region
      %252 = vsyncadd %s140, 4608
    $region124: #{tpu_custom_call.1} parent=1 // pred_fallthru
      _
    %s253 = scalar_lea.sflag [#allocation6], 2
    %p255 = scmp.lt.u32.totalorder 288, 8
    %p256 = pneg %p255
    // Predicated region
    $region125: #{tpu_custom_call.1} parent=1 // pred_check
      _
    $region126: #{tpu_custom_call.1} parent=1 // pred_check_branch
      %258 = sbr.rel (%p255) target = $region128
    $region127: #{tpu_custom_call.1} parent=1 // pred_region
      %s273 = sand.u32 288, 7
      %p274 = scmp.eq.s32.totalorder %s273, 0
      // Predicated region
      $region140: #{tpu_custom_call.1} parent=127 // pred_check
        %p275 = pneg %p274
      $region141: #{tpu_custom_call.1} parent=127 // pred_check_branch
        %277 = sbr.rel (%p275) target = $region143
      $region142: #{tpu_custom_call.1} parent=127 // pred_region
        loop: start=0, step=1, limit=1
        $region144: #{tpu_custom_call.1} parent=142 // loop_pre_header
          _
        $region145: #{tpu_custom_call.1} parent=142 // loop_header
          %s279 = sphi 0, %s283
          %p280 = scmp.ge.s32.totalorder %s279, 1
          %s284 = sphi %s15, %s15
          %s285 = sphi [#allocation4], [#allocation4]
        $region146: #{tpu_custom_call.1} parent=142 // loop_header_branch
          %282 = sbr.rel (%p280) target = $region150
        $region147: #{tpu_custom_call.1} parent=142 // loop_body
          %v286 = vld [vmem:[%s284] sm:$0xff]
          %287 = vst [vmem:[%s285] sm:$0xff] %v286
          %v288 = vld [vmem:[%s284 + $0x8] sm:$0xff]
          %289 = vst [vmem:[%s285 + $0x8] sm:$0xff] %v288
          %v290 = vld [vmem:[%s284 + $0x10] sm:$0xff]
          %291 = vst [vmem:[%s285 + $0x10] sm:$0xff] %v290
          %v292 = vld [vmem:[%s284 + $0x18] sm:$0xff]
          %293 = vst [vmem:[%s285 + $0x18] sm:$0xff] %v292
          %v294 = vld [vmem:[%s284 + $0x20] sm:$0xff]
          %295 = vst [vmem:[%s285 + $0x20] sm:$0xff] %v294
          %v296 = vld [vmem:[%s284 + $0x28] sm:$0xff]
          %297 = vst [vmem:[%s285 + $0x28] sm:$0xff] %v296
          %v298 = vld [vmem:[%s284 + $0x30] sm:$0xff]
          %299 = vst [vmem:[%s285 + $0x30] sm:$0xff] %v298
          %v300 = vld [vmem:[%s284 + $0x38] sm:$0xff]
          %301 = vst [vmem:[%s285 + $0x38] sm:$0xff] %v300
          %v302 = vld [vmem:[%s284 + $0x40] sm:$0xff]
          %303 = vst [vmem:[%s285 + $0x40] sm:$0xff] %v302
          %v304 = vld [vmem:[%s284 + $0x48] sm:$0xff]
          %305 = vst [vmem:[%s285 + $0x48] sm:$0xff] %v304
          %v306 = vld [vmem:[%s284 + $0x50] sm:$0xff]
          %307 = vst [vmem:[%s285 + $0x50] sm:$0xff] %v306
          %v308 = vld [vmem:[%s284 + $0x58] sm:$0xff]
          %309 = vst [vmem:[%s285 + $0x58] sm:$0xff] %v308
          %v310 = vld [vmem:[%s284 + $0x60] sm:$0xff]
          %311 = vst [vmem:[%s285 + $0x60] sm:$0xff] %v310
          %v312 = vld [vmem:[%s284 + $0x68] sm:$0xff]
          %313 = vst [vmem:[%s285 + $0x68] sm:$0xff] %v312
          %v314 = vld [vmem:[%s284 + $0x70] sm:$0xff]
          %315 = vst [vmem:[%s285 + $0x70] sm:$0xff] %v314
          %v316 = vld [vmem:[%s284 + $0x78] sm:$0xff]
          %317 = vst [vmem:[%s285 + $0x78] sm:$0xff] %v316
          %v318 = vld [vmem:[%s284 + $0x80] sm:$0xff]
          %319 = vst [vmem:[%s285 + $0x80] sm:$0xff] %v318
          %v320 = vld [vmem:[%s284 + $0x88] sm:$0xff]
          %321 = vst [vmem:[%s285 + $0x88] sm:$0xff] %v320
          %v322 = vld [vmem:[%s284 + $0x90] sm:$0xff]
          %323 = vst [vmem:[%s285 + $0x90] sm:$0xff] %v322
          %v324 = vld [vmem:[%s284 + $0x98] sm:$0xff]
          %325 = vst [vmem:[%s285 + $0x98] sm:$0xff] %v324
          %v326 = vld [vmem:[%s284 + $0xa0] sm:$0xff]
          %327 = vst [vmem:[%s285 + $0xa0] sm:$0xff] %v326
          %v328 = vld [vmem:[%s284 + $0xa8] sm:$0xff]
          %329 = vst [vmem:[%s285 + $0xa8] sm:$0xff] %v328
          %v330 = vld [vmem:[%s284 + $0xb0] sm:$0xff]
          %331 = vst [vmem:[%s285 + $0xb0] sm:$0xff] %v330
          %v332 = vld [vmem:[%s284 + $0xb8] sm:$0xff]
          %333 = vst [vmem:[%s285 + $0xb8] sm:$0xff] %v332
          %v334 = vld [vmem:[%s284 + $0xc0] sm:$0xff]
          %335 = vst [vmem:[%s285 + $0xc0] sm:$0xff] %v334
          %v336 = vld [vmem:[%s284 + $0xc8] sm:$0xff]
          %337 = vst [vmem:[%s285 + $0xc8] sm:$0xff] %v336
          %v338 = vld [vmem:[%s284 + $0xd0] sm:$0xff]
          %339 = vst [vmem:[%s285 + $0xd0] sm:$0xff] %v338
          %v340 = vld [vmem:[%s284 + $0xd8] sm:$0xff]
          %341 = vst [vmem:[%s285 + $0xd8] sm:$0xff] %v340
          %v342 = vld [vmem:[%s284 + $0xe0] sm:$0xff]
          %343 = vst [vmem:[%s285 + $0xe0] sm:$0xff] %v342
          %v344 = vld [vmem:[%s284 + $0xe8] sm:$0xff]
          %345 = vst [vmem:[%s285 + $0xe8] sm:$0xff] %v344
          %v346 = vld [vmem:[%s284 + $0xf0] sm:$0xff]
          %347 = vst [vmem:[%s285 + $0xf0] sm:$0xff] %v346
          %v348 = vld [vmem:[%s284 + $0xf8] sm:$0xff]
          %349 = vst [vmem:[%s285 + $0xf8] sm:$0xff] %v348
          %v350 = vld [vmem:[%s284 + $0x100] sm:$0xff]
          %351 = vst [vmem:[%s285 + $0x100] sm:$0xff] %v350
          %v352 = vld [vmem:[%s284 + $0x108] sm:$0xff]
          %353 = vst [vmem:[%s285 + $0x108] sm:$0xff] %v352
          %v354 = vld [vmem:[%s284 + $0x110] sm:$0xff]
          %355 = vst [vmem:[%s285 + $0x110] sm:$0xff] %v354
          %v356 = vld [vmem:[%s284 + $0x118] sm:$0xff]
          %357 = vst [vmem:[%s285 + $0x118] sm:$0xff] %v356
        $region148: #{tpu_custom_call.1} parent=142 // loop_footer
          %s283 = sadd.s32 1, %s279
        $region149: #{tpu_custom_call.1} parent=142 // loop_footer_branch
          %278 = sbr.rel target = $region145
        $region150: #{tpu_custom_call.1} parent=142 // loop_exit
          _
      $region143: #{tpu_custom_call.1} parent=127 // pred_fallthru
        _
      %p358 = pneg %p274
      // Predicated region
      $region151: #{tpu_custom_call.1} parent=127 // pred_check
        _
      $region152: #{tpu_custom_call.1} parent=127 // pred_check_branch
        %360 = sbr.rel (%p274) target = $region154
      $region153: #{tpu_custom_call.1} parent=127 // pred_region
        %s361 = sand.u32 288, 7
      $region154: #{tpu_custom_call.1} parent=127 // pred_fallthru
        _
    $region128: #{tpu_custom_call.1} parent=1 // pred_fallthru
      _
    // Predicated region
    $region129: #{tpu_custom_call.1} parent=1 // pred_check
      %p259 = pneg %p255
    $region130: #{tpu_custom_call.1} parent=1 // pred_check_branch
      %261 = sbr.rel (%p259) target = $region132
    $region131: #{tpu_custom_call.1} parent=1 // pred_region
      %s262 = sshllo.u32 0, 288
      loop: start=0, step=1, limit=1
      $region133: #{tpu_custom_call.1} parent=131 // loop_pre_header
        _
      $region134: #{tpu_custom_call.1} parent=131 // loop_header
        %s264 = sphi 0, %s268
        %p265 = scmp.ge.s32.totalorder %s264, 1
        %s269 = sphi %s15, %s15
        %s270 = sphi [#allocation4], [#allocation4]
      $region135: #{tpu_custom_call.1} parent=131 // loop_header_branch
        %267 = sbr.rel (%p265) target = $region139
      $region136: #{tpu_custom_call.1} parent=131 // loop_body
        %v271 = vld [vmem:[%s269] sm:%s262]
        %272 = vst [vmem:[%s270] sm:%s262] %v271
      $region137: #{tpu_custom_call.1} parent=131 // loop_footer
        %s268 = sadd.s32 1, %s264
      $region138: #{tpu_custom_call.1} parent=131 // loop_footer_branch
        %263 = sbr.rel target = $region134
      $region139: #{tpu_custom_call.1} parent=131 // loop_exit
        _
    $region132: #{tpu_custom_call.1} parent=1 // pred_fallthru
      _
    // Predicated region
    $region155: #{tpu_custom_call.1} parent=1 // pred_check
      _
    $region156: #{tpu_custom_call.1} parent=1 // pred_check_branch
      %364 = sbr.rel (0) target = $region158
    $region157: #{tpu_custom_call.1} parent=1 // pred_region
      %365 = vsyncadd %s253, 4608
    $region158: #{tpu_custom_call.1} parent=1 // pred_fallthru
      _
    %s366 = scalar_lea.sflag [#allocation6], 3
    %p368 = scmp.lt.u32.totalorder 288, 8
    %p369 = pneg %p368
    // Predicated region
    $region159: #{tpu_custom_call.1} parent=1 // pred_check
      _
    $region160: #{tpu_custom_call.1} parent=1 // pred_check_branch
      %371 = sbr.rel (%p368) target = $region162
    $region161: #{tpu_custom_call.1} parent=1 // pred_region
      %s386 = sand.u32 288, 7
      %p387 = scmp.eq.s32.totalorder %s386, 0
      // Predicated region
      $region174: #{tpu_custom_call.1} parent=161 // pred_check
        %p388 = pneg %p387
      $region175: #{tpu_custom_call.1} parent=161 // pred_check_branch
        %390 = sbr.rel (%p388) target = $region177
      $region176: #{tpu_custom_call.1} parent=161 // pred_region
        loop: start=0, step=1, limit=1
        $region178: #{tpu_custom_call.1} parent=176 // loop_pre_header
          _
        $region179: #{tpu_custom_call.1} parent=176 // loop_header
          %s392 = sphi 0, %s396
          %p393 = scmp.ge.s32.totalorder %s392, 1
          %s397 = sphi %s16, %s16
          %s398 = sphi [#allocation5], [#allocation5]
        $region180: #{tpu_custom_call.1} parent=176 // loop_header_branch
          %395 = sbr.rel (%p393) target = $region184
        $region181: #{tpu_custom_call.1} parent=176 // loop_body
          %v399 = vld [vmem:[%s397] sm:$0xff]
          %400 = vst [vmem:[%s398] sm:$0xff] %v399
          %v401 = vld [vmem:[%s397 + $0x8] sm:$0xff]
          %402 = vst [vmem:[%s398 + $0x8] sm:$0xff] %v401
          %v403 = vld [vmem:[%s397 + $0x10] sm:$0xff]
          %404 = vst [vmem:[%s398 + $0x10] sm:$0xff] %v403
          %v405 = vld [vmem:[%s397 + $0x18] sm:$0xff]
          %406 = vst [vmem:[%s398 + $0x18] sm:$0xff] %v405
          %v407 = vld [vmem:[%s397 + $0x20] sm:$0xff]
          %408 = vst [vmem:[%s398 + $0x20] sm:$0xff] %v407
          %v409 = vld [vmem:[%s397 + $0x28] sm:$0xff]
          %410 = vst [vmem:[%s398 + $0x28] sm:$0xff] %v409
          %v411 = vld [vmem:[%s397 + $0x30] sm:$0xff]
          %412 = vst [vmem:[%s398 + $0x30] sm:$0xff] %v411
          %v413 = vld [vmem:[%s397 + $0x38] sm:$0xff]
          %414 = vst [vmem:[%s398 + $0x38] sm:$0xff] %v413
          %v415 = vld [vmem:[%s397 + $0x40] sm:$0xff]
          %416 = vst [vmem:[%s398 + $0x40] sm:$0xff] %v415
          %v417 = vld [vmem:[%s397 + $0x48] sm:$0xff]
          %418 = vst [vmem:[%s398 + $0x48] sm:$0xff] %v417
          %v419 = vld [vmem:[%s397 + $0x50] sm:$0xff]
          %420 = vst [vmem:[%s398 + $0x50] sm:$0xff] %v419
          %v421 = vld [vmem:[%s397 + $0x58] sm:$0xff]
          %422 = vst [vmem:[%s398 + $0x58] sm:$0xff] %v421
          %v423 = vld [vmem:[%s397 + $0x60] sm:$0xff]
          %424 = vst [vmem:[%s398 + $0x60] sm:$0xff] %v423
          %v425 = vld [vmem:[%s397 + $0x68] sm:$0xff]
          %426 = vst [vmem:[%s398 + $0x68] sm:$0xff] %v425
          %v427 = vld [vmem:[%s397 + $0x70] sm:$0xff]
          %428 = vst [vmem:[%s398 + $0x70] sm:$0xff] %v427
          %v429 = vld [vmem:[%s397 + $0x78] sm:$0xff]
          %430 = vst [vmem:[%s398 + $0x78] sm:$0xff] %v429
          %v431 = vld [vmem:[%s397 + $0x80] sm:$0xff]
          %432 = vst [vmem:[%s398 + $0x80] sm:$0xff] %v431
          %v433 = vld [vmem:[%s397 + $0x88] sm:$0xff]
          %434 = vst [vmem:[%s398 + $0x88] sm:$0xff] %v433
          %v435 = vld [vmem:[%s397 + $0x90] sm:$0xff]
          %436 = vst [vmem:[%s398 + $0x90] sm:$0xff] %v435
          %v437 = vld [vmem:[%s397 + $0x98] sm:$0xff]
          %438 = vst [vmem:[%s398 + $0x98] sm:$0xff] %v437
          %v439 = vld [vmem:[%s397 + $0xa0] sm:$0xff]
          %440 = vst [vmem:[%s398 + $0xa0] sm:$0xff] %v439
          %v441 = vld [vmem:[%s397 + $0xa8] sm:$0xff]
          %442 = vst [vmem:[%s398 + $0xa8] sm:$0xff] %v441
          %v443 = vld [vmem:[%s397 + $0xb0] sm:$0xff]
          %444 = vst [vmem:[%s398 + $0xb0] sm:$0xff] %v443
          %v445 = vld [vmem:[%s397 + $0xb8] sm:$0xff]
          %446 = vst [vmem:[%s398 + $0xb8] sm:$0xff] %v445
          %v447 = vld [vmem:[%s397 + $0xc0] sm:$0xff]
          %448 = vst [vmem:[%s398 + $0xc0] sm:$0xff] %v447
          %v449 = vld [vmem:[%s397 + $0xc8] sm:$0xff]
          %450 = vst [vmem:[%s398 + $0xc8] sm:$0xff] %v449
          %v451 = vld [vmem:[%s397 + $0xd0] sm:$0xff]
          %452 = vst [vmem:[%s398 + $0xd0] sm:$0xff] %v451
          %v453 = vld [vmem:[%s397 + $0xd8] sm:$0xff]
          %454 = vst [vmem:[%s398 + $0xd8] sm:$0xff] %v453
          %v455 = vld [vmem:[%s397 + $0xe0] sm:$0xff]
          %456 = vst [vmem:[%s398 + $0xe0] sm:$0xff] %v455
          %v457 = vld [vmem:[%s397 + $0xe8] sm:$0xff]
          %458 = vst [vmem:[%s398 + $0xe8] sm:$0xff] %v457
          %v459 = vld [vmem:[%s397 + $0xf0] sm:$0xff]
          %460 = vst [vmem:[%s398 + $0xf0] sm:$0xff] %v459
          %v461 = vld [vmem:[%s397 + $0xf8] sm:$0xff]
          %462 = vst [vmem:[%s398 + $0xf8] sm:$0xff] %v461
          %v463 = vld [vmem:[%s397 + $0x100] sm:$0xff]
          %464 = vst [vmem:[%s398 + $0x100] sm:$0xff] %v463
          %v465 = vld [vmem:[%s397 + $0x108] sm:$0xff]
          %466 = vst [vmem:[%s398 + $0x108] sm:$0xff] %v465
          %v467 = vld [vmem:[%s397 + $0x110] sm:$0xff]
          %468 = vst [vmem:[%s398 + $0x110] sm:$0xff] %v467
          %v469 = vld [vmem:[%s397 + $0x118] sm:$0xff]
          %470 = vst [vmem:[%s398 + $0x118] sm:$0xff] %v469
        $region182: #{tpu_custom_call.1} parent=176 // loop_footer
          %s396 = sadd.s32 1, %s392
        $region183: #{tpu_custom_call.1} parent=176 // loop_footer_branch
          %391 = sbr.rel target = $region179
        $region184: #{tpu_custom_call.1} parent=176 // loop_exit
          _
      $region177: #{tpu_custom_call.1} parent=161 // pred_fallthru
        _
      %p471 = pneg %p387
      // Predicated region
      $region185: #{tpu_custom_call.1} parent=161 // pred_check
        _
      $region186: #{tpu_custom_call.1} parent=161 // pred_check_branch
        %473 = sbr.rel (%p387) target = $region188
      $region187: #{tpu_custom_call.1} parent=161 // pred_region
        %s474 = sand.u32 288, 7
      $region188: #{tpu_custom_call.1} parent=161 // pred_fallthru
        _
    $region162: #{tpu_custom_call.1} parent=1 // pred_fallthru
      _
    // Predicated region
    $region163: #{tpu_custom_call.1} parent=1 // pred_check
      %p372 = pneg %p368
    $region164: #{tpu_custom_call.1} parent=1 // pred_check_branch
      %374 = sbr.rel (%p372) target = $region166
    $region165: #{tpu_custom_call.1} parent=1 // pred_region
      %s375 = sshllo.u32 0, 288
      loop: start=0, step=1, limit=1
      $region167: #{tpu_custom_call.1} parent=165 // loop_pre_header
        _
      $region168: #{tpu_custom_call.1} parent=165 // loop_header
        %s377 = sphi 0, %s381
        %p378 = scmp.ge.s32.totalorder %s377, 1
        %s382 = sphi %s16, %s16
        %s383 = sphi [#allocation5], [#allocation5]
      $region169: #{tpu_custom_call.1} parent=165 // loop_header_branch
        %380 = sbr.rel (%p378) target = $region173
      $region170: #{tpu_custom_call.1} parent=165 // loop_body
        %v384 = vld [vmem:[%s382] sm:%s375]
        %385 = vst [vmem:[%s383] sm:%s375] %v384
      $region171: #{tpu_custom_call.1} parent=165 // loop_footer
        %s381 = sadd.s32 1, %s377
      $region172: #{tpu_custom_call.1} parent=165 // loop_footer_branch
        %376 = sbr.rel target = $region168
      $region173: #{tpu_custom_call.1} parent=165 // loop_exit
        _
    $region166: #{tpu_custom_call.1} parent=1 // pred_fallthru
      _
    // Predicated region
    $region189: #{tpu_custom_call.1} parent=1 // pred_check
      _
    $region190: #{tpu_custom_call.1} parent=1 // pred_check_branch
      %477 = sbr.rel (0) target = $region192
    $region191: #{tpu_custom_call.1} parent=1 // pred_region
      %478 = vsyncadd %s366, 4608
    $region192: #{tpu_custom_call.1} parent=1 // pred_fallthru
      _
    %v479 = vld [vmem:[%s0] sm:$0xf]
    %v480 = vld [vmem:[%s0 + $0x4] sm:$0xf]
    %v481 = vld [vmem:[%s0 + $0x8] sm:$0xf]
    %v482 = vld [vmem:[%s0 + $0xc] sm:$0xf]
    %v483 = vld [vmem:[%s0 + $0x10] sm:$0xf]
    %v484 = vld [vmem:[%s0 + $0x14] sm:$0xf]
    %v485 = vld [vmem:[%s0 + $0x18] sm:$0xf]
    %v486 = vld [vmem:[%s0 + $0x1c] sm:$0xf]
    %v487 = vld [vmem:[%s0 + $0x20] sm:$0xf]
    %v488 = vld [vmem:[%s0 + $0x24] sm:$0xf]
    %v489 = vld [vmem:[%s0 + $0x28] sm:$0xf]
    %v490 = vld [vmem:[%s0 + $0x2c] sm:$0xf]
    %v491 = vld [vmem:[%s0 + $0x30] sm:$0xf]
    %v492 = vld [vmem:[%s0 + $0x34] sm:$0xf]
    %v493 = vld [vmem:[%s0 + $0x38] sm:$0xf]
    %v494 = vld [vmem:[%s0 + $0x3c] sm:$0xf]
    %v495 = vld [vmem:[%s0 + $0x40] sm:$0xf]
    %v496 = vld [vmem:[%s0 + $0x44] sm:$0xf]
    %v497 = vld [vmem:[%s0 + $0x48] sm:$0xf]
    %v498 = vld [vmem:[%s0 + $0x4c] sm:$0xf]
    %v499 = vld [vmem:[%s0 + $0x50] sm:$0xf]
    %v500 = vld [vmem:[%s0 + $0x54] sm:$0xf]
    %v501 = vld [vmem:[%s0 + $0x58] sm:$0xf]
    %v502 = vld [vmem:[%s0 + $0x5c] sm:$0xf]
    %v503 = vld [vmem:[%s0 + $0x60] sm:$0xf]
    %v504 = vld [vmem:[%s0 + $0x64] sm:$0xf]
    %v505 = vld [vmem:[%s0 + $0x68] sm:$0xf]
    %v506 = vld [vmem:[%s0 + $0x6c] sm:$0xf]
    %v507 = vld [vmem:[%s0 + $0x70] sm:$0xf]
    %v508 = vld [vmem:[%s0 + $0x74] sm:$0xf]
    %v509 = vld [vmem:[%s0 + $0x78] sm:$0xf]
    %v510 = vld [vmem:[%s0 + $0x7c] sm:$0xf]
    %v511 = vld [vmem:[%s0 + $0x80] sm:$0xf]
    %v512 = vld [vmem:[%s0 + $0x84] sm:$0xf]
    %v513 = vld [vmem:[%s0 + $0x88] sm:$0xf]
    %v514 = vld [vmem:[%s0 + $0x8c] sm:$0xf]
    %v515 = vld [vmem:[%s0 + $0x90] sm:$0xf]
    %v516 = vld [vmem:[%s0 + $0x94] sm:$0xf]
    %v517 = vld [vmem:[%s0 + $0x98] sm:$0xf]
    %v518 = vld [vmem:[%s0 + $0x9c] sm:$0xf]
    %v519 = vld [vmem:[%s0 + $0xa0] sm:$0xf]
    %v520 = vld [vmem:[%s0 + $0xa4] sm:$0xf]
    %v521 = vld [vmem:[%s0 + $0xa8] sm:$0xf]
    %v522 = vld [vmem:[%s0 + $0xac] sm:$0xf]
    %v523 = vld [vmem:[%s0 + $0xb0] sm:$0xf]
    %v524 = vld [vmem:[%s0 + $0xb4] sm:$0xf]
    %v525 = vld [vmem:[%s0 + $0xb8] sm:$0xf]
    %v526 = vld [vmem:[%s0 + $0xbc] sm:$0xf]
    %v527 = vld [vmem:[%s0 + $0xc0] sm:$0xf]
    %v528 = vld [vmem:[%s1] sm:$0xf]
    %v529 = vld [vmem:[%s1 + $0x4] sm:$0xf]
    %v530 = vld [vmem:[%s1 + $0x8] sm:$0xf]
    %v531 = vld [vmem:[%s1 + $0xc] sm:$0xf]
    %v532 = vld [vmem:[%s1 + $0x10] sm:$0x3]
    %v533 = vld [vmem:[%s2] sm:$0x3]
    %v534 = vld [vmem:[%s3] sm:$0xf]
    %v584 = vunpack.c.l.b16 %v479
    %v585 = vunpack.c.l.b16 %v480
    %v586 = vunpack.c.l.b16 %v481
    %v587 = vunpack.c.l.b16 %v482
    %v588 = vunpack.c.l.b16 %v483
    %v589 = vunpack.c.l.b16 %v484
    %v590 = vunpack.c.l.b16 %v485
    %v591 = vunpack.c.l.b16 %v486
    %v592 = vunpack.c.l.b16 %v487
    %v593 = vunpack.c.l.b16 %v488
    %v594 = vunpack.c.l.b16 %v489
    %v595 = vunpack.c.l.b16 %v490
    %v596 = vunpack.c.l.b16 %v491
    %v597 = vunpack.c.l.b16 %v492
    %v598 = vunpack.c.l.b16 %v493
    %v599 = vunpack.c.l.b16 %v494
    %v600 = vunpack.c.l.b16 %v495
    %v601 = vunpack.c.l.b16 %v496
    %v602 = vunpack.c.l.b16 %v497
    %v603 = vunpack.c.l.b16 %v498
    %v604 = vunpack.c.l.b16 %v499
    %v605 = vunpack.c.l.b16 %v500
    %v606 = vunpack.c.l.b16 %v501
    %v607 = vunpack.c.l.b16 %v502
    %v608 = vunpack.c.l.b16 %v503
    %v609 = vunpack.c.l.b16 %v504
    %v610 = vunpack.c.l.b16 %v505
    %v611 = vunpack.c.l.b16 %v506
    %v612 = vunpack.c.l.b16 %v507
    %v613 = vunpack.c.l.b16 %v508
    %v614 = vunpack.c.l.b16 %v509
    %v615 = vunpack.c.l.b16 %v510
    %v616 = vunpack.c.l.b16 %v511
    %v617 = vunpack.c.l.b16 %v512
    %v618 = vunpack.c.l.b16 %v513
    %v619 = vunpack.c.l.b16 %v514
    %v620 = vunpack.c.l.b16 %v515
    %v621 = vunpack.c.l.b16 %v516
    %v622 = vunpack.c.l.b16 %v517
    %v623 = vunpack.c.l.b16 %v518
    %v624 = vunpack.c.l.b16 %v519
    %v625 = vunpack.c.l.b16 %v520
    %v626 = vunpack.c.l.b16 %v521
    %v627 = vunpack.c.l.b16 %v522
    %v628 = vunpack.c.l.b16 %v523
    %v629 = vunpack.c.l.b16 %v524
    %v630 = vunpack.c.l.b16 %v525
    %v631 = vunpack.c.l.b16 %v526
    %v632 = vunpack.c.l.b16 %v527
    %v633 = vpack.c.b16 %v585, %v584
    %v634 = vpack.c.b16 %v587, %v586
    %v635 = vpack.c.b16 %v589, %v588
    %v636 = vpack.c.b16 %v591, %v590
    %v637 = vpack.c.b16 %v593, %v592
    %v638 = vpack.c.b16 %v595, %v594
    %v639 = vpack.c.b16 %v597, %v596
    %v640 = vpack.c.b16 %v599, %v598
    %v641 = vpack.c.b16 %v601, %v600
    %v642 = vpack.c.b16 %v603, %v602
    %v643 = vpack.c.b16 %v605, %v604
    %v644 = vpack.c.b16 %v607, %v606
    %v645 = vpack.c.b16 %v609, %v608
    %v646 = vpack.c.b16 %v611, %v610
    %v647 = vpack.c.b16 %v613, %v612
    %v648 = vpack.c.b16 %v615, %v614
    %v649 = vpack.c.b16 %v617, %v616
    %v650 = vpack.c.b16 %v619, %v618
    %v651 = vpack.c.b16 %v621, %v620
    %v652 = vpack.c.b16 %v623, %v622
    %v653 = vpack.c.b16 %v625, %v624
    %v654 = vpack.c.b16 %v627, %v626
    %v655 = vpack.c.b16 %v629, %v628
    %v656 = vpack.c.b16 %v631, %v630
    %v657 = vpack.c.b16 %v632, %v632
    %v663 = vunpack.c.l.b16 %v528
    %v664 = vunpack.c.l.b16 %v529
    %v665 = vunpack.c.l.b16 %v530
    %v666 = vunpack.c.l.b16 %v531
    %v667 = vunpack.c.l.b16 %v532
    %v668 = vpack.c.b16 %v664, %v663
    %v669 = vpack.c.b16 %v666, %v665
    %v670 = vpack.c.b16 %v667, %v667
    %vm673 = vcmask 293888
    %v675 = vsel %vm673, %v633, 0
    %v678 = vsel %vm673, %v634, 0
    %v681 = vsel %vm673, %v635, 0
    %v684 = vsel %vm673, %v636, 0
    %v687 = vsel %vm673, %v637, 0
    %v690 = vsel %vm673, %v638, 0
    %v693 = vsel %vm673, %v639, 0
    %v696 = vsel %vm673, %v640, 0
    %v699 = vsel %vm673, %v641, 0
    %v702 = vsel %vm673, %v642, 0
    %v705 = vsel %vm673, %v643, 0
    %v708 = vsel %vm673, %v644, 0
    %v711 = vsel %vm673, %v645, 0
    %v714 = vsel %vm673, %v646, 0
    %v717 = vsel %vm673, %v647, 0
    %v720 = vsel %vm673, %v648, 0
    %v723 = vsel %vm673, %v649, 0
    %v726 = vsel %vm673, %v650, 0
    %v729 = vsel %vm673, %v651, 0
    %v732 = vsel %vm673, %v652, 0
    %v735 = vsel %vm673, %v653, 0
    %v738 = vsel %vm673, %v654, 0
    %v741 = vsel %vm673, %v655, 0
    %v744 = vsel %vm673, %v656, 0
    %v747 = vsel %vm673, %v657, 0
    %vm749 = vcmask 1041408
    %v751 = vsel %vm749, %v670, 0
    %753 = vmatprep.subr.bf16.mxu0 0
    %754 = vmatpush1.bf16.msra.mxu0 %v668
    %755 = vmatprep.subr.bf16.mxu0 0
    %756 = vmatpush1.bf16.msra.mxu0 %v669
    %757 = vmatprep.subr.bf16.mxu0 0
    %758 = vmatpush1.bf16.msra.mxu0 %v751
    %759 = vmatprep.subr.bf16.mxu0 0
    %760 = vmatpush1.bf16.msra.mxu0 0
    %761 = vmatprep.subr.bf16.mxu0 0
    %762 = vmatpush1.bf16.msra.mxu0 0
    %763 = vmatprep.subr.bf16.mxu0 0
    %764 = vmatpush1.bf16.msra.mxu0 0
    %765 = vmatprep.subr.bf16.mxu0 0
    %766 = vmatpush1.bf16.msra.mxu0 0
    %767 = vmatprep.subr.bf16.mxu0 0
    %768 = vmatpush1.bf16.msra.mxu0 0
    %769 = vmatprep.subr.bf16.mxu0 0
    %770 = vmatpush1.bf16.msra.mxu0 0
    %771 = vmatprep.subr.bf16.mxu0 0
    %772 = vmatpush1.bf16.msra.mxu0 0
    %773 = vmatprep.subr.bf16.mxu0 0
    %774 = vmatpush1.bf16.msra.mxu0 0
    %775 = vmatprep.subr.bf16.mxu0 0
    %776 = vmatpush1.bf16.msra.mxu0 0
    %777 = vmatprep.subr.bf16.mxu0 0
    %778 = vmatpush1.bf16.msra.mxu0 0
    %779 = vmatprep.subr.bf16.mxu0 0
    %780 = vmatpush1.bf16.msra.mxu0 0
    %781 = vmatprep.subr.bf16.mxu0 0
    %782 = vmatpush1.bf16.msra.mxu0 0
    %783 = vmatprep.subr.bf16.mxu0 0
    %784 = vmatpush1.bf16.msra.mxu0 0
    %785 = vmatprep.mubr.bf16.mxu0 0
    %786 = vmatmul.mubr.bf16.gmra.mrb[0].mxu0 %v675
    %v787 = vpop.f32.mrb[0].mxu0
    %v788 = vadd.f32 0.0, %v787
    %v789 = vpop.f32.mrb[0].mxu0
    %v790 = vpop.f32.mrb[0].mxu0
    %v791 = vadd.f32 0.0, %v790
    %v792 = vpop.f32.mrb[0].mxu0
    %793 = vmatprep.mubr.bf16.mxu0 0
    %794 = vmatmul.mubr.bf16.gmra.mrb[0].mxu0 %v678
    %v795 = vpop.f32.mrb[0].mxu0
    %v796 = vadd.f32 0.0, %v795
    %v797 = vpop.f32.mrb[0].mxu0
    %v798 = vpop.f32.mrb[0].mxu0
    %v799 = vadd.f32 0.0, %v798
    %v800 = vpop.f32.mrb[0].mxu0
    %801 = vmatprep.mubr.bf16.mxu0 0
    %802 = vmatmul.mubr.bf16.gmra.mrb[0].mxu0 %v681
    %v803 = vpop.f32.mrb[0].mxu0
    %v804 = vadd.f32 0.0, %v803
    %v805 = vpop.f32.mrb[0].mxu0
    %v806 = vpop.f32.mrb[0].mxu0
    %v807 = vadd.f32 0.0, %v806
    %v808 = vpop.f32.mrb[0].mxu0
    %809 = vmatprep.mubr.bf16.mxu0 0
    %810 = vmatmul.mubr.bf16.gmra.mrb[0].mxu0 %v684
    %v811 = vpop.f32.mrb[0].mxu0
    %v812 = vadd.f32 0.0, %v811
    %v813 = vpop.f32.mrb[0].mxu0
    %v814 = vpop.f32.mrb[0].mxu0
    %v815 = vadd.f32 0.0, %v814
    %v816 = vpop.f32.mrb[0].mxu0
    %817 = vmatprep.mubr.bf16.mxu0 0
    %818 = vmatmul.mubr.bf16.gmra.mrb[0].mxu0 %v687
    %v819 = vpop.f32.mrb[0].mxu0
    %v820 = vadd.f32 0.0, %v819
    %v821 = vpop.f32.mrb[0].mxu0
    %v822 = vpop.f32.mrb[0].mxu0
    %v823 = vadd.f32 0.0, %v822
    %v824 = vpop.f32.mrb[0].mxu0
    %825 = vmatprep.mubr.bf16.mxu0 0
    %826 = vmatmul.mubr.bf16.gmra.mrb[0].mxu0 %v690
    %v827 = vpop.f32.mrb[0].mxu0
    %v828 = vadd.f32 0.0, %v827
    %v829 = vpop.f32.mrb[0].mxu0
    %v830 = vpop.f32.mrb[0].mxu0
    %v831 = vadd.f32 0.0, %v830
    %v832 = vpop.f32.mrb[0].mxu0
    %833 = vmatprep.mubr.bf16.mxu0 0
    %834 = vmatmul.mubr.bf16.gmra.mrb[0].mxu0 %v693
    %v835 = vpop.f32.mrb[0].mxu0
    %v836 = vadd.f32 0.0, %v835
    %v837 = vpop.f32.mrb[0].mxu0
    %v838 = vpop.f32.mrb[0].mxu0
    %v839 = vadd.f32 0.0, %v838
    %v840 = vpop.f32.mrb[0].mxu0
    %841 = vmatprep.mubr.bf16.mxu0 0
    %842 = vmatmul.mubr.bf16.gmra.mrb[0].mxu0 %v696
    %v843 = vpop.f32.mrb[0].mxu0
    %v844 = vadd.f32 0.0, %v843
    %v845 = vpop.f32.mrb[0].mxu0
    %v846 = vpop.f32.mrb[0].mxu0
    %v847 = vadd.f32 0.0, %v846
    %v848 = vpop.f32.mrb[0].mxu0
    %849 = vmatprep.mubr.bf16.mxu0 0
    %850 = vmatmul.mubr.bf16.gmra.mrb[0].mxu0 %v699
    %v851 = vpop.f32.mrb[0].mxu0
    %v852 = vadd.f32 0.0, %v851
    %v853 = vpop.f32.mrb[0].mxu0
    %v854 = vpop.f32.mrb[0].mxu0
    %v855 = vadd.f32 0.0, %v854
    %v856 = vpop.f32.mrb[0].mxu0
    %857 = vmatprep.mubr.bf16.mxu0 0
    %858 = vmatmul.mubr.bf16.gmra.mrb[0].mxu0 %v702
    %v859 = vpop.f32.mrb[0].mxu0
    %v860 = vadd.f32 0.0, %v859
    %v861 = vpop.f32.mrb[0].mxu0
    %v862 = vpop.f32.mrb[0].mxu0
    %v863 = vadd.f32 0.0, %v862
    %v864 = vpop.f32.mrb[0].mxu0
    %865 = vmatprep.mubr.bf16.mxu0 0
    %866 = vmatmul.mubr.bf16.gmra.mrb[0].mxu0 %v705
    %v867 = vpop.f32.mrb[0].mxu0
    %v868 = vadd.f32 0.0, %v867
    %v869 = vpop.f32.mrb[0].mxu0
    %v870 = vpop.f32.mrb[0].mxu0
    %v871 = vadd.f32 0.0, %v870
    %v872 = vpop.f32.mrb[0].mxu0
    %873 = vmatprep.mubr.bf16.mxu0 0
    %874 = vmatmul.mubr.bf16.gmra.mrb[0].mxu0 %v708
    %v875 = vpop.f32.mrb[0].mxu0
    %v876 = vadd.f32 0.0, %v875
    %v877 = vpop.f32.mrb[0].mxu0
    %v878 = vpop.f32.mrb[0].mxu0
    %v879 = vadd.f32 0.0, %v878
    %v880 = vpop.f32.mrb[0].mxu0
    %881 = vmatprep.mubr.bf16.mxu0 0
    %882 = vmatmul.mubr.bf16.gmra.mrb[0].mxu0 %v711
    %v883 = vpop.f32.mrb[0].mxu0
    %v884 = vadd.f32 0.0, %v883
    %v885 = vpop.f32.mrb[0].mxu0
    %v886 = vpop.f32.mrb[0].mxu0
    %v887 = vadd.f32 0.0, %v886
    %v888 = vpop.f32.mrb[0].mxu0
    %889 = vmatprep.mubr.bf16.mxu0 0
    %890 = vmatmul.mubr.bf16.gmra.mrb[0].mxu0 %v714
    %v891 = vpop.f32.mrb[0].mxu0
    %v892 = vadd.f32 0.0, %v891
    %v893 = vpop.f32.mrb[0].mxu0
    %v894 = vpop.f32.mrb[0].mxu0
    %v895 = vadd.f32 0.0, %v894
    %v896 = vpop.f32.mrb[0].mxu0
    %897 = vmatprep.mubr.bf16.mxu0 0
    %898 = vmatmul.mubr.bf16.gmra.mrb[0].mxu0 %v717
    %v899 = vpop.f32.mrb[0].mxu0
    %v900 = vadd.f32 0.0, %v899
    %v901 = vpop.f32.mrb[0].mxu0
    %v902 = vpop.f32.mrb[0].mxu0
    %v903 = vadd.f32 0.0, %v902
    %v904 = vpop.f32.mrb[0].mxu0
    %905 = vmatprep.mubr.bf16.mxu0 0
    %906 = vmatmul.mubr.bf16.gmra.mrb[0].mxu0 %v720
    %v907 = vpop.f32.mrb[0].mxu0
    %v908 = vadd.f32 0.0, %v907
    %v909 = vpop.f32.mrb[0].mxu0
    %v910 = vpop.f32.mrb[0].mxu0
    %v911 = vadd.f32 0.0, %v910
    %v912 = vpop.f32.mrb[0].mxu0
    %913 = vmatprep.mubr.bf16.mxu0 0
    %914 = vmatmul.mubr.bf16.gmra.mrb[0].mxu0 %v723
    %v915 = vpop.f32.mrb[0].mxu0
    %v916 = vadd.f32 0.0, %v915
    %v917 = vpop.f32.mrb[0].mxu0
    %v918 = vpop.f32.mrb[0].mxu0
    %v919 = vadd.f32 0.0, %v918
    %v920 = vpop.f32.mrb[0].mxu0
    %921 = vmatprep.mubr.bf16.mxu0 0
    %922 = vmatmul.mubr.bf16.gmra.mrb[0].mxu0 %v726
    %v923 = vpop.f32.mrb[0].mxu0
    %v924 = vadd.f32 0.0, %v923
    %v925 = vpop.f32.mrb[0].mxu0
    %v926 = vpop.f32.mrb[0].mxu0
    %v927 = vadd.f32 0.0, %v926
    %v928 = vpop.f32.mrb[0].mxu0
    %929 = vmatprep.mubr.bf16.mxu0 0
    %930 = vmatmul.mubr.bf16.gmra.mrb[0].mxu0 %v729
    %v931 = vpop.f32.mrb[0].mxu0
    %v932 = vadd.f32 0.0, %v931
    %v933 = vpop.f32.mrb[0].mxu0
    %v934 = vpop.f32.mrb[0].mxu0
    %v935 = vadd.f32 0.0, %v934
    %v936 = vpop.f32.mrb[0].mxu0
    %937 = vmatprep.mubr.bf16.mxu0 0
    %938 = vmatmul.mubr.bf16.gmra.mrb[0].mxu0 %v732
    %v939 = vpop.f32.mrb[0].mxu0
    %v940 = vadd.f32 0.0, %v939
    %v941 = vpop.f32.mrb[0].mxu0
    %v942 = vpop.f32.mrb[0].mxu0
    %v943 = vadd.f32 0.0, %v942
    %v944 = vpop.f32.mrb[0].mxu0
    %945 = vmatprep.mubr.bf16.mxu0 0
    %946 = vmatmul.mubr.bf16.gmra.mrb[0].mxu0 %v735
    %v947 = vpop.f32.mrb[0].mxu0
    %v948 = vadd.f32 0.0, %v947
    %v949 = vpop.f32.mrb[0].mxu0
    %v950 = vpop.f32.mrb[0].mxu0
    %v951 = vadd.f32 0.0, %v950
    %v952 = vpop.f32.mrb[0].mxu0
    %953 = vmatprep.mubr.bf16.mxu0 0
    %954 = vmatmul.mubr.bf16.gmra.mrb[0].mxu0 %v738
    %v955 = vpop.f32.mrb[0].mxu0
    %v956 = vadd.f32 0.0, %v955
    %v957 = vpop.f32.mrb[0].mxu0
    %v958 = vpop.f32.mrb[0].mxu0
    %v959 = vadd.f32 0.0, %v958
    %v960 = vpop.f32.mrb[0].mxu0
    %961 = vmatprep.mubr.bf16.mxu0 0
    %962 = vmatmul.mubr.bf16.gmra.mrb[0].mxu0 %v741
    %v963 = vpop.f32.mrb[0].mxu0
    %v964 = vadd.f32 0.0, %v963
    %v965 = vpop.f32.mrb[0].mxu0
    %v966 = vpop.f32.mrb[0].mxu0
    %v967 = vadd.f32 0.0, %v966
    %v968 = vpop.f32.mrb[0].mxu0
    %969 = vmatprep.mubr.bf16.mxu0 0
    %970 = vmatmul.mubr.bf16.gmra.mrb[0].mxu0 %v744
    %v971 = vpop.f32.mrb[0].mxu0
    %v972 = vadd.f32 0.0, %v971
    %v973 = vpop.f32.mrb[0].mxu0
    %v974 = vpop.f32.mrb[0].mxu0
    %v975 = vadd.f32 0.0, %v974
    %v976 = vpop.f32.mrb[0].mxu0
    %977 = vmatprep.mubr.bf16.mxu0 0
    %978 = vmatmul.mubr.bf16.gmra.mrb[0].mxu0 %v747
    %v979 = vpop.f32.mrb[0].mxu0
    %v980 = vadd.f32 0.0, %v979
    %v981 = vpop.f32.mrb[0].mxu0
    %v982 = vpop.f32.mrb[0].mxu0
    %v983 = vpop.f32.mrb[0].mxu0
    %984 = vdwg.mxu0
    %v986 = vlaneseq
    %v987 = vshrl.u32 %v986, 7
    %v988 = vsub.s32 0, %v987
    %v989 = vrot.slane %v534, %v988
    %v990 = vlaneseq
    %v991 = vshrl.u32 %v990, 7
    %v992 = vsub.s32 1, %v991
    %v993 = vrot.slane %v534, %v992
    %v994 = vlaneseq
    %v995 = vshrl.u32 %v994, 7
    %v996 = vsub.s32 2, %v995
    %v997 = vrot.slane %v534, %v996
    %v998 = vlaneseq
    %v999 = vshrl.u32 %v998, 7
    %v1000 = vsub.s32 3, %v999
    %v1001 = vrot.slane %v534, %v1000
    %vm1005 = vcmask 64512
    %v1006 = vsel %vm1005, %v1001, 0
    %1008 = vmatprep.subr.mxu0 0.0
    %1009 = vmatpush1.msra.mxu0 %v788
    %1010 = vmatprep.subr.mxu0 0.0
    %1011 = vmatpush1.msra.mxu0 %v791
    %1012 = vmatprep.subr.mxu0 0.0
    %1013 = vmatpush1.msra.mxu0 %v796
    %1014 = vmatprep.subr.mxu0 0.0
    %1015 = vmatpush1.msra.mxu0 %v799
    %1016 = vmatprep.subr.mxu0 0.0
    %1017 = vmatpush1.msra.mxu0 %v804
    %1018 = vmatprep.subr.mxu0 0.0
    %1019 = vmatpush1.msra.mxu0 %v807
    %1020 = vmatprep.subr.mxu0 0.0
    %1021 = vmatpush1.msra.mxu0 %v812
    %1022 = vmatprep.subr.mxu0 0.0
    %1023 = vmatpush1.msra.mxu0 %v815
    %1024 = vmatprep.subr.mxu0 0.0
    %1025 = vmatpush1.msra.mxu0 %v820
    %1026 = vmatprep.subr.mxu0 0.0
    %1027 = vmatpush1.msra.mxu0 %v823
    %1028 = vmatprep.subr.mxu0 0.0
    %1029 = vmatpush1.msra.mxu0 %v828
    %1030 = vmatprep.subr.mxu0 0.0
    %1031 = vmatpush1.msra.mxu0 %v831
    %1032 = vmatprep.subr.mxu0 0.0
    %1033 = vmatpush1.msra.mxu0 %v836
    %1034 = vmatprep.subr.mxu0 0.0
    %1035 = vmatpush1.msra.mxu0 %v839
    %1036 = vmatprep.subr.mxu0 0.0
    %1037 = vmatpush1.msra.mxu0 %v844
    %1038 = vmatprep.subr.mxu0 0.0
    %1039 = vmatpush1.msra.mxu0 %v847
    %1040 = vmatprep.subr.mxu0 0.0
    %1041 = vmatpush1.msra.mxu0 %v852
    %1042 = vmatprep.subr.mxu0 0.0
    %1043 = vmatpush1.msra.mxu0 %v855
    %1044 = vmatprep.subr.mxu0 0.0
    %1045 = vmatpush1.msra.mxu0 %v860
    %1046 = vmatprep.subr.mxu0 0.0
    %1047 = vmatpush1.msra.mxu0 %v863
    %1048 = vmatprep.subr.mxu0 0.0
    %1049 = vmatpush1.msra.mxu0 %v868
    %1050 = vmatprep.subr.mxu0 0.0
    %1051 = vmatpush1.msra.mxu0 %v871
    %1052 = vmatprep.subr.mxu0 0.0
    %1053 = vmatpush1.msra.mxu0 %v876
    %1054 = vmatprep.subr.mxu0 0.0
    %1055 = vmatpush1.msra.mxu0 %v879
    %1056 = vmatprep.subr.mxu0 0.0
    %1057 = vmatpush1.msra.mxu0 %v884
    %1058 = vmatprep.subr.mxu0 0.0
    %1059 = vmatpush1.msra.mxu0 %v887
    %1060 = vmatprep.subr.mxu0 0.0
    %1061 = vmatpush1.msra.mxu0 %v892
    %1062 = vmatprep.subr.mxu0 0.0
    %1063 = vmatpush1.msra.mxu0 %v895
    %1064 = vmatprep.subr.mxu0 0.0
    %1065 = vmatpush1.msra.mxu0 %v900
    %1066 = vmatprep.subr.mxu0 0.0
    %1067 = vmatpush1.msra.mxu0 %v903
    %1068 = vmatprep.subr.mxu0 0.0
    %1069 = vmatpush1.msra.mxu0 %v908
    %1070 = vmatprep.subr.mxu0 0.0
    %1071 = vmatpush1.msra.mxu0 %v911
    %1072 = vmatprep.mubr.f32.mxu0 %v993
    %1073 = vmatmul.mubr.f32.gmra.mrb[0].mxu0 %v989
    %v1074 = vpop.f32.mrb[0].mxu0
    %v1075 = vadd.f32 0.0, %v1074
    %v1076 = vpop.f32.mrb[0].mxu0
    %1077 = vdwg.mxu0
    %1078 = vmatprep.subr.mxu0 0.0
    %1079 = vmatpush1.msra.mxu0 %v916
    %1080 = vmatprep.subr.mxu0 0.0
    %1081 = vmatpush1.msra.mxu0 %v919
    %1082 = vmatprep.subr.mxu0 0.0
    %1083 = vmatpush1.msra.mxu0 %v924
    %1084 = vmatprep.subr.mxu0 0.0
    %1085 = vmatpush1.msra.mxu0 %v927
    %1086 = vmatprep.subr.mxu0 0.0
    %1087 = vmatpush1.msra.mxu0 %v932
    %1088 = vmatprep.subr.mxu0 0.0
    %1089 = vmatpush1.msra.mxu0 %v935
    %1090 = vmatprep.subr.mxu0 0.0
    %1091 = vmatpush1.msra.mxu0 %v940
    %1092 = vmatprep.subr.mxu0 0.0
    %1093 = vmatpush1.msra.mxu0 %v943
    %1094 = vmatprep.subr.mxu0 0.0
    %1095 = vmatpush1.msra.mxu0 %v948
    %1096 = vmatprep.subr.mxu0 0.0
    %1097 = vmatpush1.msra.mxu0 %v951
    %1098 = vmatprep.subr.mxu0 0.0
    %1099 = vmatpush1.msra.mxu0 %v956
    %1100 = vmatprep.subr.mxu0 0.0
    %1101 = vmatpush1.msra.mxu0 %v959
    %1102 = vmatprep.subr.mxu0 0.0
    %1103 = vmatpush1.msra.mxu0 %v964
    %1104 = vmatprep.subr.mxu0 0.0
    %1105 = vmatpush1.msra.mxu0 %v967
    %1106 = vmatprep.subr.mxu0 0.0
    %1107 = vmatpush1.msra.mxu0 %v972
    %1108 = vmatprep.subr.mxu0 0.0
    %1109 = vmatpush1.msra.mxu0 %v975
    %1110 = vmatprep.subr.mxu0 0.0
    %1111 = vmatpush1.msra.mxu0 %v980
    %1112 = vmatprep.subr.mxu0 0.0
    %1113 = vmatpush1.msra.mxu0 0.0
    %1114 = vmatprep.subr.mxu0 0.0
    %1115 = vmatpush1.msra.mxu0 0.0
    %1116 = vmatprep.subr.mxu0 0.0
    %1117 = vmatpush1.msra.mxu0 0.0
    %1118 = vmatprep.subr.mxu0 0.0
    %1119 = vmatpush1.msra.mxu0 0.0
    %1120 = vmatprep.subr.mxu0 0.0
    %1121 = vmatpush1.msra.mxu0 0.0
    %1122 = vmatprep.subr.mxu0 0.0
    %1123 = vmatpush1.msra.mxu0 0.0
    %1124 = vmatprep.subr.mxu0 0.0
    %1125 = vmatpush1.msra.mxu0 0.0
    %1126 = vmatprep.subr.mxu0 0.0
    %1127 = vmatpush1.msra.mxu0 0.0
    %1128 = vmatprep.subr.mxu0 0.0
    %1129 = vmatpush1.msra.mxu0 0.0
    %1130 = vmatprep.subr.mxu0 0.0
    %1131 = vmatpush1.msra.mxu0 0.0
    %1132 = vmatprep.subr.mxu0 0.0
    %1133 = vmatpush1.msra.mxu0 0.0
    %1134 = vmatprep.subr.mxu0 0.0
    %1135 = vmatpush1.msra.mxu0 0.0
    %1136 = vmatprep.subr.mxu0 0.0
    %1137 = vmatpush1.msra.mxu0 0.0
    %1138 = vmatprep.subr.mxu0 0.0
    %1139 = vmatpush1.msra.mxu0 0.0
    %1140 = vmatprep.subr.mxu0 0.0
    %1141 = vmatpush1.msra.mxu0 0.0
    %1142 = vmatprep.mubr.f32.mxu0 %v1006
    %1143 = vmatmul.mubr.f32.gmra.mrb[0].mxu0 %v997
    %v1144 = vpop.f32.mrb[0].mxu0
    %v1145 = vadd.f32 %v1075, %v1144
    %v1146 = vpop.f32.mrb[0].mxu0
    %1147 = vdwg.mxu0
    %v1148 = vmul.f32 %v1145, 0.0025510204
    %v1149 = vlaneseq
    %v1150 = vshrl.u32 %v1149, 7
    %v1151 = vsub.s32 0, %v1150
    %v1152 = vrot.slane %v1148, %v1151
    %v1153 = vsub.f32 %v788, %v1152
    %v1154 = vsub.f32 %v791, %v1152
    %v1155 = vsub.f32 %v796, %v1152
    %v1156 = vsub.f32 %v799, %v1152
    %v1157 = vsub.f32 %v804, %v1152
    %v1158 = vsub.f32 %v807, %v1152
    %v1159 = vsub.f32 %v812, %v1152
    %v1160 = vsub.f32 %v815, %v1152
    %v1161 = vsub.f32 %v820, %v1152
    %v1162 = vsub.f32 %v823, %v1152
    %v1163 = vsub.f32 %v828, %v1152
    %v1164 = vsub.f32 %v831, %v1152
    %v1165 = vsub.f32 %v836, %v1152
    %v1166 = vsub.f32 %v839, %v1152
    %v1167 = vsub.f32 %v844, %v1152
    %v1168 = vsub.f32 %v847, %v1152
    %v1169 = vsub.f32 %v852, %v1152
    %v1170 = vsub.f32 %v855, %v1152
    %v1171 = vsub.f32 %v860, %v1152
    %v1172 = vsub.f32 %v863, %v1152
    %v1173 = vsub.f32 %v868, %v1152
    %v1174 = vsub.f32 %v871, %v1152
    %v1175 = vsub.f32 %v876, %v1152
    %v1176 = vsub.f32 %v879, %v1152
    %v1177 = vsub.f32 %v884, %v1152
    %v1178 = vsub.f32 %v887, %v1152
    %v1179 = vsub.f32 %v892, %v1152
    %v1180 = vsub.f32 %v895, %v1152
    %v1181 = vsub.f32 %v900, %v1152
    %v1182 = vsub.f32 %v903, %v1152
    %v1183 = vsub.f32 %v908, %v1152
    %v1184 = vsub.f32 %v911, %v1152
    %v1185 = vsub.f32 %v916, %v1152
    %v1186 = vsub.f32 %v919, %v1152
    %v1187 = vsub.f32 %v924, %v1152
    %v1188 = vsub.f32 %v927, %v1152
    %v1189 = vsub.f32 %v932, %v1152
    %v1190 = vsub.f32 %v935, %v1152
    %v1191 = vsub.f32 %v940, %v1152
    %v1192 = vsub.f32 %v943, %v1152
    %v1193 = vsub.f32 %v948, %v1152
    %v1194 = vsub.f32 %v951, %v1152
    %v1195 = vsub.f32 %v956, %v1152
    %v1196 = vsub.f32 %v959, %v1152
    %v1197 = vsub.f32 %v964, %v1152
    %v1198 = vsub.f32 %v967, %v1152
    %v1199 = vsub.f32 %v972, %v1152
    %v1200 = vsub.f32 %v975, %v1152
    %v1201 = vsub.f32 %v980, %v1152
    %v1202 = vmul.f32 %v1153, %v1153
    %v1203 = vmul.f32 %v1154, %v1154
    %v1204 = vmul.f32 %v1155, %v1155
    %v1205 = vmul.f32 %v1156, %v1156
    %v1206 = vmul.f32 %v1157, %v1157
    %v1207 = vmul.f32 %v1158, %v1158
    %v1208 = vmul.f32 %v1159, %v1159
    %v1209 = vmul.f32 %v1160, %v1160
    %v1210 = vmul.f32 %v1161, %v1161
    %v1211 = vmul.f32 %v1162, %v1162
    %v1212 = vmul.f32 %v1163, %v1163
    %v1213 = vmul.f32 %v1164, %v1164
    %v1214 = vmul.f32 %v1165, %v1165
    %v1215 = vmul.f32 %v1166, %v1166
    %v1216 = vmul.f32 %v1167, %v1167
    %v1217 = vmul.f32 %v1168, %v1168
    %v1218 = vmul.f32 %v1169, %v1169
    %v1219 = vmul.f32 %v1170, %v1170
    %v1220 = vmul.f32 %v1171, %v1171
    %v1221 = vmul.f32 %v1172, %v1172
    %v1222 = vmul.f32 %v1173, %v1173
    %v1223 = vmul.f32 %v1174, %v1174
    %v1224 = vmul.f32 %v1175, %v1175
    %v1225 = vmul.f32 %v1176, %v1176
    %v1226 = vmul.f32 %v1177, %v1177
    %v1227 = vmul.f32 %v1178, %v1178
    %v1228 = vmul.f32 %v1179, %v1179
    %v1229 = vmul.f32 %v1180, %v1180
    %v1230 = vmul.f32 %v1181, %v1181
    %v1231 = vmul.f32 %v1182, %v1182
    %v1232 = vmul.f32 %v1183, %v1183
    %v1233 = vmul.f32 %v1184, %v1184
    %v1234 = vmul.f32 %v1185, %v1185
    %v1235 = vmul.f32 %v1186, %v1186
    %v1236 = vmul.f32 %v1187, %v1187
    %v1237 = vmul.f32 %v1188, %v1188
    %v1238 = vmul.f32 %v1189, %v1189
    %v1239 = vmul.f32 %v1190, %v1190
    %v1240 = vmul.f32 %v1191, %v1191
    %v1241 = vmul.f32 %v1192, %v1192
    %v1242 = vmul.f32 %v1193, %v1193
    %v1243 = vmul.f32 %v1194, %v1194
    %v1244 = vmul.f32 %v1195, %v1195
    %v1245 = vmul.f32 %v1196, %v1196
    %v1246 = vmul.f32 %v1197, %v1197
    %v1247 = vmul.f32 %v1198, %v1198
    %v1248 = vmul.f32 %v1199, %v1199
    %v1249 = vmul.f32 %v1200, %v1200
    %v1250 = vmul.f32 %v1201, %v1201
    %1251 = vmatprep.subr.mxu0 0.0
    %1252 = vmatpush1.msra.mxu0 %v1202
    %1253 = vmatprep.subr.mxu0 0.0
    %1254 = vmatpush1.msra.mxu0 %v1203
    %1255 = vmatprep.subr.mxu0 0.0
    %1256 = vmatpush1.msra.mxu0 %v1204
    %1257 = vmatprep.subr.mxu0 0.0
    %1258 = vmatpush1.msra.mxu0 %v1205
    %1259 = vmatprep.subr.mxu0 0.0
    %1260 = vmatpush1.msra.mxu0 %v1206
    %1261 = vmatprep.subr.mxu0 0.0
    %1262 = vmatpush1.msra.mxu0 %v1207
    %1263 = vmatprep.subr.mxu0 0.0
    %1264 = vmatpush1.msra.mxu0 %v1208
    %1265 = vmatprep.subr.mxu0 0.0
    %1266 = vmatpush1.msra.mxu0 %v1209
    %1267 = vmatprep.subr.mxu0 0.0
    %1268 = vmatpush1.msra.mxu0 %v1210
    %1269 = vmatprep.subr.mxu0 0.0
    %1270 = vmatpush1.msra.mxu0 %v1211
    %1271 = vmatprep.subr.mxu0 0.0
    %1272 = vmatpush1.msra.mxu0 %v1212
    %1273 = vmatprep.subr.mxu0 0.0
    %1274 = vmatpush1.msra.mxu0 %v1213
    %1275 = vmatprep.subr.mxu0 0.0
    %1276 = vmatpush1.msra.mxu0 %v1214
    %1277 = vmatprep.subr.mxu0 0.0
    %1278 = vmatpush1.msra.mxu0 %v1215
    %1279 = vmatprep.subr.mxu0 0.0
    %1280 = vmatpush1.msra.mxu0 %v1216
    %1281 = vmatprep.subr.mxu0 0.0
    %1282 = vmatpush1.msra.mxu0 %v1217
    %1283 = vmatprep.subr.mxu0 0.0
    %1284 = vmatpush1.msra.mxu0 %v1218
    %1285 = vmatprep.subr.mxu0 0.0
    %1286 = vmatpush1.msra.mxu0 %v1219
    %1287 = vmatprep.subr.mxu0 0.0
    %1288 = vmatpush1.msra.mxu0 %v1220
    %1289 = vmatprep.subr.mxu0 0.0
    %1290 = vmatpush1.msra.mxu0 %v1221
    %1291 = vmatprep.subr.mxu0 0.0
    %1292 = vmatpush1.msra.mxu0 %v1222
    %1293 = vmatprep.subr.mxu0 0.0
    %1294 = vmatpush1.msra.mxu0 %v1223
    %1295 = vmatprep.subr.mxu0 0.0
    %1296 = vmatpush1.msra.mxu0 %v1224
    %1297 = vmatprep.subr.mxu0 0.0
    %1298 = vmatpush1.msra.mxu0 %v1225
    %1299 = vmatprep.subr.mxu0 0.0
    %1300 = vmatpush1.msra.mxu0 %v1226
    %1301 = vmatprep.subr.mxu0 0.0
    %1302 = vmatpush1.msra.mxu0 %v1227
    %1303 = vmatprep.subr.mxu0 0.0
    %1304 = vmatpush1.msra.mxu0 %v1228
    %1305 = vmatprep.subr.mxu0 0.0
    %1306 = vmatpush1.msra.mxu0 %v1229
    %1307 = vmatprep.subr.mxu0 0.0
    %1308 = vmatpush1.msra.mxu0 %v1230
    %1309 = vmatprep.subr.mxu0 0.0
    %1310 = vmatpush1.msra.mxu0 %v1231
    %1311 = vmatprep.subr.mxu0 0.0
    %1312 = vmatpush1.msra.mxu0 %v1232
    %1313 = vmatprep.subr.mxu0 0.0
    %1314 = vmatpush1.msra.mxu0 %v1233
    %1315 = vmatprep.mubr.f32.mxu0 %v993
    %1316 = vmatmul.mubr.f32.gmra.mrb[0].mxu0 %v989
    %v1317 = vpop.f32.mrb[0].mxu0
    %v1318 = vadd.f32 0.0, %v1317
    %v1319 = vpop.f32.mrb[0].mxu0
    %1320 = vdwg.mxu0
    %1321 = vmatprep.subr.mxu0 0.0
    %1322 = vmatpush1.msra.mxu0 %v1234
    %1323 = vmatprep.subr.mxu0 0.0
    %1324 = vmatpush1.msra.mxu0 %v1235
    %1325 = vmatprep.subr.mxu0 0.0
    %1326 = vmatpush1.msra.mxu0 %v1236
    %1327 = vmatprep.subr.mxu0 0.0
    %1328 = vmatpush1.msra.mxu0 %v1237
    %1329 = vmatprep.subr.mxu0 0.0
    %1330 = vmatpush1.msra.mxu0 %v1238
    %1331 = vmatprep.subr.mxu0 0.0
    %1332 = vmatpush1.msra.mxu0 %v1239
    %1333 = vmatprep.subr.mxu0 0.0
    %1334 = vmatpush1.msra.mxu0 %v1240
    %1335 = vmatprep.subr.mxu0 0.0
    %1336 = vmatpush1.msra.mxu0 %v1241
    %1337 = vmatprep.subr.mxu0 0.0
    %1338 = vmatpush1.msra.mxu0 %v1242
    %1339 = vmatprep.subr.mxu0 0.0
    %1340 = vmatpush1.msra.mxu0 %v1243
    %1341 = vmatprep.subr.mxu0 0.0
    %1342 = vmatpush1.msra.mxu0 %v1244
    %1343 = vmatprep.subr.mxu0 0.0
    %1344 = vmatpush1.msra.mxu0 %v1245
    %1345 = vmatprep.subr.mxu0 0.0
    %1346 = vmatpush1.msra.mxu0 %v1246
    %1347 = vmatprep.subr.mxu0 0.0
    %1348 = vmatpush1.msra.mxu0 %v1247
    %1349 = vmatprep.subr.mxu0 0.0
    %1350 = vmatpush1.msra.mxu0 %v1248
    %1351 = vmatprep.subr.mxu0 0.0
    %1352 = vmatpush1.msra.mxu0 %v1249
    %1353 = vmatprep.subr.mxu0 0.0
    %1354 = vmatpush1.msra.mxu0 %v1250
    %1355 = vmatprep.subr.mxu0 0.0
    %1356 = vmatpush1.msra.mxu0 0.0
    %1357 = vmatprep.subr.mxu0 0.0
    %1358 = vmatpush1.msra.mxu0 0.0
    %1359 = vmatprep.subr.mxu0 0.0
    %1360 = vmatpush1.msra.mxu0 0.0
    %1361 = vmatprep.subr.mxu0 0.0
    %1362 = vmatpush1.msra.mxu0 0.0
    %1363 = vmatprep.subr.mxu0 0.0
    %1364 = vmatpush1.msra.mxu0 0.0
    %1365 = vmatprep.subr.mxu0 0.0
    %1366 = vmatpush1.msra.mxu0 0.0
    %1367 = vmatprep.subr.mxu0 0.0
    %1368 = vmatpush1.msra.mxu0 0.0
    %1369 = vmatprep.subr.mxu0 0.0
    %1370 = vmatpush1.msra.mxu0 0.0
    %1371 = vmatprep.subr.mxu0 0.0
    %1372 = vmatpush1.msra.mxu0 0.0
    %1373 = vmatprep.subr.mxu0 0.0
    %1374 = vmatpush1.msra.mxu0 0.0
    %1375 = vmatprep.subr.mxu0 0.0
    %1376 = vmatpush1.msra.mxu0 0.0
    %1377 = vmatprep.subr.mxu0 0.0
    %1378 = vmatpush1.msra.mxu0 0.0
    %1379 = vmatprep.subr.mxu0 0.0
    %1380 = vmatpush1.msra.mxu0 0.0
    %1381 = vmatprep.subr.mxu0 0.0
    %1382 = vmatpush1.msra.mxu0 0.0
    %1383 = vmatprep.subr.mxu0 0.0
    %1384 = vmatpush1.msra.mxu0 0.0
    %1385 = vmatprep.mubr.f32.mxu0 %v1006
    %1386 = vmatmul.mubr.f32.gmra.mrb[0].mxu0 %v997
    %v1387 = vpop.f32.mrb[0].mxu0
    %v1388 = vadd.f32 %v1318, %v1387
    %v1389 = vpop.f32.mrb[0].mxu0
    %1390 = vdwg.mxu0
    %v1391 = vmul.f32 %v1388, 0.0025510204
    %v1392 = vadd.f32 %v1391, 1e-05
    %v1393 = vrsqrt.pop %v1392
    %v1394 = vmul.f32 %v1393, %v533
    %v1395 = vlaneseq
    %v1396 = vshrl.u32 %v1395, 7
    %v1397 = vsub.s32 0, %v1396
    %v1398 = vrot.slane %v1394, %v1397
    %v1399 = vmul.f32 %v1153, %v1398
    %v1400 = vmul.f32 %v1154, %v1398
    %v1401 = vmul.f32 %v1155, %v1398
    %v1402 = vmul.f32 %v1156, %v1398
    %v1403 = vmul.f32 %v1157, %v1398
    %v1404 = vmul.f32 %v1158, %v1398
    %v1405 = vmul.f32 %v1159, %v1398
    %v1406 = vmul.f32 %v1160, %v1398
    %v1407 = vmul.f32 %v1161, %v1398
    %v1408 = vmul.f32 %v1162, %v1398
    %v1409 = vmul.f32 %v1163, %v1398
    %v1410 = vmul.f32 %v1164, %v1398
    %v1411 = vmul.f32 %v1165, %v1398
    %v1412 = vmul.f32 %v1166, %v1398
    %v1413 = vmul.f32 %v1167, %v1398
    %v1414 = vmul.f32 %v1168, %v1398
    %v1415 = vmul.f32 %v1169, %v1398
    %v1416 = vmul.f32 %v1170, %v1398
    %v1417 = vmul.f32 %v1171, %v1398
    %v1418 = vmul.f32 %v1172, %v1398
    %v1419 = vmul.f32 %v1173, %v1398
    %v1420 = vmul.f32 %v1174, %v1398
    %v1421 = vmul.f32 %v1175, %v1398
    %v1422 = vmul.f32 %v1176, %v1398
    %v1423 = vmul.f32 %v1177, %v1398
    %v1424 = vmul.f32 %v1178, %v1398
    %v1425 = vmul.f32 %v1179, %v1398
    %v1426 = vmul.f32 %v1180, %v1398
    %v1427 = vmul.f32 %v1181, %v1398
    %v1428 = vmul.f32 %v1182, %v1398
    %v1429 = vmul.f32 %v1183, %v1398
    %v1430 = vmul.f32 %v1184, %v1398
    %v1431 = vmul.f32 %v1185, %v1398
    %v1432 = vmul.f32 %v1186, %v1398
    %v1433 = vmul.f32 %v1187, %v1398
    %v1434 = vmul.f32 %v1188, %v1398
    %v1435 = vmul.f32 %v1189, %v1398
    %v1436 = vmul.f32 %v1190, %v1398
    %v1437 = vmul.f32 %v1191, %v1398
    %v1438 = vmul.f32 %v1192, %v1398
    %v1439 = vmul.f32 %v1193, %v1398
    %v1440 = vmul.f32 %v1194, %v1398
    %v1441 = vmul.f32 %v1195, %v1398
    %v1442 = vmul.f32 %v1196, %v1398
    %v1443 = vmul.f32 %v1197, %v1398
    %v1444 = vmul.f32 %v1198, %v1398
    %v1445 = vmul.f32 %v1199, %v1398
    %v1446 = vmul.f32 %v1200, %v1398
    %v1447 = vmul.f32 %v1201, %v1398
    %v1448 = vlaneseq
    %v1449 = vshrl.u32 %v1448, 7
    %v1450 = vsub.s32 1, %v1449
    %v1451 = vrot.slane %v533, %v1450
    %v1452 = vadd.f32 %v1399, %v1451
    %v1453 = vadd.f32 %v1400, %v1451
    %v1454 = vadd.f32 %v1401, %v1451
    %v1455 = vadd.f32 %v1402, %v1451
    %v1456 = vadd.f32 %v1403, %v1451
    %v1457 = vadd.f32 %v1404, %v1451
    %v1458 = vadd.f32 %v1405, %v1451
    %v1459 = vadd.f32 %v1406, %v1451
    %v1460 = vadd.f32 %v1407, %v1451
    %v1461 = vadd.f32 %v1408, %v1451
    %v1462 = vadd.f32 %v1409, %v1451
    %v1463 = vadd.f32 %v1410, %v1451
    %v1464 = vadd.f32 %v1411, %v1451
    %v1465 = vadd.f32 %v1412, %v1451
    %v1466 = vadd.f32 %v1413, %v1451
    %v1467 = vadd.f32 %v1414, %v1451
    %v1468 = vadd.f32 %v1415, %v1451
    %v1469 = vadd.f32 %v1416, %v1451
    %v1470 = vadd.f32 %v1417, %v1451
    %v1471 = vadd.f32 %v1418, %v1451
    %v1472 = vadd.f32 %v1419, %v1451
    %v1473 = vadd.f32 %v1420, %v1451
    %v1474 = vadd.f32 %v1421, %v1451
    %v1475 = vadd.f32 %v1422, %v1451
    %v1476 = vadd.f32 %v1423, %v1451
    %v1477 = vadd.f32 %v1424, %v1451
    %v1478 = vadd.f32 %v1425, %v1451
    %v1479 = vadd.f32 %v1426, %v1451
    %v1480 = vadd.f32 %v1427, %v1451
    %v1481 = vadd.f32 %v1428, %v1451
    %v1482 = vadd.f32 %v1429, %v1451
    %v1483 = vadd.f32 %v1430, %v1451
    %v1484 = vadd.f32 %v1431, %v1451
    %v1485 = vadd.f32 %v1432, %v1451
    %v1486 = vadd.f32 %v1433, %v1451
    %v1487 = vadd.f32 %v1434, %v1451
    %v1488 = vadd.f32 %v1435, %v1451
    %v1489 = vadd.f32 %v1436, %v1451
    %v1490 = vadd.f32 %v1437, %v1451
    %v1491 = vadd.f32 %v1438, %v1451
    %v1492 = vadd.f32 %v1439, %v1451
    %v1493 = vadd.f32 %v1440, %v1451
    %v1494 = vadd.f32 %v1441, %v1451
    %v1495 = vadd.f32 %v1442, %v1451
    %v1496 = vadd.f32 %v1443, %v1451
    %v1497 = vadd.f32 %v1444, %v1451
    %v1498 = vadd.f32 %v1445, %v1451
    %v1499 = vadd.f32 %v1446, %v1451
    %v1500 = vadd.f32 %v1447, %v1451
    %v1501 = vmax.f32 %v1452, 0.0
    %v1502 = vmax.f32 %v1453, 0.0
    %v1503 = vmax.f32 %v1454, 0.0
    %v1504 = vmax.f32 %v1455, 0.0
    %v1505 = vmax.f32 %v1456, 0.0
    %v1506 = vmax.f32 %v1457, 0.0
    %v1507 = vmax.f32 %v1458, 0.0
    %v1508 = vmax.f32 %v1459, 0.0
    %v1509 = vmax.f32 %v1460, 0.0
    %v1510 = vmax.f32 %v1461, 0.0
    %v1511 = vmax.f32 %v1462, 0.0
    %v1512 = vmax.f32 %v1463, 0.0
    %v1513 = vmax.f32 %v1464, 0.0
    %v1514 = vmax.f32 %v1465, 0.0
    %v1515 = vmax.f32 %v1466, 0.0
    %v1516 = vmax.f32 %v1467, 0.0
    %v1517 = vmax.f32 %v1468, 0.0
    %v1518 = vmax.f32 %v1469, 0.0
    %v1519 = vmax.f32 %v1470, 0.0
    %v1520 = vmax.f32 %v1471, 0.0
    %v1521 = vmax.f32 %v1472, 0.0
    %v1522 = vmax.f32 %v1473, 0.0
    %v1523 = vmax.f32 %v1474, 0.0
    %v1524 = vmax.f32 %v1475, 0.0
    %v1525 = vmax.f32 %v1476, 0.0
    %v1526 = vmax.f32 %v1477, 0.0
    %v1527 = vmax.f32 %v1478, 0.0
    %v1528 = vmax.f32 %v1479, 0.0
    %v1529 = vmax.f32 %v1480, 0.0
    %v1530 = vmax.f32 %v1481, 0.0
    %v1531 = vmax.f32 %v1482, 0.0
    %v1532 = vmax.f32 %v1483, 0.0
    %v1533 = vmax.f32 %v1484, 0.0
    %v1534 = vmax.f32 %v1485, 0.0
    %v1535 = vmax.f32 %v1486, 0.0
    %v1536 = vmax.f32 %v1487, 0.0
    %v1537 = vmax.f32 %v1488, 0.0
    %v1538 = vmax.f32 %v1489, 0.0
    %v1539 = vmax.f32 %v1490, 0.0
    %v1540 = vmax.f32 %v1491, 0.0
    %v1541 = vmax.f32 %v1492, 0.0
    %v1542 = vmax.f32 %v1493, 0.0
    %v1543 = vmax.f32 %v1494, 0.0
    %v1544 = vmax.f32 %v1495, 0.0
    %v1545 = vmax.f32 %v1496, 0.0
    %v1546 = vmax.f32 %v1497, 0.0
    %v1547 = vmax.f32 %v1498, 0.0
    %v1548 = vmax.f32 %v1499, 0.0
    %v1549 = vmax.f32 %v1500, 0.0
    %vm1599 = vcmask 1046528
    %v1600 = vrot.slane %v1501, 1
    %v1601 = vrot.slane %v1502, 1
    %v1602 = vsel %vm1599, %v1600, %v1601
    %v1603 = vrot.slane %v1503, 1
    %v1604 = vsel %vm1599, %v1601, %v1603
    %v1605 = vrot.slane %v1504, 1
    %v1606 = vsel %vm1599, %v1603, %v1605
    %v1607 = vrot.slane %v1505, 1
    %v1608 = vsel %vm1599, %v1605, %v1607
    %v1609 = vrot.slane %v1506, 1
    %v1610 = vsel %vm1599, %v1607, %v1609
    %v1611 = vrot.slane %v1507, 1
    %v1612 = vsel %vm1599, %v1609, %v1611
    %v1613 = vrot.slane %v1508, 1
    %v1614 = vsel %vm1599, %v1611, %v1613
    %v1615 = vrot.slane %v1509, 1
    %v1616 = vsel %vm1599, %v1613, %v1615
    %v1617 = vrot.slane %v1510, 1
    %v1618 = vsel %vm1599, %v1615, %v1617
    %v1619 = vrot.slane %v1511, 1
    %v1620 = vsel %vm1599, %v1617, %v1619
    %v1621 = vrot.slane %v1512, 1
    %v1622 = vsel %vm1599, %v1619, %v1621
    %v1623 = vrot.slane %v1513, 1
    %v1624 = vsel %vm1599, %v1621, %v1623
    %v1625 = vrot.slane %v1514, 1
    %v1626 = vsel %vm1599, %v1623, %v1625
    %v1627 = vrot.slane %v1515, 1
    %v1628 = vsel %vm1599, %v1625, %v1627
    %v1629 = vrot.slane %v1516, 1
    %v1630 = vsel %vm1599, %v1627, %v1629
    %v1631 = vrot.slane %v1517, 1
    %v1632 = vsel %vm1599, %v1629, %v1631
    %v1633 = vrot.slane %v1518, 1
    %v1634 = vsel %vm1599, %v1631, %v1633
    %v1635 = vrot.slane %v1519, 1
    %v1636 = vsel %vm1599, %v1633, %v1635
    %v1637 = vrot.slane %v1520, 1
    %v1638 = vsel %vm1599, %v1635, %v1637
    %v1639 = vrot.slane %v1521, 1
    %v1640 = vsel %vm1599, %v1637, %v1639
    %v1641 = vrot.slane %v1522, 1
    %v1642 = vsel %vm1599, %v1639, %v1641
    %v1643 = vrot.slane %v1523, 1
    %v1644 = vsel %vm1599, %v1641, %v1643
    %v1645 = vrot.slane %v1524, 1
    %v1646 = vsel %vm1599, %v1643, %v1645
    %v1647 = vrot.slane %v1525, 1
    %v1648 = vsel %vm1599, %v1645, %v1647
    %v1649 = vrot.slane %v1526, 1
    %v1650 = vsel %vm1599, %v1647, %v1649
    %v1651 = vrot.slane %v1527, 1
    %v1652 = vsel %vm1599, %v1649, %v1651
    %v1653 = vrot.slane %v1528, 1
    %v1654 = vsel %vm1599, %v1651, %v1653
    %v1655 = vrot.slane %v1529, 1
    %v1656 = vsel %vm1599, %v1653, %v1655
    %v1657 = vrot.slane %v1530, 1
    %v1658 = vsel %vm1599, %v1655, %v1657
    %v1659 = vrot.slane %v1531, 1
    %v1660 = vsel %vm1599, %v1657, %v1659
    %v1661 = vrot.slane %v1532, 1
    %v1662 = vsel %vm1599, %v1659, %v1661
    %v1663 = vrot.slane %v1533, 1
    %v1664 = vsel %vm1599, %v1661, %v1663
    %v1665 = vrot.slane %v1534, 1
    %v1666 = vsel %vm1599, %v1663, %v1665
    %v1667 = vrot.slane %v1535, 1
    %v1668 = vsel %vm1599, %v1665, %v1667
    %v1669 = vrot.slane %v1536, 1
    %v1670 = vsel %vm1599, %v1667, %v1669
    %v1671 = vrot.slane %v1537, 1
    %v1672 = vsel %vm1599, %v1669, %v1671
    %v1673 = vrot.slane %v1538, 1
    %v1674 = vsel %vm1599, %v1671, %v1673
    %v1675 = vrot.slane %v1539, 1
    %v1676 = vsel %vm1599, %v1673, %v1675
    %v1677 = vrot.slane %v1540, 1
    %v1678 = vsel %vm1599, %v1675, %v1677
    %v1679 = vrot.slane %v1541, 1
    %v1680 = vsel %vm1599, %v1677, %v1679
    %v1681 = vrot.slane %v1542, 1
    %v1682 = vsel %vm1599, %v1679, %v1681
    %v1683 = vrot.slane %v1543, 1
    %v1684 = vsel %vm1599, %v1681, %v1683
    %v1685 = vrot.slane %v1544, 1
    %v1686 = vsel %vm1599, %v1683, %v1685
    %v1687 = vrot.slane %v1545, 1
    %v1688 = vsel %vm1599, %v1685, %v1687
    %v1689 = vrot.slane %v1546, 1
    %v1690 = vsel %vm1599, %v1687, %v1689
    %v1691 = vrot.slane %v1547, 1
    %v1692 = vsel %vm1599, %v1689, %v1691
    %v1693 = vrot.slane %v1548, 1
    %v1694 = vsel %vm1599, %v1691, %v1693
    %v1695 = vrot.slane %v1549, 1
    %v1696 = vsel %vm1599, %v1693, %v1695
    %v1746 = vmax.f32 %v1501, %v1602
    %v1747 = vmax.f32 %v1502, %v1604
    %v1748 = vmax.f32 %v1503, %v1606
    %v1749 = vmax.f32 %v1504, %v1608
    %v1750 = vmax.f32 %v1505, %v1610
    %v1751 = vmax.f32 %v1506, %v1612
    %v1752 = vmax.f32 %v1507, %v1614
    %v1753 = vmax.f32 %v1508, %v1616
    %v1754 = vmax.f32 %v1509, %v1618
    %v1755 = vmax.f32 %v1510, %v1620
    %v1756 = vmax.f32 %v1511, %v1622
    %v1757 = vmax.f32 %v1512, %v1624
    %v1758 = vmax.f32 %v1513, %v1626
    %v1759 = vmax.f32 %v1514, %v1628
    %v1760 = vmax.f32 %v1515, %v1630
    %v1761 = vmax.f32 %v1516, %v1632
    %v1762 = vmax.f32 %v1517, %v1634
    %v1763 = vmax.f32 %v1518, %v1636
    %v1764 = vmax.f32 %v1519, %v1638
    %v1765 = vmax.f32 %v1520, %v1640
    %v1766 = vmax.f32 %v1521, %v1642
    %v1767 = vmax.f32 %v1522, %v1644
    %v1768 = vmax.f32 %v1523, %v1646
    %v1769 = vmax.f32 %v1524, %v1648
    %v1770 = vmax.f32 %v1525, %v1650
    %v1771 = vmax.f32 %v1526, %v1652
    %v1772 = vmax.f32 %v1527, %v1654
    %v1773 = vmax.f32 %v1528, %v1656
    %v1774 = vmax.f32 %v1529, %v1658
    %v1775 = vmax.f32 %v1530, %v1660
    %v1776 = vmax.f32 %v1531, %v1662
    %v1777 = vmax.f32 %v1532, %v1664
    %v1778 = vmax.f32 %v1533, %v1666
    %v1779 = vmax.f32 %v1534, %v1668
    %v1780 = vmax.f32 %v1535, %v1670
    %v1781 = vmax.f32 %v1536, %v1672
    %v1782 = vmax.f32 %v1537, %v1674
    %v1783 = vmax.f32 %v1538, %v1676
    %v1784 = vmax.f32 %v1539, %v1678
    %v1785 = vmax.f32 %v1540, %v1680
    %v1786 = vmax.f32 %v1541, %v1682
    %v1787 = vmax.f32 %v1542, %v1684
    %v1788 = vmax.f32 %v1543, %v1686
    %v1789 = vmax.f32 %v1544, %v1688
    %v1790 = vmax.f32 %v1545, %v1690
    %v1791 = vmax.f32 %v1546, %v1692
    %v1792 = vmax.f32 %v1547, %v1694
    %v1793 = vmax.f32 %v1548, %v1696
    %v1794 = vmax.f32 %v1549, %v1695
    %v1843 = vrot.slane %v1747, 6
    %v1844 = vrot.slane %v1748, 6
    %v1845 = vsel %vm749, %v1843, %v1844
    %v1846 = vrot.slane %v1749, 6
    %v1847 = vsel %vm749, %v1844, %v1846
    %v1848 = vrot.slane %v1750, 6
    %v1849 = vsel %vm749, %v1846, %v1848
    %v1850 = vrot.slane %v1751, 6
    %v1851 = vsel %vm749, %v1848, %v1850
    %v1852 = vrot.slane %v1752, 6
    %v1853 = vsel %vm749, %v1850, %v1852
    %v1854 = vrot.slane %v1753, 6
    %v1855 = vsel %vm749, %v1852, %v1854
    %v1856 = vrot.slane %v1754, 6
    %v1857 = vsel %vm749, %v1854, %v1856
    %v1858 = vrot.slane %v1755, 6
    %v1859 = vsel %vm749, %v1856, %v1858
    %v1860 = vrot.slane %v1756, 6
    %v1861 = vsel %vm749, %v1858, %v1860
    %v1862 = vrot.slane %v1757, 6
    %v1863 = vsel %vm749, %v1860, %v1862
    %v1864 = vrot.slane %v1758, 6
    %v1865 = vsel %vm749, %v1862, %v1864
    %v1866 = vrot.slane %v1759, 6
    %v1867 = vsel %vm749, %v1864, %v1866
    %v1868 = vrot.slane %v1760, 6
    %v1869 = vsel %vm749, %v1866, %v1868
    %v1870 = vrot.slane %v1761, 6
    %v1871 = vsel %vm749, %v1868, %v1870
    %v1872 = vrot.slane %v1762, 6
    %v1873 = vsel %vm749, %v1870, %v1872
    %v1874 = vrot.slane %v1763, 6
    %v1875 = vsel %vm749, %v1872, %v1874
    %v1876 = vrot.slane %v1764, 6
    %v1877 = vsel %vm749, %v1874, %v1876
    %v1878 = vrot.slane %v1765, 6
    %v1879 = vsel %vm749, %v1876, %v1878
    %v1880 = vrot.slane %v1766, 6
    %v1881 = vsel %vm749, %v1878, %v1880
    %v1882 = vrot.slane %v1767, 6
    %v1883 = vsel %vm749, %v1880, %v1882
    %v1884 = vrot.slane %v1768, 6
    %v1885 = vsel %vm749, %v1882, %v1884
    %v1886 = vrot.slane %v1769, 6
    %v1887 = vsel %vm749, %v1884, %v1886
    %v1888 = vrot.slane %v1770, 6
    %v1889 = vsel %vm749, %v1886, %v1888
    %v1890 = vrot.slane %v1771, 6
    %v1891 = vsel %vm749, %v1888, %v1890
    %v1892 = vrot.slane %v1772, 6
    %v1893 = vsel %vm749, %v1890, %v1892
    %v1894 = vrot.slane %v1773, 6
    %v1895 = vsel %vm749, %v1892, %v1894
    %v1896 = vrot.slane %v1774, 6
    %v1897 = vsel %vm749, %v1894, %v1896
    %v1898 = vrot.slane %v1775, 6
    %v1899 = vsel %vm749, %v1896, %v1898
    %v1900 = vrot.slane %v1776, 6
    %v1901 = vsel %vm749, %v1898, %v1900
    %v1902 = vrot.slane %v1777, 6
    %v1903 = vsel %vm749, %v1900, %v1902
    %v1904 = vrot.slane %v1778, 6
    %v1905 = vsel %vm749, %v1902, %v1904
    %v1906 = vrot.slane %v1779, 6
    %v1907 = vsel %vm749, %v1904, %v1906
    %v1908 = vrot.slane %v1780, 6
    %v1909 = vsel %vm749, %v1906, %v1908
    %v1910 = vrot.slane %v1781, 6
    %v1911 = vsel %vm749, %v1908, %v1910
    %v1912 = vrot.slane %v1782, 6
    %v1913 = vsel %vm749, %v1910, %v1912
    %v1914 = vrot.slane %v1783, 6
    %v1915 = vsel %vm749, %v1912, %v1914
    %v1916 = vrot.slane %v1784, 6
    %v1917 = vsel %vm749, %v1914, %v1916
    %v1918 = vrot.slane %v1785, 6
    %v1919 = vsel %vm749, %v1916, %v1918
    %v1920 = vrot.slane %v1786, 6
    %v1921 = vsel %vm749, %v1918, %v1920
    %v1922 = vrot.slane %v1787, 6
    %v1923 = vsel %vm749, %v1920, %v1922
    %v1924 = vrot.slane %v1788, 6
    %v1925 = vsel %vm749, %v1922, %v1924
    %v1926 = vrot.slane %v1789, 6
    %v1927 = vsel %vm749, %v1924, %v1926
    %v1928 = vrot.slane %v1790, 6
    %v1929 = vsel %vm749, %v1926, %v1928
    %v1930 = vrot.slane %v1791, 6
    %v1931 = vsel %vm749, %v1928, %v1930
    %v1932 = vrot.slane %v1792, 6
    %v1933 = vsel %vm749, %v1930, %v1932
    %v1934 = vrot.slane %v1793, 6
    %v1935 = vsel %vm749, %v1932, %v1934
    %v1936 = vrot.slane %v1794, 6
    %v1937 = vsel %vm749, %v1934, %v1936
    %v1986 = vmax.f32 %v1746, %v1845
    %v1987 = vmax.f32 %v1747, %v1847
    %v1988 = vmax.f32 %v1748, %v1849
    %v1989 = vmax.f32 %v1749, %v1851
    %v1990 = vmax.f32 %v1750, %v1853
    %v1991 = vmax.f32 %v1751, %v1855
    %v1992 = vmax.f32 %v1752, %v1857
    %v1993 = vmax.f32 %v1753, %v1859
    %v1994 = vmax.f32 %v1754, %v1861
    %v1995 = vmax.f32 %v1755, %v1863
    %v1996 = vmax.f32 %v1756, %v1865
    %v1997 = vmax.f32 %v1757, %v1867
    %v1998 = vmax.f32 %v1758, %v1869
    %v1999 = vmax.f32 %v1759, %v1871
    %v2000 = vmax.f32 %v1760, %v1873
    %v2001 = vmax.f32 %v1761, %v1875
    %v2002 = vmax.f32 %v1762, %v1877
    %v2003 = vmax.f32 %v1763, %v1879
    %v2004 = vmax.f32 %v1764, %v1881
    %v2005 = vmax.f32 %v1765, %v1883
    %v2006 = vmax.f32 %v1766, %v1885
    %v2007 = vmax.f32 %v1767, %v1887
    %v2008 = vmax.f32 %v1768, %v1889
    %v2009 = vmax.f32 %v1769, %v1891
    %v2010 = vmax.f32 %v1770, %v1893
    %v2011 = vmax.f32 %v1771, %v1895
    %v2012 = vmax.f32 %v1772, %v1897
    %v2013 = vmax.f32 %v1773, %v1899
    %v2014 = vmax.f32 %v1774, %v1901
    %v2015 = vmax.f32 %v1775, %v1903
    %v2016 = vmax.f32 %v1776, %v1905
    %v2017 = vmax.f32 %v1777, %v1907
    %v2018 = vmax.f32 %v1778, %v1909
    %v2019 = vmax.f32 %v1779, %v1911
    %v2020 = vmax.f32 %v1780, %v1913
    %v2021 = vmax.f32 %v1781, %v1915
    %v2022 = vmax.f32 %v1782, %v1917
    %v2023 = vmax.f32 %v1783, %v1919
    %v2024 = vmax.f32 %v1784, %v1921
    %v2025 = vmax.f32 %v1785, %v1923
    %v2026 = vmax.f32 %v1786, %v1925
    %v2027 = vmax.f32 %v1787, %v1927
    %v2028 = vmax.f32 %v1788, %v1929
    %v2029 = vmax.f32 %v1789, %v1931
    %v2030 = vmax.f32 %v1790, %v1933
    %v2031 = vmax.f32 %v1791, %v1935
    %v2032 = vmax.f32 %v1792, %v1937
    %v2033 = vmax.f32 %v1793, %v1936
    %s2034 = smul.u32 4, 13
    %s2035 = smul.u32 %s2034, 3
    %s2036 = sshll.u32 %s2035, 4
    %2037 = dma.done [#allocation6], %s2036
    %v2038 = vld [vmem:[#allocation2] sm:$0xff]
    %v2039 = vld [vmem:[#allocation2 + $0x8] sm:$0xf]
    %v2040 = vld [vmem:[#allocation2 + $0xc] sm:$0xff]
    %v2041 = vld [vmem:[#allocation2 + $0x14] sm:$0xf]
    %v2042 = vld [vmem:[#allocation2 + $0x18] sm:$0xff]
    %v2043 = vld [vmem:[#allocation2 + $0x20] sm:$0xf]
    %v2044 = vld [vmem:[#allocation2 + $0x24] sm:$0xff]
    %v2045 = vld [vmem:[#allocation2 + $0x2c] sm:$0xf]
    %v2046 = vld [vmem:[#allocation2 + $0x30] sm:$0xff]
    %v2047 = vld [vmem:[#allocation2 + $0x38] sm:$0xf]
    %v2048 = vld [vmem:[#allocation2 + $0x3c] sm:$0xff]
    %v2049 = vld [vmem:[#allocation2 + $0x44] sm:$0xf]
    %v2050 = vld [vmem:[#allocation2 + $0x48] sm:$0xff]
    %v2051 = vld [vmem:[#allocation2 + $0x50] sm:$0xf]
    %v2052 = vld [vmem:[#allocation2 + $0x54] sm:$0xff]
    %v2053 = vld [vmem:[#allocation2 + $0x5c] sm:$0xf]
    %v2054 = vld [vmem:[#allocation2 + $0x60] sm:$0xff]
    %v2055 = vld [vmem:[#allocation2 + $0x68] sm:$0xf]
    %v2056 = vld [vmem:[#allocation2 + $0x6c] sm:$0xff]
    %v2057 = vld [vmem:[#allocation2 + $0x74] sm:$0xf]
    %v2058 = vld [vmem:[#allocation2 + $0x78] sm:$0xff]
    %v2059 = vld [vmem:[#allocation2 + $0x80] sm:$0xf]
    %v2060 = vld [vmem:[#allocation2 + $0x84] sm:$0xff]
    %v2061 = vld [vmem:[#allocation2 + $0x8c] sm:$0xf]
    %v2062 = vld [vmem:[#allocation2 + $0x90] sm:$0x11]
    %v2063 = vld [vmem:[#allocation2 + $0x98] sm:$0x1]
    %v2090 = vunpack.c.l.b16 %v2038
    %v2091 = vunpack.c.h.b16 %v2038
    %v2092 = vunpack.c.l.b16 %v2039
    %v2093 = vunpack.c.l.b16 %v2040
    %v2094 = vunpack.c.h.b16 %v2040
    %v2095 = vunpack.c.l.b16 %v2041
    %v2096 = vunpack.c.l.b16 %v2042
    %v2097 = vunpack.c.h.b16 %v2042
    %v2098 = vunpack.c.l.b16 %v2043
    %v2099 = vunpack.c.l.b16 %v2044
    %v2100 = vunpack.c.h.b16 %v2044
    %v2101 = vunpack.c.l.b16 %v2045
    %v2102 = vunpack.c.l.b16 %v2046
    %v2103 = vunpack.c.h.b16 %v2046
    %v2104 = vunpack.c.l.b16 %v2047
    %v2105 = vunpack.c.l.b16 %v2048
    %v2106 = vunpack.c.h.b16 %v2048
    %v2107 = vunpack.c.l.b16 %v2049
    %v2108 = vunpack.c.l.b16 %v2050
    %v2109 = vunpack.c.h.b16 %v2050
    %v2110 = vunpack.c.l.b16 %v2051
    %v2111 = vunpack.c.l.b16 %v2052
    %v2112 = vunpack.c.h.b16 %v2052
    %v2113 = vunpack.c.l.b16 %v2053
    %v2114 = vunpack.c.l.b16 %v2054
    %v2115 = vunpack.c.h.b16 %v2054
    %v2116 = vunpack.c.l.b16 %v2055
    %v2117 = vunpack.c.l.b16 %v2056
    %v2118 = vunpack.c.h.b16 %v2056
    %v2119 = vunpack.c.l.b16 %v2057
    %v2120 = vunpack.c.l.b16 %v2058
    %v2121 = vunpack.c.h.b16 %v2058
    %v2122 = vunpack.c.l.b16 %v2059
    %v2123 = vunpack.c.l.b16 %v2060
    %v2124 = vunpack.c.h.b16 %v2060
    %v2125 = vunpack.c.l.b16 %v2061
    %v2126 = vunpack.c.l.b16 %v2062
    %v2127 = vunpack.c.h.b16 %v2062
    %v2128 = vunpack.c.l.b16 %v2063
    %v2129 = vpack.c.b16 %v2093, %v2090
    %v2130 = vpack.c.b16 %v2094, %v2091
    %v2131 = vpack.c.b16 %v2095, %v2092
    %v2132 = vpack.c.b16 %v2099, %v2096
    %v2133 = vpack.c.b16 %v2100, %v2097
    %v2134 = vpack.c.b16 %v2101, %v2098
    %v2135 = vpack.c.b16 %v2105, %v2102
    %v2136 = vpack.c.b16 %v2106, %v2103
    %v2137 = vpack.c.b16 %v2107, %v2104
    %v2138 = vpack.c.b16 %v2111, %v2108
    %v2139 = vpack.c.b16 %v2112, %v2109
    %v2140 = vpack.c.b16 %v2113, %v2110
    %v2141 = vpack.c.b16 %v2117, %v2114
    %v2142 = vpack.c.b16 %v2118, %v2115
    %v2143 = vpack.c.b16 %v2119, %v2116
    %v2144 = vpack.c.b16 %v2123, %v2120
    %v2145 = vpack.c.b16 %v2124, %v2121
    %v2146 = vpack.c.b16 %v2125, %v2122
    %v2147 = vpack.c.b16 %v2126, %v2126
    %v2148 = vpack.c.b16 %v2127, %v2127
    %v2149 = vpack.c.b16 %v2128, %v2128
    %vm2164 = vcmask 990208
    %v2166 = vsel %vm2164, %v2131, 0
    %v2169 = vsel %vm2164, %v2134, 0
    %v2172 = vsel %vm2164, %v2137, 0
    %v2175 = vsel %vm2164, %v2140, 0
    %v2178 = vsel %vm2164, %v2143, 0
    %v2181 = vsel %vm2164, %v2146, 0
    %v2184 = vsel %vm2164, %v2149, 0
    %vm2186 = vcmask 1040384
    %v2188 = vsel %vm2186, %v2033, 0
    %2190 = vmatprep.subr.mxu0 0.0
    %2191 = vmatpush1.msra.mxu0 %v1986
    %2192 = vmatprep.subr.mxu0 0.0
    %2193 = vmatpush1.msra.mxu0 %v1987
    %2194 = vmatprep.subr.mxu0 0.0
    %2195 = vmatpush1.msra.mxu0 %v1988
    %2196 = vmatprep.subr.mxu0 0.0
    %2197 = vmatpush1.msra.mxu0 %v1989
    %2198 = vmatprep.subr.mxu0 0.0
    %2199 = vmatpush1.msra.mxu0 %v1990
    %2200 = vmatprep.subr.mxu0 0.0
    %2201 = vmatpush1.msra.mxu0 %v1991
    %2202 = vmatprep.subr.mxu0 0.0
    %2203 = vmatpush1.msra.mxu0 %v1992
    %2204 = vmatprep.subr.mxu0 0.0
    %2205 = vmatpush1.msra.mxu0 %v1993
    %2206 = vmatprep.subr.mxu0 0.0
    %2207 = vmatpush1.msra.mxu0 %v1994
    %2208 = vmatprep.subr.mxu0 0.0
    %2209 = vmatpush1.msra.mxu0 %v1995
    %2210 = vmatprep.subr.mxu0 0.0
    %2211 = vmatpush1.msra.mxu0 %v1996
    %2212 = vmatprep.subr.mxu0 0.0
    %2213 = vmatpush1.msra.mxu0 %v1997
    %2214 = vmatprep.subr.mxu0 0.0
    %2215 = vmatpush1.msra.mxu0 %v1998
    %2216 = vmatprep.subr.mxu0 0.0
    %2217 = vmatpush1.msra.mxu0 %v1999
    %2218 = vmatprep.subr.mxu0 0.0
    %2219 = vmatpush1.msra.mxu0 %v2000
    %2220 = vmatprep.subr.mxu0 0.0
    %2221 = vmatpush1.msra.mxu0 %v2001
    %2222 = vmatprep.subr.mxu0 0.0
    %2223 = vmatpush1.msra.mxu0 %v2002
    %2224 = vmatprep.subr.mxu0 0.0
    %2225 = vmatpush1.msra.mxu0 %v2003
    %2226 = vmatprep.subr.mxu0 0.0
    %2227 = vmatpush1.msra.mxu0 %v2004
    %2228 = vmatprep.subr.mxu0 0.0
    %2229 = vmatpush1.msra.mxu0 %v2005
    %2230 = vmatprep.subr.mxu0 0.0
    %2231 = vmatpush1.msra.mxu0 %v2006
    %2232 = vmatprep.subr.mxu0 0.0
    %2233 = vmatpush1.msra.mxu0 %v2007
    %2234 = vmatprep.subr.mxu0 0.0
    %2235 = vmatpush1.msra.mxu0 %v2008
    %2236 = vmatprep.subr.mxu0 0.0
    %2237 = vmatpush1.msra.mxu0 %v2009
    %2238 = vmatprep.subr.mxu0 0.0
    %2239 = vmatpush1.msra.mxu0 %v2010
    %2240 = vmatprep.subr.mxu0 0.0
    %2241 = vmatpush1.msra.mxu0 %v2011
    %2242 = vmatprep.subr.mxu0 0.0
    %2243 = vmatpush1.msra.mxu0 %v2012
    %2244 = vmatprep.subr.mxu0 0.0
    %2245 = vmatpush1.msra.mxu0 %v2013
    %2246 = vmatprep.subr.mxu0 0.0
    %2247 = vmatpush1.msra.mxu0 %v2014
    %2248 = vmatprep.subr.mxu0 0.0
    %2249 = vmatpush1.msra.mxu0 %v2015
    %2250 = vmatprep.subr.mxu0 0.0
    %2251 = vmatpush1.msra.mxu0 %v2016
    %2252 = vmatprep.subr.mxu0 0.0
    %2253 = vmatpush1.msra.mxu0 %v2017
    %2254 = vmatprep.mubr.bf16.mxu0 %v2130
    %2255 = vmatmul.mubr.bf16.gmra.mrb[0].mxu0 %v2129
    %v2256 = vpop.f32.mrb[0].mxu0
    %v2257 = vadd.f32 0.0, %v2256
    %v2258 = vpop.f32.mrb[0].mxu0
    %v2259 = vpop.f32.mrb[0].mxu0
    %v2260 = vadd.f32 0.0, %v2259
    %v2261 = vpop.f32.mrb[0].mxu0
    %2262 = vmatprep.mubr.bf16.mxu0 %v2133
    %2263 = vmatmul.mubr.bf16.gmra.mrb[0].mxu0 %v2132
    %v2264 = vpop.f32.mrb[0].mxu0
    %v2265 = vadd.f32 0.0, %v2264
    %v2266 = vpop.f32.mrb[0].mxu0
    %v2267 = vpop.f32.mrb[0].mxu0
    %v2268 = vadd.f32 0.0, %v2267
    %v2269 = vpop.f32.mrb[0].mxu0
    %2270 = vmatprep.mubr.bf16.mxu0 %v2136
    %2271 = vmatmul.mubr.bf16.gmra.mrb[0].mxu0 %v2135
    %v2272 = vpop.f32.mrb[0].mxu0
    %v2273 = vadd.f32 0.0, %v2272
    %v2274 = vpop.f32.mrb[0].mxu0
    %v2275 = vpop.f32.mrb[0].mxu0
    %v2276 = vadd.f32 0.0, %v2275
    %v2277 = vpop.f32.mrb[0].mxu0
    %2278 = vmatprep.mubr.bf16.mxu0 %v2139
    %2279 = vmatmul.mubr.bf16.gmra.mrb[0].mxu0 %v2138
    %v2280 = vpop.f32.mrb[0].mxu0
    %v2281 = vadd.f32 0.0, %v2280
    %v2282 = vpop.f32.mrb[0].mxu0
    %v2283 = vpop.f32.mrb[0].mxu0
    %v2284 = vadd.f32 0.0, %v2283
    %v2285 = vpop.f32.mrb[0].mxu0
    %2286 = vmatprep.mubr.bf16.mxu0 %v2142
    %2287 = vmatmul.mubr.bf16.gmra.mrb[0].mxu0 %v2141
    %v2288 = vpop.f32.mrb[0].mxu0
    %v2289 = vadd.f32 0.0, %v2288
    %v2290 = vpop.f32.mrb[0].mxu0
    %v2291 = vpop.f32.mrb[0].mxu0
    %v2292 = vadd.f32 0.0, %v2291
    %v2293 = vpop.f32.mrb[0].mxu0
    %2294 = vmatprep.mubr.bf16.mxu0 %v2145
    %2295 = vmatmul.mubr.bf16.gmra.mrb[0].mxu0 %v2144
    %v2296 = vpop.f32.mrb[0].mxu0
    %v2297 = vadd.f32 0.0, %v2296
    %v2298 = vpop.f32.mrb[0].mxu0
    %v2299 = vpop.f32.mrb[0].mxu0
    %v2300 = vadd.f32 0.0, %v2299
    %v2301 = vpop.f32.mrb[0].mxu0
    %2302 = vmatprep.mubr.bf16.mxu0 %v2148
    %2303 = vmatmul.mubr.bf16.gmra.mrb[0].mxu0 %v2147
    %v2304 = vpop.f32.mrb[0].mxu0
    %v2305 = vadd.f32 0.0, %v2304
    %v2306 = vpop.f32.mrb[0].mxu0
    %v2307 = vpop.f32.mrb[0].mxu0
    %v2308 = vpop.f32.mrb[0].mxu0
    %2309 = vdwg.mxu0
    %2310 = vmatprep.subr.mxu0 0.0
    %2311 = vmatpush1.msra.mxu0 %v2018
    %2312 = vmatprep.subr.mxu0 0.0
    %2313 = vmatpush1.msra.mxu0 %v2019
    %2314 = vmatprep.subr.mxu0 0.0
    %2315 = vmatpush1.msra.mxu0 %v2020
    %2316 = vmatprep.subr.mxu0 0.0
    %2317 = vmatpush1.msra.mxu0 %v2021
    %2318 = vmatprep.subr.mxu0 0.0
    %2319 = vmatpush1.msra.mxu0 %v2022
    %2320 = vmatprep.subr.mxu0 0.0
    %2321 = vmatpush1.msra.mxu0 %v2023
    %2322 = vmatprep.subr.mxu0 0.0
    %2323 = vmatpush1.msra.mxu0 %v2024
    %2324 = vmatprep.subr.mxu0 0.0
    %2325 = vmatpush1.msra.mxu0 %v2025
    %2326 = vmatprep.subr.mxu0 0.0
    %2327 = vmatpush1.msra.mxu0 %v2026
    %2328 = vmatprep.subr.mxu0 0.0
    %2329 = vmatpush1.msra.mxu0 %v2027
    %2330 = vmatprep.subr.mxu0 0.0
    %2331 = vmatpush1.msra.mxu0 %v2028
    %2332 = vmatprep.subr.mxu0 0.0
    %2333 = vmatpush1.msra.mxu0 %v2029
    %2334 = vmatprep.subr.mxu0 0.0
    %2335 = vmatpush1.msra.mxu0 %v2030
    %2336 = vmatprep.subr.mxu0 0.0
    %2337 = vmatpush1.msra.mxu0 %v2031
    %2338 = vmatprep.subr.mxu0 0.0
    %2339 = vmatpush1.msra.mxu0 %v2032
    %2340 = vmatprep.subr.mxu0 0.0
    %2341 = vmatpush1.msra.mxu0 %v2188
    %2342 = vmatprep.subr.mxu0 0.0
    %2343 = vmatpush1.msra.mxu0 0.0
    %2344 = vmatprep.subr.mxu0 0.0
    %2345 = vmatpush1.msra.mxu0 0.0
    %2346 = vmatprep.subr.mxu0 0.0
    %2347 = vmatpush1.msra.mxu0 0.0
    %2348 = vmatprep.subr.mxu0 0.0
    %2349 = vmatpush1.msra.mxu0 0.0
    %2350 = vmatprep.subr.mxu0 0.0
    %2351 = vmatpush1.msra.mxu0 0.0
    %2352 = vmatprep.subr.mxu0 0.0
    %2353 = vmatpush1.msra.mxu0 0.0
    %2354 = vmatprep.subr.mxu0 0.0
    %2355 = vmatpush1.msra.mxu0 0.0
    %2356 = vmatprep.subr.mxu0 0.0
    %2357 = vmatpush1.msra.mxu0 0.0
    %2358 = vmatprep.subr.mxu0 0.0
    %2359 = vmatpush1.msra.mxu0 0.0
    %2360 = vmatprep.subr.mxu0 0.0
    %2361 = vmatpush1.msra.mxu0 0.0
    %2362 = vmatprep.subr.mxu0 0.0
    %2363 = vmatpush1.msra.mxu0 0.0
    %2364 = vmatprep.subr.mxu0 0.0
    %2365 = vmatpush1.msra.mxu0 0.0
    %2366 = vmatprep.subr.mxu0 0.0
    %2367 = vmatpush1.msra.mxu0 0.0
    %2368 = vmatprep.subr.mxu0 0.0
    %2369 = vmatpush1.msra.mxu0 0.0
    %2370 = vmatprep.subr.mxu0 0.0
    %2371 = vmatpush1.msra.mxu0 0.0
    %2372 = vmatprep.subr.mxu0 0.0
    %2373 = vmatpush1.msra.mxu0 0.0
    %2374 = vmatprep.mubr.bf16.mxu0 0
    %2375 = vmatmul.mubr.bf16.gmra.mrb[0].mxu0 %v2166
    %v2376 = vpop.f32.mrb[0].mxu0
    %v2377 = vadd.f32 %v2257, %v2376
    %v2378 = vpop.f32.mrb[0].mxu0
    %v2379 = vpop.f32.mrb[0].mxu0
    %v2380 = vadd.f32 %v2260, %v2379
    %v2381 = vpop.f32.mrb[0].mxu0
    %2382 = vmatprep.mubr.bf16.mxu0 0
    %2383 = vmatmul.mubr.bf16.gmra.mrb[0].mxu0 %v2169
    %v2384 = vpop.f32.mrb[0].mxu0
    %v2385 = vadd.f32 %v2265, %v2384
    %v2386 = vpop.f32.mrb[0].mxu0
    %v2387 = vpop.f32.mrb[0].mxu0
    %v2388 = vadd.f32 %v2268, %v2387
    %v2389 = vpop.f32.mrb[0].mxu0
    %2390 = vmatprep.mubr.bf16.mxu0 0
    %2391 = vmatmul.mubr.bf16.gmra.mrb[0].mxu0 %v2172
    %v2392 = vpop.f32.mrb[0].mxu0
    %v2393 = vadd.f32 %v2273, %v2392
    %v2394 = vpop.f32.mrb[0].mxu0
    %v2395 = vpop.f32.mrb[0].mxu0
    %v2396 = vadd.f32 %v2276, %v2395
    %v2397 = vpop.f32.mrb[0].mxu0
    %2398 = vmatprep.mubr.bf16.mxu0 0
    %2399 = vmatmul.mubr.bf16.gmra.mrb[0].mxu0 %v2175
    %v2400 = vpop.f32.mrb[0].mxu0
    %v2401 = vadd.f32 %v2281, %v2400
    %v2402 = vpop.f32.mrb[0].mxu0
    %v2403 = vpop.f32.mrb[0].mxu0
    %v2404 = vadd.f32 %v2284, %v2403
    %v2405 = vpop.f32.mrb[0].mxu0
    %2406 = vmatprep.mubr.bf16.mxu0 0
    %2407 = vmatmul.mubr.bf16.gmra.mrb[0].mxu0 %v2178
    %v2408 = vpop.f32.mrb[0].mxu0
    %v2409 = vadd.f32 %v2289, %v2408
    %v2410 = vpop.f32.mrb[0].mxu0
    %v2411 = vpop.f32.mrb[0].mxu0
    %v2412 = vadd.f32 %v2292, %v2411
    %v2413 = vpop.f32.mrb[0].mxu0
    %2414 = vmatprep.mubr.bf16.mxu0 0
    %2415 = vmatmul.mubr.bf16.gmra.mrb[0].mxu0 %v2181
    %v2416 = vpop.f32.mrb[0].mxu0
    %v2417 = vadd.f32 %v2297, %v2416
    %v2418 = vpop.f32.mrb[0].mxu0
    %v2419 = vpop.f32.mrb[0].mxu0
    %v2420 = vadd.f32 %v2300, %v2419
    %v2421 = vpop.f32.mrb[0].mxu0
    %2422 = vmatprep.mubr.bf16.mxu0 0
    %2423 = vmatmul.mubr.bf16.gmra.mrb[0].mxu0 %v2184
    %v2424 = vpop.f32.mrb[0].mxu0
    %v2425 = vadd.f32 %v2305, %v2424
    %v2426 = vpop.f32.mrb[0].mxu0
    %v2427 = vpop.f32.mrb[0].mxu0
    %v2428 = vpop.f32.mrb[0].mxu0
    %2429 = vdwg.mxu0
    %s2430 = smul.u32 4, 72
    %s2431 = smul.u32 %s2430, 1
    %s2432 = sshll.u32 %s2431, 4
    %2433 = dma.done %s140, %s2432
    %v2445 = vrot.slane %v2377, 1
    %v2446 = vrot.slane %v2380, 1
    %v2447 = vsel %vm1599, %v2445, %v2446
    %v2448 = vrot.slane %v2385, 1
    %v2449 = vsel %vm1599, %v2446, %v2448
    %v2450 = vrot.slane %v2388, 1
    %v2451 = vsel %vm1599, %v2448, %v2450
    %v2452 = vrot.slane %v2393, 1
    %v2453 = vsel %vm1599, %v2450, %v2452
    %v2454 = vrot.slane %v2396, 1
    %v2455 = vsel %vm1599, %v2452, %v2454
    %v2456 = vrot.slane %v2401, 1
    %v2457 = vsel %vm1599, %v2454, %v2456
    %v2458 = vrot.slane %v2404, 1
    %v2459 = vsel %vm1599, %v2456, %v2458
    %v2460 = vrot.slane %v2409, 1
    %v2461 = vsel %vm1599, %v2458, %v2460
    %v2462 = vrot.slane %v2412, 1
    %v2463 = vsel %vm1599, %v2460, %v2462
    %v2464 = vrot.slane %v2417, 1
    %v2465 = vsel %vm1599, %v2462, %v2464
    %2466 = vrot.lane.b32.xlu0 %v2447, 64
    %v2467 = vpop.permute.xlu0 %2466
    %2468 = vrot.lane.b32.xlu0 %v2449, 64
    %v2469 = vpop.permute.xlu0 %2468
    %2470 = vrot.lane.b32.xlu0 %v2451, 64
    %v2471 = vpop.permute.xlu0 %2470
    %2472 = vrot.lane.b32.xlu0 %v2453, 64
    %v2473 = vpop.permute.xlu0 %2472
    %2474 = vrot.lane.b32.xlu0 %v2455, 64
    %v2475 = vpop.permute.xlu0 %2474
    %2476 = vrot.lane.b32.xlu0 %v2457, 64
    %v2477 = vpop.permute.xlu0 %2476
    %2478 = vrot.lane.b32.xlu0 %v2459, 64
    %v2479 = vpop.permute.xlu0 %2478
    %2480 = vrot.lane.b32.xlu0 %v2461, 64
    %v2481 = vpop.permute.xlu0 %2480
    %2482 = vrot.lane.b32.xlu0 %v2463, 64
    %v2483 = vpop.permute.xlu0 %2482
    %2484 = vrot.lane.b32.xlu0 %v2465, 64
    %v2485 = vpop.permute.xlu0 %2484
    %2486 = vrot.lane.b32.xlu0 %v2464, 64
    %v2487 = vpop.permute.xlu0 %2486
    %vm2499 = vcmask 1045504
    %v2500 = vrot.slane %v2377, 2
    %v2501 = vrot.slane %v2380, 2
    %v2502 = vsel %vm2499, %v2500, %v2501
    %v2503 = vrot.slane %v2385, 2
    %v2504 = vsel %vm2499, %v2501, %v2503
    %v2505 = vrot.slane %v2388, 2
    %v2506 = vsel %vm2499, %v2503, %v2505
    %v2507 = vrot.slane %v2393, 2
    %v2508 = vsel %vm2499, %v2505, %v2507
    %v2509 = vrot.slane %v2396, 2
    %v2510 = vsel %vm2499, %v2507, %v2509
    %v2511 = vrot.slane %v2401, 2
    %v2512 = vsel %vm2499, %v2509, %v2511
    %v2513 = vrot.slane %v2404, 2
    %v2514 = vsel %vm2499, %v2511, %v2513
    %v2515 = vrot.slane %v2409, 2
    %v2516 = vsel %vm2499, %v2513, %v2515
    %v2517 = vrot.slane %v2412, 2
    %v2518 = vsel %vm2499, %v2515, %v2517
    %v2519 = vrot.slane %v2417, 2
    %v2520 = vsel %vm2499, %v2517, %v2519
    %v2533 = vrot.slane %v2377, 7
    %v2534 = vrot.slane %v2380, 7
    %v2535 = vsel %vm2186, %v2533, %v2534
    %v2536 = vrot.slane %v2385, 7
    %v2537 = vsel %vm2186, %v2534, %v2536
    %v2538 = vrot.slane %v2388, 7
    %v2539 = vsel %vm2186, %v2536, %v2538
    %v2540 = vrot.slane %v2393, 7
    %v2541 = vsel %vm2186, %v2538, %v2540
    %v2542 = vrot.slane %v2396, 7
    %v2543 = vsel %vm2186, %v2540, %v2542
    %v2544 = vrot.slane %v2401, 7
    %v2545 = vsel %vm2186, %v2542, %v2544
    %v2546 = vrot.slane %v2404, 7
    %v2547 = vsel %vm2186, %v2544, %v2546
    %v2548 = vrot.slane %v2409, 7
    %v2549 = vsel %vm2186, %v2546, %v2548
    %v2550 = vrot.slane %v2412, 7
    %v2551 = vsel %vm2186, %v2548, %v2550
    %v2552 = vrot.slane %v2417, 7
    %v2553 = vsel %vm2186, %v2550, %v2552
    %v2554 = vrot.slane %v2420, 7
    %v2555 = vsel %vm2186, %v2552, %v2554
    %2556 = vrot.lane.b32.xlu0 %v2535, 64
    %v2557 = vpop.permute.xlu0 %2556
    %2558 = vrot.lane.b32.xlu0 %v2537, 64
    %v2559 = vpop.permute.xlu0 %2558
    %2560 = vrot.lane.b32.xlu0 %v2539, 64
    %v2561 = vpop.permute.xlu0 %2560
    %2562 = vrot.lane.b32.xlu0 %v2541, 64
    %v2563 = vpop.permute.xlu0 %2562
    %2564 = vrot.lane.b32.xlu0 %v2543, 64
    %v2565 = vpop.permute.xlu0 %2564
    %2566 = vrot.lane.b32.xlu0 %v2545, 64
    %v2567 = vpop.permute.xlu0 %2566
    %2568 = vrot.lane.b32.xlu0 %v2547, 64
    %v2569 = vpop.permute.xlu0 %2568
    %2570 = vrot.lane.b32.xlu0 %v2549, 64
    %v2571 = vpop.permute.xlu0 %2570
    %2572 = vrot.lane.b32.xlu0 %v2551, 64
    %v2573 = vpop.permute.xlu0 %2572
    %2574 = vrot.lane.b32.xlu0 %v2553, 64
    %v2575 = vpop.permute.xlu0 %2574
    %2576 = vrot.lane.b32.xlu0 %v2555, 64
    %v2577 = vpop.permute.xlu0 %2576
    %v2589 = vrot.slane %v2420, 1
    %v2590 = vsel %vm1599, %v2464, %v2589
    %2591 = vrot.lane.b32.xlu0 %v2590, 64
    %v2592 = vpop.permute.xlu0 %2591
    %2593 = vrot.lane.b32.xlu0 %v2589, 64
    %v2594 = vpop.permute.xlu0 %2593
    %v2597 = vrot.slane %v2380, 6
    %v2598 = vrot.slane %v2385, 6
    %v2599 = vsel %vm749, %v2597, %v2598
    %v2600 = vrot.slane %v2388, 6
    %v2601 = vsel %vm749, %v2598, %v2600
    %v2602 = vrot.slane %v2393, 6
    %v2603 = vsel %vm749, %v2600, %v2602
    %v2604 = vrot.slane %v2396, 6
    %v2605 = vsel %vm749, %v2602, %v2604
    %v2606 = vrot.slane %v2401, 6
    %v2607 = vsel %vm749, %v2604, %v2606
    %v2608 = vrot.slane %v2404, 6
    %v2609 = vsel %vm749, %v2606, %v2608
    %v2610 = vrot.slane %v2409, 6
    %v2611 = vsel %vm749, %v2608, %v2610
    %v2612 = vrot.slane %v2412, 6
    %v2613 = vsel %vm749, %v2610, %v2612
    %v2614 = vrot.slane %v2417, 6
    %v2615 = vsel %vm749, %v2612, %v2614
    %v2616 = vrot.slane %v2420, 6
    %v2617 = vsel %vm749, %v2614, %v2616
    %v2630 = vrot.slane %v2425, 7
    %v2631 = vsel %vm2186, %v2554, %v2630
    %2632 = vrot.lane.b32.xlu0 %v2631, 64
    %v2633 = vpop.permute.xlu0 %2632
    %vm2635 = vcmask 523264
    %v2636 = vsel %vm2635, %v2377, %v2467
    %v2637 = vsel %vm2635, %v2380, %v2469
    %v2638 = vsel %vm2635, %v2385, %v2471
    %v2639 = vsel %vm2635, %v2388, %v2473
    %v2640 = vsel %vm2635, %v2393, %v2475
    %v2641 = vsel %vm2635, %v2396, %v2477
    %v2642 = vsel %vm2635, %v2401, %v2479
    %v2643 = vsel %vm2635, %v2404, %v2481
    %v2644 = vsel %vm2635, %v2409, %v2483
    %v2645 = vsel %vm2635, %v2412, %v2485
    %v2646 = vsel %vm2635, %v2417, %v2487
    %v2647 = vsel %vm2635, %v2502, %v2557
    %v2648 = vsel %vm2635, %v2504, %v2559
    %v2649 = vsel %vm2635, %v2506, %v2561
    %v2650 = vsel %vm2635, %v2508, %v2563
    %v2651 = vsel %vm2635, %v2510, %v2565
    %v2652 = vsel %vm2635, %v2512, %v2567
    %v2653 = vsel %vm2635, %v2514, %v2569
    %v2654 = vsel %vm2635, %v2516, %v2571
    %v2655 = vsel %vm2635, %v2518, %v2573
    %v2656 = vsel %vm2635, %v2520, %v2575
    %v2657 = vsel %vm2635, %v2519, %v2577
    %v2658 = vsel %vm2635, %v2417, %v2592
    %v2659 = vsel %vm2635, %v2420, %v2594
    %v2660 = vsel %vm2635, %v2599, %v2559
    %v2661 = vsel %vm2635, %v2601, %v2561
    %v2662 = vsel %vm2635, %v2603, %v2563
    %v2663 = vsel %vm2635, %v2605, %v2565
    %v2664 = vsel %vm2635, %v2607, %v2567
    %v2665 = vsel %vm2635, %v2609, %v2569
    %v2666 = vsel %vm2635, %v2611, %v2571
    %v2667 = vsel %vm2635, %v2613, %v2573
    %v2668 = vsel %vm2635, %v2615, %v2575
    %v2669 = vsel %vm2635, %v2617, %v2577
    %v2670 = vsel %vm2635, %v2616, %v2633
    %v2671 = vld [vmem:[#allocation3] sm:$0xff]
    %v2672 = vld [vmem:[#allocation3 + $0x8] sm:$0xff]
    %v2673 = vld [vmem:[#allocation3 + $0x10] sm:$0xff]
    %v2674 = vld [vmem:[#allocation3 + $0x18] sm:$0xff]
    %v2675 = vld [vmem:[#allocation3 + $0x20] sm:$0xff]
    %v2676 = vld [vmem:[#allocation3 + $0x28] sm:$0xff]
    %v2677 = vld [vmem:[#allocation3 + $0x30] sm:$0xff]
    %v2678 = vld [vmem:[#allocation3 + $0x38] sm:$0xff]
    %v2679 = vld [vmem:[#allocation3 + $0x40] sm:$0xff]
    %v2680 = vld [vmem:[#allocation3 + $0x48] sm:$0xff]
    %v2681 = vld [vmem:[#allocation3 + $0x50] sm:$0xff]
    %v2682 = vld [vmem:[#allocation3 + $0x58] sm:$0xff]
    %v2683 = vld [vmem:[#allocation3 + $0x60] sm:$0xff]
    %v2684 = vld [vmem:[#allocation3 + $0x68] sm:$0xff]
    %v2685 = vld [vmem:[#allocation3 + $0x70] sm:$0xff]
    %v2686 = vld [vmem:[#allocation3 + $0x78] sm:$0xff]
    %v2687 = vld [vmem:[#allocation3 + $0x80] sm:$0xff]
    %v2688 = vld [vmem:[#allocation3 + $0x88] sm:$0xff]
    %v2689 = vld [vmem:[#allocation3 + $0x90] sm:$0xff]
    %v2690 = vld [vmem:[#allocation3 + $0x98] sm:$0xff]
    %v2691 = vld [vmem:[#allocation3 + $0xa0] sm:$0xff]
    %v2692 = vld [vmem:[#allocation3 + $0xa8] sm:$0xff]
    %v2693 = vld [vmem:[#allocation3 + $0xb0] sm:$0xff]
    %v2694 = vld [vmem:[#allocation3 + $0xb8] sm:$0xff]
    %v2695 = vld [vmem:[#allocation3 + $0xc0] sm:$0xff]
    %v2696 = vld [vmem:[#allocation3 + $0xc8] sm:$0xff]
    %v2697 = vld [vmem:[#allocation3 + $0xd0] sm:$0xff]
    %v2698 = vld [vmem:[#allocation3 + $0xd8] sm:$0xff]
    %v2699 = vld [vmem:[#allocation3 + $0xe0] sm:$0xff]
    %v2700 = vld [vmem:[#allocation3 + $0xe8] sm:$0xff]
    %v2701 = vld [vmem:[#allocation3 + $0xf0] sm:$0xff]
    %v2702 = vld [vmem:[#allocation3 + $0xf8] sm:$0xff]
    %v2703 = vld [vmem:[#allocation3 + $0x100] sm:$0xff]
    %v2704 = vld [vmem:[#allocation3 + $0x108] sm:$0xff]
    %v2705 = vld [vmem:[#allocation3 + $0x110] sm:$0xff]
    %v2706 = vld [vmem:[#allocation3 + $0x118] sm:$0xff]
    %v2707 = vld [vmem:[%s4] sm:$0x3]
    %v2708 = vld [vmem:[%s5] sm:$0x1]
    %v2709 = vsel %vm2635, %v2385, 0
    %v2711 = vsel %vm2635, %v2388, 0
    %v2713 = vsel %vm2635, %v2393, 0
    %v2715 = vsel %vm2635, %v2396, 0
    %v2717 = vsel %vm2635, %v2401, 0
    %v2719 = vsel %vm2635, %v2404, 0
    %v2721 = vsel %vm2635, %v2409, 0
    %v2723 = vsel %vm2635, %v2412, 0
    %v2725 = vsel %vm2635, %v2417, 0
    %v2727 = vsel %vm2635, %v2420, 0
    %v2729 = vsel %vm2635, %v2425, 0
    %2731 = vmatprep.subr.bf16.mxu0 0
    %2732 = vmatpush1.bf16.msra.mxu0 %v2671
    %2733 = vmatprep.subr.bf16.mxu0 0
    %2734 = vmatpush1.bf16.msra.mxu0 %v2672
    %2735 = vmatprep.subr.bf16.mxu0 0
    %2736 = vmatpush1.bf16.msra.mxu0 %v2673
    %2737 = vmatprep.subr.bf16.mxu0 0
    %2738 = vmatpush1.bf16.msra.mxu0 %v2674
    %2739 = vmatprep.subr.bf16.mxu0 0
    %2740 = vmatpush1.bf16.msra.mxu0 %v2675
    %2741 = vmatprep.subr.bf16.mxu0 0
    %2742 = vmatpush1.bf16.msra.mxu0 %v2676
    %2743 = vmatprep.subr.bf16.mxu0 0
    %2744 = vmatpush1.bf16.msra.mxu0 %v2677
    %2745 = vmatprep.subr.bf16.mxu0 0
    %2746 = vmatpush1.bf16.msra.mxu0 %v2678
    %2747 = vmatprep.subr.bf16.mxu0 0
    %2748 = vmatpush1.bf16.msra.mxu0 %v2679
    %2749 = vmatprep.subr.bf16.mxu0 0
    %2750 = vmatpush1.bf16.msra.mxu0 %v2680
    %2751 = vmatprep.subr.bf16.mxu0 0
    %2752 = vmatpush1.bf16.msra.mxu0 %v2681
    %2753 = vmatprep.subr.bf16.mxu0 0
    %2754 = vmatpush1.bf16.msra.mxu0 %v2682
    %2755 = vmatprep.subr.bf16.mxu0 0
    %2756 = vmatpush1.bf16.msra.mxu0 %v2683
    %2757 = vmatprep.subr.bf16.mxu0 0
    %2758 = vmatpush1.bf16.msra.mxu0 %v2684
    %2759 = vmatprep.subr.bf16.mxu0 0
    %2760 = vmatpush1.bf16.msra.mxu0 %v2685
    %2761 = vmatprep.subr.bf16.mxu0 0
    %2762 = vmatpush1.bf16.msra.mxu0 %v2686
    %2763 = vmatprep.mubr.f32.mxu0 %v2647
    %2764 = vmatmul.mubr.f32.gmra.mrb[0].mxu0 %v2636
    %v2765 = vpop.f32.mrb[0].mxu0
    %v2766 = vadd.f32 0.0, %v2765
    %v2767 = vpop.f32.mrb[0].mxu0
    %2768 = vmatprep.mubr.f32.mxu0 %v2648
    %2769 = vmatmul.mubr.f32.gmra.mrb[0].mxu0 %v2637
    %v2770 = vpop.f32.mrb[0].mxu0
    %v2771 = vadd.f32 0.0, %v2770
    %v2772 = vpop.f32.mrb[0].mxu0
    %2773 = vmatprep.mubr.f32.mxu0 %v2649
    %2774 = vmatmul.mubr.f32.gmra.mrb[0].mxu0 %v2638
    %v2775 = vpop.f32.mrb[0].mxu0
    %v2776 = vadd.f32 0.0, %v2775
    %v2777 = vpop.f32.mrb[0].mxu0
    %2778 = vmatprep.mubr.f32.mxu0 %v2650
    %2779 = vmatmul.mubr.f32.gmra.mrb[0].mxu0 %v2639
    %v2780 = vpop.f32.mrb[0].mxu0
    %v2781 = vadd.f32 0.0, %v2780
    %v2782 = vpop.f32.mrb[0].mxu0
    %2783 = vmatprep.mubr.f32.mxu0 %v2651
    %2784 = vmatmul.mubr.f32.gmra.mrb[0].mxu0 %v2640
    %v2785 = vpop.f32.mrb[0].mxu0
    %v2786 = vadd.f32 0.0, %v2785
    %v2787 = vpop.f32.mrb[0].mxu0
    %2788 = vmatprep.mubr.f32.mxu0 %v2652
    %2789 = vmatmul.mubr.f32.gmra.mrb[0].mxu0 %v2641
    %v2790 = vpop.f32.mrb[0].mxu0
    %v2791 = vadd.f32 0.0, %v2790
    %v2792 = vpop.f32.mrb[0].mxu0
    %2793 = vmatprep.mubr.f32.mxu0 %v2653
    %2794 = vmatmul.mubr.f32.gmra.mrb[0].mxu0 %v2642
    %v2795 = vpop.f32.mrb[0].mxu0
    %v2796 = vadd.f32 0.0, %v2795
    %v2797 = vpop.f32.mrb[0].mxu0
    %2798 = vmatprep.mubr.f32.mxu0 %v2654
    %2799 = vmatmul.mubr.f32.gmra.mrb[0].mxu0 %v2643
    %v2800 = vpop.f32.mrb[0].mxu0
    %v2801 = vadd.f32 0.0, %v2800
    %v2802 = vpop.f32.mrb[0].mxu0
    %2803 = vmatprep.mubr.f32.mxu0 %v2655
    %2804 = vmatmul.mubr.f32.gmra.mrb[0].mxu0 %v2644
    %v2805 = vpop.f32.mrb[0].mxu0
    %v2806 = vadd.f32 0.0, %v2805
    %v2807 = vpop.f32.mrb[0].mxu0
    %2808 = vmatprep.mubr.f32.mxu0 %v2656
    %2809 = vmatmul.mubr.f32.gmra.mrb[0].mxu0 %v2645
    %v2810 = vpop.f32.mrb[0].mxu0
    %v2811 = vadd.f32 0.0, %v2810
    %v2812 = vpop.f32.mrb[0].mxu0
    %2813 = vmatprep.mubr.f32.mxu0 %v2657
    %2814 = vmatmul.mubr.f32.gmra.mrb[0].mxu0 %v2646
    %v2815 = vpop.f32.mrb[0].mxu0
    %v2816 = vadd.f32 0.0, %v2815
    %v2817 = vpop.f32.mrb[0].mxu0
    %2818 = vdwg.mxu0
    %2819 = vmatprep.subr.bf16.mxu0 0
    %2820 = vmatpush1.bf16.msra.mxu0 %v2687
    %2821 = vmatprep.subr.bf16.mxu0 0
    %2822 = vmatpush1.bf16.msra.mxu0 %v2688
    %2823 = vmatprep.subr.bf16.mxu0 0
    %2824 = vmatpush1.bf16.msra.mxu0 %v2689
    %2825 = vmatprep.subr.bf16.mxu0 0
    %2826 = vmatpush1.bf16.msra.mxu0 %v2690
    %2827 = vmatprep.subr.bf16.mxu0 0
    %2828 = vmatpush1.bf16.msra.mxu0 %v2691
    %2829 = vmatprep.subr.bf16.mxu0 0
    %2830 = vmatpush1.bf16.msra.mxu0 %v2692
    %2831 = vmatprep.subr.bf16.mxu0 0
    %2832 = vmatpush1.bf16.msra.mxu0 %v2693
    %2833 = vmatprep.subr.bf16.mxu0 0
    %2834 = vmatpush1.bf16.msra.mxu0 %v2694
    %2835 = vmatprep.subr.bf16.mxu0 0
    %2836 = vmatpush1.bf16.msra.mxu0 %v2695
    %2837 = vmatprep.subr.bf16.mxu0 0
    %2838 = vmatpush1.bf16.msra.mxu0 %v2696
    %2839 = vmatprep.subr.bf16.mxu0 0
    %2840 = vmatpush1.bf16.msra.mxu0 %v2697
    %2841 = vmatprep.subr.bf16.mxu0 0
    %2842 = vmatpush1.bf16.msra.mxu0 %v2698
    %2843 = vmatprep.subr.bf16.mxu0 0
    %2844 = vmatpush1.bf16.msra.mxu0 %v2699
    %2845 = vmatprep.subr.bf16.mxu0 0
    %2846 = vmatpush1.bf16.msra.mxu0 %v2700
    %2847 = vmatprep.subr.bf16.mxu0 0
    %2848 = vmatpush1.bf16.msra.mxu0 %v2701
    %2849 = vmatprep.subr.bf16.mxu0 0
    %2850 = vmatpush1.bf16.msra.mxu0 %v2702
    %2851 = vmatprep.mubr.f32.mxu0 %v2660
    %2852 = vmatmul.mubr.f32.gmra.mrb[0].mxu0 %v2637
    %v2853 = vpop.f32.mrb[0].mxu0
    %v2854 = vadd.f32 %v2766, %v2853
    %v2855 = vpop.f32.mrb[0].mxu0
    %2856 = vmatprep.mubr.f32.mxu0 %v2661
    %2857 = vmatmul.mubr.f32.gmra.mrb[0].mxu0 %v2638
    %v2858 = vpop.f32.mrb[0].mxu0
    %v2859 = vadd.f32 %v2771, %v2858
    %v2860 = vpop.f32.mrb[0].mxu0
    %2861 = vmatprep.mubr.f32.mxu0 %v2662
    %2862 = vmatmul.mubr.f32.gmra.mrb[0].mxu0 %v2639
    %v2863 = vpop.f32.mrb[0].mxu0
    %v2864 = vadd.f32 %v2776, %v2863
    %v2865 = vpop.f32.mrb[0].mxu0
    %2866 = vmatprep.mubr.f32.mxu0 %v2663
    %2867 = vmatmul.mubr.f32.gmra.mrb[0].mxu0 %v2640
    %v2868 = vpop.f32.mrb[0].mxu0
    %v2869 = vadd.f32 %v2781, %v2868
    %v2870 = vpop.f32.mrb[0].mxu0
    %2871 = vmatprep.mubr.f32.mxu0 %v2664
    %2872 = vmatmul.mubr.f32.gmra.mrb[0].mxu0 %v2641
    %v2873 = vpop.f32.mrb[0].mxu0
    %v2874 = vadd.f32 %v2786, %v2873
    %v2875 = vpop.f32.mrb[0].mxu0
    %2876 = vmatprep.mubr.f32.mxu0 %v2665
    %2877 = vmatmul.mubr.f32.gmra.mrb[0].mxu0 %v2642
    %v2878 = vpop.f32.mrb[0].mxu0
    %v2879 = vadd.f32 %v2791, %v2878
    %v2880 = vpop.f32.mrb[0].mxu0
    %2881 = vmatprep.mubr.f32.mxu0 %v2666
    %2882 = vmatmul.mubr.f32.gmra.mrb[0].mxu0 %v2643
    %v2883 = vpop.f32.mrb[0].mxu0
    %v2884 = vadd.f32 %v2796, %v2883
    %v2885 = vpop.f32.mrb[0].mxu0
    %2886 = vmatprep.mubr.f32.mxu0 %v2667
    %2887 = vmatmul.mubr.f32.gmra.mrb[0].mxu0 %v2644
    %v2888 = vpop.f32.mrb[0].mxu0
    %v2889 = vadd.f32 %v2801, %v2888
    %v2890 = vpop.f32.mrb[0].mxu0
    %2891 = vmatprep.mubr.f32.mxu0 %v2668
    %2892 = vmatmul.mubr.f32.gmra.mrb[0].mxu0 %v2645
    %v2893 = vpop.f32.mrb[0].mxu0
    %v2894 = vadd.f32 %v2806, %v2893
    %v2895 = vpop.f32.mrb[0].mxu0
    %2896 = vmatprep.mubr.f32.mxu0 %v2669
    %2897 = vmatmul.mubr.f32.gmra.mrb[0].mxu0 %v2658
    %v2898 = vpop.f32.mrb[0].mxu0
    %v2899 = vadd.f32 %v2811, %v2898
    %v2900 = vpop.f32.mrb[0].mxu0
    %2901 = vmatprep.mubr.f32.mxu0 %v2670
    %2902 = vmatmul.mubr.f32.gmra.mrb[0].mxu0 %v2659
    %v2903 = vpop.f32.mrb[0].mxu0
    %v2904 = vadd.f32 %v2816, %v2903
    %v2905 = vpop.f32.mrb[0].mxu0
    %2906 = vdwg.mxu0
    %2907 = vmatprep.subr.bf16.mxu0 0
    %2908 = vmatpush1.bf16.msra.mxu0 %v2703
    %2909 = vmatprep.subr.bf16.mxu0 0
    %2910 = vmatpush1.bf16.msra.mxu0 %v2704
    %2911 = vmatprep.subr.bf16.mxu0 0
    %2912 = vmatpush1.bf16.msra.mxu0 %v2705
    %2913 = vmatprep.subr.bf16.mxu0 0
    %2914 = vmatpush1.bf16.msra.mxu0 %v2706
    %2915 = vmatprep.subr.bf16.mxu0 0
    %2916 = vmatpush1.bf16.msra.mxu0 0
    %2917 = vmatprep.subr.bf16.mxu0 0
    %2918 = vmatpush1.bf16.msra.mxu0 0
    %2919 = vmatprep.subr.bf16.mxu0 0
    %2920 = vmatpush1.bf16.msra.mxu0 0
    %2921 = vmatprep.subr.bf16.mxu0 0
    %2922 = vmatpush1.bf16.msra.mxu0 0
    %2923 = vmatprep.subr.bf16.mxu0 0
    %2924 = vmatpush1.bf16.msra.mxu0 0
    %2925 = vmatprep.subr.bf16.mxu0 0
    %2926 = vmatpush1.bf16.msra.mxu0 0
    %2927 = vmatprep.subr.bf16.mxu0 0
    %2928 = vmatpush1.bf16.msra.mxu0 0
    %2929 = vmatprep.subr.bf16.mxu0 0
    %2930 = vmatpush1.bf16.msra.mxu0 0
    %2931 = vmatprep.subr.bf16.mxu0 0
    %2932 = vmatpush1.bf16.msra.mxu0 0
    %2933 = vmatprep.subr.bf16.mxu0 0
    %2934 = vmatpush1.bf16.msra.mxu0 0
    %2935 = vmatprep.subr.bf16.mxu0 0
    %2936 = vmatpush1.bf16.msra.mxu0 0
    %2937 = vmatprep.subr.bf16.mxu0 0
    %2938 = vmatpush1.bf16.msra.mxu0 0
    %2939 = vmatprep.mubr.f32.mxu0 0.0
    %2940 = vmatmul.mubr.f32.gmra.mrb[0].mxu0 %v2709
    %v2941 = vpop.f32.mrb[0].mxu0
    %v2942 = vadd.f32 %v2854, %v2941
    %v2943 = vpop.f32.mrb[0].mxu0
    %2944 = vmatprep.mubr.f32.mxu0 0.0
    %2945 = vmatmul.mubr.f32.gmra.mrb[0].mxu0 %v2711
    %v2946 = vpop.f32.mrb[0].mxu0
    %v2947 = vadd.f32 %v2859, %v2946
    %v2948 = vpop.f32.mrb[0].mxu0
    %2949 = vmatprep.mubr.f32.mxu0 0.0
    %2950 = vmatmul.mubr.f32.gmra.mrb[0].mxu0 %v2713
    %v2951 = vpop.f32.mrb[0].mxu0
    %v2952 = vadd.f32 %v2864, %v2951
    %v2953 = vpop.f32.mrb[0].mxu0
    %2954 = vmatprep.mubr.f32.mxu0 0.0
    %2955 = vmatmul.mubr.f32.gmra.mrb[0].mxu0 %v2715
    %v2956 = vpop.f32.mrb[0].mxu0
    %v2957 = vadd.f32 %v2869, %v2956
    %v2958 = vpop.f32.mrb[0].mxu0
    %2959 = vmatprep.mubr.f32.mxu0 0.0
    %2960 = vmatmul.mubr.f32.gmra.mrb[0].mxu0 %v2717
    %v2961 = vpop.f32.mrb[0].mxu0
    %v2962 = vadd.f32 %v2874, %v2961
    %v2963 = vpop.f32.mrb[0].mxu0
    %2964 = vmatprep.mubr.f32.mxu0 0.0
    %2965 = vmatmul.mubr.f32.gmra.mrb[0].mxu0 %v2719
    %v2966 = vpop.f32.mrb[0].mxu0
    %v2967 = vadd.f32 %v2879, %v2966
    %v2968 = vpop.f32.mrb[0].mxu0
    %2969 = vmatprep.mubr.f32.mxu0 0.0
    %2970 = vmatmul.mubr.f32.gmra.mrb[0].mxu0 %v2721
    %v2971 = vpop.f32.mrb[0].mxu0
    %v2972 = vadd.f32 %v2884, %v2971
    %v2973 = vpop.f32.mrb[0].mxu0
    %2974 = vmatprep.mubr.f32.mxu0 0.0
    %2975 = vmatmul.mubr.f32.gmra.mrb[0].mxu0 %v2723
    %v2976 = vpop.f32.mrb[0].mxu0
    %v2977 = vadd.f32 %v2889, %v2976
    %v2978 = vpop.f32.mrb[0].mxu0
    %2979 = vmatprep.mubr.f32.mxu0 0.0
    %2980 = vmatmul.mubr.f32.gmra.mrb[0].mxu0 %v2725
    %v2981 = vpop.f32.mrb[0].mxu0
    %v2982 = vadd.f32 %v2894, %v2981
    %v2983 = vpop.f32.mrb[0].mxu0
    %2984 = vmatprep.mubr.f32.mxu0 0.0
    %2985 = vmatmul.mubr.f32.gmra.mrb[0].mxu0 %v2727
    %v2986 = vpop.f32.mrb[0].mxu0
    %v2987 = vadd.f32 %v2899, %v2986
    %v2988 = vpop.f32.mrb[0].mxu0
    %2989 = vmatprep.mubr.f32.mxu0 0.0
    %2990 = vmatmul.mubr.f32.gmra.mrb[0].mxu0 %v2729
    %v2991 = vpop.f32.mrb[0].mxu0
    %v2992 = vadd.f32 %v2904, %v2991
    %v2993 = vpop.f32.mrb[0].mxu0
    %2994 = vdwg.mxu0
    %vm2995 = vcmask 670720
    %v2997 = vsel %vm2995, %v2708, 0
    %v3000 = vsel %vm749, %v2992, 0
    %3002 = vmatprep.subr.mxu0 0.0
    %3003 = vmatpush1.msra.mxu0 %v2942
    %3004 = vmatprep.subr.mxu0 0.0
    %3005 = vmatpush1.msra.mxu0 %v2947
    %3006 = vmatprep.subr.mxu0 0.0
    %3007 = vmatpush1.msra.mxu0 %v2952
    %3008 = vmatprep.subr.mxu0 0.0
    %3009 = vmatpush1.msra.mxu0 %v2957
    %3010 = vmatprep.subr.mxu0 0.0
    %3011 = vmatpush1.msra.mxu0 %v2962
    %3012 = vmatprep.subr.mxu0 0.0
    %3013 = vmatpush1.msra.mxu0 %v2967
    %3014 = vmatprep.subr.mxu0 0.0
    %3015 = vmatpush1.msra.mxu0 %v2972
    %3016 = vmatprep.subr.mxu0 0.0
    %3017 = vmatpush1.msra.mxu0 %v2977
    %3018 = vmatprep.subr.mxu0 0.0
    %3019 = vmatpush1.msra.mxu0 %v2982
    %3020 = vmatprep.subr.mxu0 0.0
    %3021 = vmatpush1.msra.mxu0 %v2987
    %3022 = vmatprep.subr.mxu0 0.0
    %3023 = vmatpush1.msra.mxu0 %v3000
    %3024 = vmatprep.subr.mxu0 0.0
    %3025 = vmatpush1.msra.mxu0 0.0
    %3026 = vmatprep.subr.mxu0 0.0
    %3027 = vmatpush1.msra.mxu0 0.0
    %3028 = vmatprep.subr.mxu0 0.0
    %3029 = vmatpush1.msra.mxu0 0.0
    %3030 = vmatprep.subr.mxu0 0.0
    %3031 = vmatpush1.msra.mxu0 0.0
    %3032 = vmatprep.subr.mxu0 0.0
    %3033 = vmatpush1.msra.mxu0 0.0
    %3034 = vmatprep.subr.mxu0 0.0
    %3035 = vmatpush1.msra.mxu0 0.0
    %3036 = vmatprep.subr.mxu0 0.0
    %3037 = vmatpush1.msra.mxu0 0.0
    %3038 = vmatprep.subr.mxu0 0.0
    %3039 = vmatpush1.msra.mxu0 0.0
    %3040 = vmatprep.subr.mxu0 0.0
    %3041 = vmatpush1.msra.mxu0 0.0
    %3042 = vmatprep.subr.mxu0 0.0
    %3043 = vmatpush1.msra.mxu0 0.0
    %3044 = vmatprep.subr.mxu0 0.0
    %3045 = vmatpush1.msra.mxu0 0.0
    %3046 = vmatprep.subr.mxu0 0.0
    %3047 = vmatpush1.msra.mxu0 0.0
    %3048 = vmatprep.subr.mxu0 0.0
    %3049 = vmatpush1.msra.mxu0 0.0
    %3050 = vmatprep.subr.mxu0 0.0
    %3051 = vmatpush1.msra.mxu0 0.0
    %3052 = vmatprep.subr.mxu0 0.0
    %3053 = vmatpush1.msra.mxu0 0.0
    %3054 = vmatprep.subr.mxu0 0.0
    %3055 = vmatpush1.msra.mxu0 0.0
    %3056 = vmatprep.subr.mxu0 0.0
    %3057 = vmatpush1.msra.mxu0 0.0
    %3058 = vmatprep.subr.mxu0 0.0
    %3059 = vmatpush1.msra.mxu0 0.0
    %3060 = vmatprep.subr.mxu0 0.0
    %3061 = vmatpush1.msra.mxu0 0.0
    %3062 = vmatprep.subr.mxu0 0.0
    %3063 = vmatpush1.msra.mxu0 0.0
    %3064 = vmatprep.subr.mxu0 0.0
    %3065 = vmatpush1.msra.mxu0 0.0
    %3066 = vmatprep.mubr.f32.mxu0 0.0
    %3067 = vmatmul.mubr.f32.gmra.mrb[0].mxu0 %v2997
    %v3068 = vpop.f32.mrb[0].mxu0
    %v3069 = vadd.f32 0.0, %v3068
    %v3070 = vpop.f32.mrb[0].mxu0
    %3071 = vdwg.mxu0
    %v3072 = vmul.f32 %v3069, 0.02
    %v3073 = vlaneseq
    %v3074 = vshrl.u32 %v3073, 7
    %v3075 = vsub.s32 0, %v3074
    %v3076 = vrot.slane %v3072, %v3075
    %v3077 = vsub.f32 %v2942, %v3076
    %v3078 = vsub.f32 %v2947, %v3076
    %v3079 = vsub.f32 %v2952, %v3076
    %v3080 = vsub.f32 %v2957, %v3076
    %v3081 = vsub.f32 %v2962, %v3076
    %v3082 = vsub.f32 %v2967, %v3076
    %v3083 = vsub.f32 %v2972, %v3076
    %v3084 = vsub.f32 %v2977, %v3076
    %v3085 = vsub.f32 %v2982, %v3076
    %v3086 = vsub.f32 %v2987, %v3076
    %v3087 = vsub.f32 %v2992, %v3076
    %v3088 = vmul.f32 %v3077, %v3077
    %v3089 = vmul.f32 %v3078, %v3078
    %v3090 = vmul.f32 %v3079, %v3079
    %v3091 = vmul.f32 %v3080, %v3080
    %v3092 = vmul.f32 %v3081, %v3081
    %v3093 = vmul.f32 %v3082, %v3082
    %v3094 = vmul.f32 %v3083, %v3083
    %v3095 = vmul.f32 %v3084, %v3084
    %v3096 = vmul.f32 %v3085, %v3085
    %v3097 = vmul.f32 %v3086, %v3086
    %v3098 = vmul.f32 %v3087, %v3087
    %v3100 = vsel %vm749, %v3098, 0
    %3102 = vmatprep.subr.mxu0 0.0
    %3103 = vmatpush1.msra.mxu0 %v3088
    %3104 = vmatprep.subr.mxu0 0.0
    %3105 = vmatpush1.msra.mxu0 %v3089
    %3106 = vmatprep.subr.mxu0 0.0
    %3107 = vmatpush1.msra.mxu0 %v3090
    %3108 = vmatprep.subr.mxu0 0.0
    %3109 = vmatpush1.msra.mxu0 %v3091
    %3110 = vmatprep.subr.mxu0 0.0
    %3111 = vmatpush1.msra.mxu0 %v3092
    %3112 = vmatprep.subr.mxu0 0.0
    %3113 = vmatpush1.msra.mxu0 %v3093
    %3114 = vmatprep.subr.mxu0 0.0
    %3115 = vmatpush1.msra.mxu0 %v3094
    %3116 = vmatprep.subr.mxu0 0.0
    %3117 = vmatpush1.msra.mxu0 %v3095
    %3118 = vmatprep.subr.mxu0 0.0
    %3119 = vmatpush1.msra.mxu0 %v3096
    %3120 = vmatprep.subr.mxu0 0.0
    %3121 = vmatpush1.msra.mxu0 %v3097
    %3122 = vmatprep.subr.mxu0 0.0
    %3123 = vmatpush1.msra.mxu0 %v3100
    %3124 = vmatprep.subr.mxu0 0.0
    %3125 = vmatpush1.msra.mxu0 0.0
    %3126 = vmatprep.subr.mxu0 0.0
    %3127 = vmatpush1.msra.mxu0 0.0
    %3128 = vmatprep.subr.mxu0 0.0
    %3129 = vmatpush1.msra.mxu0 0.0
    %3130 = vmatprep.subr.mxu0 0.0
    %3131 = vmatpush1.msra.mxu0 0.0
    %3132 = vmatprep.subr.mxu0 0.0
    %3133 = vmatpush1.msra.mxu0 0.0
    %3134 = vmatprep.subr.mxu0 0.0
    %3135 = vmatpush1.msra.mxu0 0.0
    %3136 = vmatprep.subr.mxu0 0.0
    %3137 = vmatpush1.msra.mxu0 0.0
    %3138 = vmatprep.subr.mxu0 0.0
    %3139 = vmatpush1.msra.mxu0 0.0
    %3140 = vmatprep.subr.mxu0 0.0
    %3141 = vmatpush1.msra.mxu0 0.0
    %3142 = vmatprep.subr.mxu0 0.0
    %3143 = vmatpush1.msra.mxu0 0.0
    %3144 = vmatprep.subr.mxu0 0.0
    %3145 = vmatpush1.msra.mxu0 0.0
    %3146 = vmatprep.subr.mxu0 0.0
    %3147 = vmatpush1.msra.mxu0 0.0
    %3148 = vmatprep.subr.mxu0 0.0
    %3149 = vmatpush1.msra.mxu0 0.0
    %3150 = vmatprep.subr.mxu0 0.0
    %3151 = vmatpush1.msra.mxu0 0.0
    %3152 = vmatprep.subr.mxu0 0.0
    %3153 = vmatpush1.msra.mxu0 0.0
    %3154 = vmatprep.subr.mxu0 0.0
    %3155 = vmatpush1.msra.mxu0 0.0
    %3156 = vmatprep.subr.mxu0 0.0
    %3157 = vmatpush1.msra.mxu0 0.0
    %3158 = vmatprep.subr.mxu0 0.0
    %3159 = vmatpush1.msra.mxu0 0.0
    %3160 = vmatprep.subr.mxu0 0.0
    %3161 = vmatpush1.msra.mxu0 0.0
    %3162 = vmatprep.subr.mxu0 0.0
    %3163 = vmatpush1.msra.mxu0 0.0
    %3164 = vmatprep.subr.mxu0 0.0
    %3165 = vmatpush1.msra.mxu0 0.0
    %3166 = vmatprep.mubr.f32.mxu0 0.0
    %3167 = vmatmul.mubr.f32.gmra.mrb[0].mxu0 %v2997
    %v3168 = vpop.f32.mrb[0].mxu0
    %v3169 = vadd.f32 0.0, %v3168
    %v3170 = vpop.f32.mrb[0].mxu0
    %3171 = vdwg.mxu0
    %v3172 = vmul.f32 %v3169, 0.02
    %v3173 = vadd.f32 %v3172, 1e-05
    %v3174 = vrsqrt.pop %v3173
    %v3175 = vmul.f32 %v3174, %v2707
    %v3176 = vlaneseq
    %v3177 = vshrl.u32 %v3176, 7
    %v3178 = vsub.s32 0, %v3177
    %v3179 = vrot.slane %v3175, %v3178
    %v3180 = vmul.f32 %v3077, %v3179
    %v3181 = vmul.f32 %v3078, %v3179
    %v3182 = vmul.f32 %v3079, %v3179
    %v3183 = vmul.f32 %v3080, %v3179
    %v3184 = vmul.f32 %v3081, %v3179
    %v3185 = vmul.f32 %v3082, %v3179
    %v3186 = vmul.f32 %v3083, %v3179
    %v3187 = vmul.f32 %v3084, %v3179
    %v3188 = vmul.f32 %v3085, %v3179
    %v3189 = vmul.f32 %v3086, %v3179
    %v3190 = vmul.f32 %v3087, %v3179
    %v3191 = vlaneseq
    %v3192 = vshrl.u32 %v3191, 7
    %v3193 = vsub.s32 1, %v3192
    %v3194 = vrot.slane %v2707, %v3193
    %v3195 = vadd.f32 %v3180, %v3194
    %v3196 = vadd.f32 %v3181, %v3194
    %v3197 = vadd.f32 %v3182, %v3194
    %v3198 = vadd.f32 %v3183, %v3194
    %v3199 = vadd.f32 %v3184, %v3194
    %v3200 = vadd.f32 %v3185, %v3194
    %v3201 = vadd.f32 %v3186, %v3194
    %v3202 = vadd.f32 %v3187, %v3194
    %v3203 = vadd.f32 %v3188, %v3194
    %v3204 = vadd.f32 %v3189, %v3194
    %v3205 = vadd.f32 %v3190, %v3194
    %v3206 = vmax.f32 %v3195, 0.0
    %v3207 = vmax.f32 %v3196, 0.0
    %v3208 = vmax.f32 %v3197, 0.0
    %v3209 = vmax.f32 %v3198, 0.0
    %v3210 = vmax.f32 %v3199, 0.0
    %v3211 = vmax.f32 %v3200, 0.0
    %v3212 = vmax.f32 %v3201, 0.0
    %v3213 = vmax.f32 %v3202, 0.0
    %v3214 = vmax.f32 %v3203, 0.0
    %v3215 = vmax.f32 %v3204, 0.0
    %v3216 = vmax.f32 %v3205, 0.0
    %v3228 = vrot.slane %v3206, 1
    %v3229 = vrot.slane %v3207, 1
    %v3230 = vsel %vm1599, %v3228, %v3229
    %v3231 = vrot.slane %v3208, 1
    %v3232 = vsel %vm1599, %v3229, %v3231
    %v3233 = vrot.slane %v3209, 1
    %v3234 = vsel %vm1599, %v3231, %v3233
    %v3235 = vrot.slane %v3210, 1
    %v3236 = vsel %vm1599, %v3233, %v3235
    %v3237 = vrot.slane %v3211, 1
    %v3238 = vsel %vm1599, %v3235, %v3237
    %v3239 = vrot.slane %v3212, 1
    %v3240 = vsel %vm1599, %v3237, %v3239
    %v3241 = vrot.slane %v3213, 1
    %v3242 = vsel %vm1599, %v3239, %v3241
    %v3243 = vrot.slane %v3214, 1
    %v3244 = vsel %vm1599, %v3241, %v3243
    %v3245 = vrot.slane %v3215, 1
    %v3246 = vsel %vm1599, %v3243, %v3245
    %v3247 = vrot.slane %v3216, 1
    %v3248 = vsel %vm1599, %v3245, %v3247
    %v3260 = vmax.f32 %v3206, %v3230
    %v3261 = vmax.f32 %v3207, %v3232
    %v3262 = vmax.f32 %v3208, %v3234
    %v3263 = vmax.f32 %v3209, %v3236
    %v3264 = vmax.f32 %v3210, %v3238
    %v3265 = vmax.f32 %v3211, %v3240
    %v3266 = vmax.f32 %v3212, %v3242
    %v3267 = vmax.f32 %v3213, %v3244
    %v3268 = vmax.f32 %v3214, %v3246
    %v3269 = vmax.f32 %v3215, %v3248
    %v3270 = vmax.f32 %v3216, %v3247
    %v3282 = vrot.slane %v3260, 7
    %v3283 = vrot.slane %v3261, 7
    %v3284 = vsel %vm2186, %v3282, %v3283
    %v3285 = vrot.slane %v3262, 7
    %v3286 = vsel %vm2186, %v3283, %v3285
    %v3287 = vrot.slane %v3263, 7
    %v3288 = vsel %vm2186, %v3285, %v3287
    %v3289 = vrot.slane %v3264, 7
    %v3290 = vsel %vm2186, %v3287, %v3289
    %v3291 = vrot.slane %v3265, 7
    %v3292 = vsel %vm2186, %v3289, %v3291
    %v3293 = vrot.slane %v3266, 7
    %v3294 = vsel %vm2186, %v3291, %v3293
    %v3295 = vrot.slane %v3267, 7
    %v3296 = vsel %vm2186, %v3293, %v3295
    %v3297 = vrot.slane %v3268, 7
    %v3298 = vsel %vm2186, %v3295, %v3297
    %v3299 = vrot.slane %v3269, 7
    %v3300 = vsel %vm2186, %v3297, %v3299
    %v3301 = vrot.slane %v3270, 7
    %v3302 = vsel %vm2186, %v3299, %v3301
    %v3313 = vmax.f32 %v3260, %v3284
    %v3314 = vmax.f32 %v3261, %v3286
    %v3315 = vmax.f32 %v3262, %v3288
    %v3316 = vmax.f32 %v3263, %v3290
    %v3317 = vmax.f32 %v3264, %v3292
    %v3318 = vmax.f32 %v3265, %v3294
    %v3319 = vmax.f32 %v3266, %v3296
    %v3320 = vmax.f32 %v3267, %v3298
    %v3321 = vmax.f32 %v3268, %v3300
    %v3322 = vmax.f32 %v3269, %v3302
    %v3323 = vld [vmem:[%s6] sm:$0xf]
    %v3324 = vld [vmem:[%s6 + $0x4] sm:$0xf]
    %v3325 = vld [vmem:[%s6 + $0x8] sm:$0xf]
    %v3326 = vld [vmem:[%s6 + $0xc] sm:$0xf]
    %v3331 = vunpack.c.l.b16 %v3323
    %v3332 = vunpack.c.l.b16 %v3324
    %v3333 = vunpack.c.l.b16 %v3325
    %v3334 = vunpack.c.l.b16 %v3326
    %v3335 = vpack.c.b16 %v3332, %v3331
    %v3336 = vpack.c.b16 %v3334, %v3333
    %vm3337 = vcmask 605184
    %v3339 = vsel %vm3337, %v3335, 0
    %v3342 = vsel %vm3337, %v3336, 0
    %v3345 = vsel %vm749, %v3322, 0
    %3347 = vmatprep.subr.mxu0 0.0
    %3348 = vmatpush1.msra.mxu0 %v3313
    %3349 = vmatprep.subr.mxu0 0.0
    %3350 = vmatpush1.msra.mxu0 %v3314
    %3351 = vmatprep.subr.mxu0 0.0
    %3352 = vmatpush1.msra.mxu0 %v3315
    %3353 = vmatprep.subr.mxu0 0.0
    %3354 = vmatpush1.msra.mxu0 %v3316
    %3355 = vmatprep.subr.mxu0 0.0
    %3356 = vmatpush1.msra.mxu0 %v3317
    %3357 = vmatprep.subr.mxu0 0.0
    %3358 = vmatpush1.msra.mxu0 %v3318
    %3359 = vmatprep.subr.mxu0 0.0
    %3360 = vmatpush1.msra.mxu0 %v3319
    %3361 = vmatprep.subr.mxu0 0.0
    %3362 = vmatpush1.msra.mxu0 %v3320
    %3363 = vmatprep.subr.mxu0 0.0
    %3364 = vmatpush1.msra.mxu0 %v3321
    %3365 = vmatprep.subr.mxu0 0.0
    %3366 = vmatpush1.msra.mxu0 %v3345
    %3367 = vmatprep.subr.mxu0 0.0
    %3368 = vmatpush1.msra.mxu0 0.0
    %3369 = vmatprep.subr.mxu0 0.0
    %3370 = vmatpush1.msra.mxu0 0.0
    %3371 = vmatprep.subr.mxu0 0.0
    %3372 = vmatpush1.msra.mxu0 0.0
    %3373 = vmatprep.subr.mxu0 0.0
    %3374 = vmatpush1.msra.mxu0 0.0
    %3375 = vmatprep.subr.mxu0 0.0
    %3376 = vmatpush1.msra.mxu0 0.0
    %3377 = vmatprep.subr.mxu0 0.0
    %3378 = vmatpush1.msra.mxu0 0.0
    %3379 = vmatprep.subr.mxu0 0.0
    %3380 = vmatpush1.msra.mxu0 0.0
    %3381 = vmatprep.subr.mxu0 0.0
    %3382 = vmatpush1.msra.mxu0 0.0
    %3383 = vmatprep.subr.mxu0 0.0
    %3384 = vmatpush1.msra.mxu0 0.0
    %3385 = vmatprep.subr.mxu0 0.0
    %3386 = vmatpush1.msra.mxu0 0.0
    %3387 = vmatprep.subr.mxu0 0.0
    %3388 = vmatpush1.msra.mxu0 0.0
    %3389 = vmatprep.subr.mxu0 0.0
    %3390 = vmatpush1.msra.mxu0 0.0
    %3391 = vmatprep.subr.mxu0 0.0
    %3392 = vmatpush1.msra.mxu0 0.0
    %3393 = vmatprep.subr.mxu0 0.0
    %3394 = vmatpush1.msra.mxu0 0.0
    %3395 = vmatprep.subr.mxu0 0.0
    %3396 = vmatpush1.msra.mxu0 0.0
    %3397 = vmatprep.subr.mxu0 0.0
    %3398 = vmatpush1.msra.mxu0 0.0
    %3399 = vmatprep.subr.mxu0 0.0
    %3400 = vmatpush1.msra.mxu0 0.0
    %3401 = vmatprep.subr.mxu0 0.0
    %3402 = vmatpush1.msra.mxu0 0.0
    %3403 = vmatprep.subr.mxu0 0.0
    %3404 = vmatpush1.msra.mxu0 0.0
    %3405 = vmatprep.subr.mxu0 0.0
    %3406 = vmatpush1.msra.mxu0 0.0
    %3407 = vmatprep.subr.mxu0 0.0
    %3408 = vmatpush1.msra.mxu0 0.0
    %3409 = vmatprep.subr.mxu0 0.0
    %3410 = vmatpush1.msra.mxu0 0.0
    %3411 = vmatprep.mubr.bf16.mxu0 0
    %3412 = vmatmul.mubr.bf16.gmra.mrb[0].mxu0 %v3339
    %v3413 = vpop.f32.mrb[0].mxu0
    %v3414 = vadd.f32 0.0, %v3413
    %v3415 = vpop.f32.mrb[0].mxu0
    %v3416 = vpop.f32.mrb[0].mxu0
    %v3417 = vadd.f32 0.0, %v3416
    %v3418 = vpop.f32.mrb[0].mxu0
    %3419 = vmatprep.mubr.bf16.mxu0 0
    %3420 = vmatmul.mubr.bf16.gmra.mrb[0].mxu0 %v3342
    %v3421 = vpop.f32.mrb[0].mxu0
    %v3422 = vadd.f32 0.0, %v3421
    %v3423 = vpop.f32.mrb[0].mxu0
    %v3424 = vpop.f32.mrb[0].mxu0
    %v3425 = vadd.f32 0.0, %v3424
    %v3426 = vpop.f32.mrb[0].mxu0
    %3427 = vdwg.mxu0
    %s3428 = sshll.u32 %s2431, 4
    %3429 = dma.done %s253, %s3428
    %v3433 = vrot.slane %v3414, 1
    %v3434 = vrot.slane %v3417, 1
    %v3435 = vsel %vm1599, %v3433, %v3434
    %v3436 = vrot.slane %v3422, 1
    %v3437 = vsel %vm1599, %v3434, %v3436
    %3438 = vrot.lane.b32.xlu0 %v3435, 64
    %v3439 = vpop.permute.xlu0 %3438
    %3440 = vrot.lane.b32.xlu0 %v3437, 64
    %v3441 = vpop.permute.xlu0 %3440
    %3442 = vrot.lane.b32.xlu0 %v3436, 64
    %v3443 = vpop.permute.xlu0 %3442
    %v3447 = vrot.slane %v3414, 2
    %v3448 = vrot.slane %v3417, 2
    %v3449 = vsel %vm2499, %v3447, %v3448
    %v3450 = vrot.slane %v3422, 2
    %v3451 = vsel %vm2499, %v3448, %v3450
    %vm3456 = vcmask 1043456
    %v3457 = vrot.slane %v3414, 4
    %v3458 = vrot.slane %v3417, 4
    %v3459 = vsel %vm3456, %v3457, %v3458
    %v3460 = vrot.slane %v3422, 4
    %v3461 = vsel %vm3456, %v3458, %v3460
    %v3462 = vrot.slane %v3425, 4
    %v3463 = vsel %vm3456, %v3460, %v3462
    %3464 = vrot.lane.b32.xlu0 %v3459, 64
    %v3465 = vpop.permute.xlu0 %3464
    %3466 = vrot.lane.b32.xlu0 %v3461, 64
    %v3467 = vpop.permute.xlu0 %3466
    %3468 = vrot.lane.b32.xlu0 %v3463, 64
    %v3469 = vpop.permute.xlu0 %3468
    %vm3473 = vcmask 1042432
    %v3474 = vrot.slane %v3414, 5
    %v3475 = vrot.slane %v3417, 5
    %v3476 = vsel %vm3473, %v3474, %v3475
    %v3477 = vrot.slane %v3422, 5
    %v3478 = vsel %vm3473, %v3475, %v3477
    %v3479 = vrot.slane %v3425, 5
    %v3480 = vsel %vm3473, %v3477, %v3479
    %v3484 = vrot.slane %v3414, 6
    %v3485 = vrot.slane %v3417, 6
    %v3486 = vsel %vm749, %v3484, %v3485
    %v3487 = vrot.slane %v3422, 6
    %v3488 = vsel %vm749, %v3485, %v3487
    %v3489 = vrot.slane %v3425, 6
    %v3490 = vsel %vm749, %v3487, %v3489
    %3491 = vrot.lane.b32.xlu0 %v3486, 64
    %v3492 = vpop.permute.xlu0 %3491
    %3493 = vrot.lane.b32.xlu0 %v3488, 64
    %v3494 = vpop.permute.xlu0 %3493
    %3495 = vrot.lane.b32.xlu0 %v3490, 64
    %v3496 = vpop.permute.xlu0 %3495
    %v3500 = vrot.slane %v3425, 1
    %v3501 = vsel %vm1599, %v3436, %v3500
    %3502 = vrot.lane.b32.xlu0 %v3501, 64
    %v3503 = vpop.permute.xlu0 %3502
    %3504 = vrot.lane.b32.xlu0 %v3500, 64
    %v3505 = vpop.permute.xlu0 %3504
    %v3508 = vrot.slane %v3425, 2
    %v3509 = vsel %vm2499, %v3450, %v3508
    %v3510 = vsel %vm2635, %v3414, %v3439
    %v3511 = vsel %vm2635, %v3417, %v3441
    %v3512 = vsel %vm2635, %v3422, %v3443
    %v3513 = vsel %vm2635, %v3449, %v3465
    %v3514 = vsel %vm2635, %v3451, %v3467
    %v3515 = vsel %vm2635, %v3450, %v3469
    %v3516 = vsel %vm2635, %v3476, %v3492
    %v3517 = vsel %vm2635, %v3478, %v3494
    %v3518 = vsel %vm2635, %v3480, %v3496
    %v3519 = vsel %vm2635, %v3422, %v3503
    %v3520 = vsel %vm2635, %v3425, %v3505
    %v3521 = vld [vmem:[#allocation4] sm:$0xff]
    %v3522 = vld [vmem:[#allocation4 + $0x8] sm:$0xff]
    %v3523 = vld [vmem:[#allocation4 + $0x10] sm:$0xff]
    %v3524 = vld [vmem:[#allocation4 + $0x18] sm:$0xff]
    %v3525 = vld [vmem:[#allocation4 + $0x20] sm:$0xff]
    %v3526 = vld [vmem:[#allocation4 + $0x28] sm:$0xff]
    %v3527 = vld [vmem:[#allocation4 + $0x30] sm:$0xff]
    %v3528 = vld [vmem:[#allocation4 + $0x38] sm:$0xff]
    %v3529 = vld [vmem:[#allocation4 + $0x40] sm:$0xff]
    %v3530 = vld [vmem:[#allocation4 + $0x48] sm:$0xff]
    %v3531 = vld [vmem:[#allocation4 + $0x50] sm:$0xff]
    %v3532 = vld [vmem:[#allocation4 + $0x58] sm:$0xff]
    %v3533 = vld [vmem:[#allocation4 + $0x60] sm:$0xff]
    %v3534 = vld [vmem:[#allocation4 + $0x68] sm:$0xff]
    %v3535 = vld [vmem:[#allocation4 + $0x70] sm:$0xff]
    %v3536 = vld [vmem:[#allocation4 + $0x78] sm:$0xff]
    %v3537 = vld [vmem:[#allocation4 + $0x80] sm:$0xff]
    %v3538 = vld [vmem:[#allocation4 + $0x88] sm:$0xff]
    %v3539 = vld [vmem:[#allocation4 + $0x90] sm:$0xff]
    %v3540 = vld [vmem:[#allocation4 + $0x98] sm:$0xff]
    %v3541 = vld [vmem:[#allocation4 + $0xa0] sm:$0xff]
    %v3542 = vld [vmem:[#allocation4 + $0xa8] sm:$0xff]
    %v3543 = vld [vmem:[#allocation4 + $0xb0] sm:$0xff]
    %v3544 = vld [vmem:[#allocation4 + $0xb8] sm:$0xff]
    %v3545 = vld [vmem:[#allocation4 + $0xc0] sm:$0xff]
    %v3546 = vld [vmem:[#allocation4 + $0xc8] sm:$0xff]
    %v3547 = vld [vmem:[#allocation4 + $0xd0] sm:$0xff]
    %v3548 = vld [vmem:[#allocation4 + $0xd8] sm:$0xff]
    %v3549 = vld [vmem:[#allocation4 + $0xe0] sm:$0xff]
    %v3550 = vld [vmem:[#allocation4 + $0xe8] sm:$0xff]
    %v3551 = vld [vmem:[#allocation4 + $0xf0] sm:$0xff]
    %v3552 = vld [vmem:[#allocation4 + $0xf8] sm:$0xff]
    %v3553 = vld [vmem:[#allocation4 + $0x100] sm:$0xff]
    %v3554 = vld [vmem:[#allocation4 + $0x108] sm:$0xff]
    %v3555 = vld [vmem:[#allocation4 + $0x110] sm:$0xff]
    %v3556 = vld [vmem:[#allocation4 + $0x118] sm:$0xff]
    %v3557 = vld [vmem:[%s7] sm:$0x3]
    %v3558 = vld [vmem:[%s8] sm:$0x1]
    %v3559 = vsel %vm2635, %v3451, 0
    %v3561 = vsel %vm2635, %v3509, 0
    %v3563 = vsel %vm2635, %v3508, 0
    %3565 = vmatprep.subr.bf16.mxu0 0
    %3566 = vmatpush1.bf16.msra.mxu0 %v3521
    %3567 = vmatprep.subr.bf16.mxu0 0
    %3568 = vmatpush1.bf16.msra.mxu0 %v3522
    %3569 = vmatprep.subr.bf16.mxu0 0
    %3570 = vmatpush1.bf16.msra.mxu0 %v3523
    %3571 = vmatprep.subr.bf16.mxu0 0
    %3572 = vmatpush1.bf16.msra.mxu0 %v3524
    %3573 = vmatprep.subr.bf16.mxu0 0
    %3574 = vmatpush1.bf16.msra.mxu0 %v3525
    %3575 = vmatprep.subr.bf16.mxu0 0
    %3576 = vmatpush1.bf16.msra.mxu0 %v3526
    %3577 = vmatprep.subr.bf16.mxu0 0
    %3578 = vmatpush1.bf16.msra.mxu0 %v3527
    %3579 = vmatprep.subr.bf16.mxu0 0
    %3580 = vmatpush1.bf16.msra.mxu0 %v3528
    %3581 = vmatprep.subr.bf16.mxu0 0
    %3582 = vmatpush1.bf16.msra.mxu0 %v3529
    %3583 = vmatprep.subr.bf16.mxu0 0
    %3584 = vmatpush1.bf16.msra.mxu0 %v3530
    %3585 = vmatprep.subr.bf16.mxu0 0
    %3586 = vmatpush1.bf16.msra.mxu0 %v3531
    %3587 = vmatprep.subr.bf16.mxu0 0
    %3588 = vmatpush1.bf16.msra.mxu0 %v3532
    %3589 = vmatprep.subr.bf16.mxu0 0
    %3590 = vmatpush1.bf16.msra.mxu0 %v3533
    %3591 = vmatprep.subr.bf16.mxu0 0
    %3592 = vmatpush1.bf16.msra.mxu0 %v3534
    %3593 = vmatprep.subr.bf16.mxu0 0
    %3594 = vmatpush1.bf16.msra.mxu0 %v3535
    %3595 = vmatprep.subr.bf16.mxu0 0
    %3596 = vmatpush1.bf16.msra.mxu0 %v3536
    %3597 = vmatprep.mubr.f32.mxu0 %v3513
    %3598 = vmatmul.mubr.f32.gmra.mrb[0].mxu0 %v3510
    %v3599 = vpop.f32.mrb[0].mxu0
    %v3600 = vadd.f32 0.0, %v3599
    %v3601 = vpop.f32.mrb[0].mxu0
    %3602 = vmatprep.mubr.f32.mxu0 %v3514
    %3603 = vmatmul.mubr.f32.gmra.mrb[0].mxu0 %v3511
    %v3604 = vpop.f32.mrb[0].mxu0
    %v3605 = vadd.f32 0.0, %v3604
    %v3606 = vpop.f32.mrb[0].mxu0
    %3607 = vmatprep.mubr.f32.mxu0 %v3515
    %3608 = vmatmul.mubr.f32.gmra.mrb[0].mxu0 %v3512
    %v3609 = vpop.f32.mrb[0].mxu0
    %v3610 = vadd.f32 0.0, %v3609
    %v3611 = vpop.f32.mrb[0].mxu0
    %3612 = vdwg.mxu0
    %3613 = vmatprep.subr.bf16.mxu0 0
    %3614 = vmatpush1.bf16.msra.mxu0 %v3537
    %3615 = vmatprep.subr.bf16.mxu0 0
    %3616 = vmatpush1.bf16.msra.mxu0 %v3538
    %3617 = vmatprep.subr.bf16.mxu0 0
    %3618 = vmatpush1.bf16.msra.mxu0 %v3539
    %3619 = vmatprep.subr.bf16.mxu0 0
    %3620 = vmatpush1.bf16.msra.mxu0 %v3540
    %3621 = vmatprep.subr.bf16.mxu0 0
    %3622 = vmatpush1.bf16.msra.mxu0 %v3541
    %3623 = vmatprep.subr.bf16.mxu0 0
    %3624 = vmatpush1.bf16.msra.mxu0 %v3542
    %3625 = vmatprep.subr.bf16.mxu0 0
    %3626 = vmatpush1.bf16.msra.mxu0 %v3543
    %3627 = vmatprep.subr.bf16.mxu0 0
    %3628 = vmatpush1.bf16.msra.mxu0 %v3544
    %3629 = vmatprep.subr.bf16.mxu0 0
    %3630 = vmatpush1.bf16.msra.mxu0 %v3545
    %3631 = vmatprep.subr.bf16.mxu0 0
    %3632 = vmatpush1.bf16.msra.mxu0 %v3546
    %3633 = vmatprep.subr.bf16.mxu0 0
    %3634 = vmatpush1.bf16.msra.mxu0 %v3547
    %3635 = vmatprep.subr.bf16.mxu0 0
    %3636 = vmatpush1.bf16.msra.mxu0 %v3548
    %3637 = vmatprep.subr.bf16.mxu0 0
    %3638 = vmatpush1.bf16.msra.mxu0 %v3549
    %3639 = vmatprep.subr.bf16.mxu0 0
    %3640 = vmatpush1.bf16.msra.mxu0 %v3550
    %3641 = vmatprep.subr.bf16.mxu0 0
    %3642 = vmatpush1.bf16.msra.mxu0 %v3551
    %3643 = vmatprep.subr.bf16.mxu0 0
    %3644 = vmatpush1.bf16.msra.mxu0 %v3552
    %3645 = vmatprep.mubr.f32.mxu0 %v3511
    %3646 = vmatmul.mubr.f32.gmra.mrb[0].mxu0 %v3516
    %v3647 = vpop.f32.mrb[0].mxu0
    %v3648 = vadd.f32 %v3600, %v3647
    %v3649 = vpop.f32.mrb[0].mxu0
    %3650 = vmatprep.mubr.f32.mxu0 %v3519
    %3651 = vmatmul.mubr.f32.gmra.mrb[0].mxu0 %v3517
    %v3652 = vpop.f32.mrb[0].mxu0
    %v3653 = vadd.f32 %v3605, %v3652
    %v3654 = vpop.f32.mrb[0].mxu0
    %3655 = vmatprep.mubr.f32.mxu0 %v3520
    %3656 = vmatmul.mubr.f32.gmra.mrb[0].mxu0 %v3518
    %v3657 = vpop.f32.mrb[0].mxu0
    %v3658 = vadd.f32 %v3610, %v3657
    %v3659 = vpop.f32.mrb[0].mxu0
    %3660 = vdwg.mxu0
    %3661 = vmatprep.subr.bf16.mxu0 0
    %3662 = vmatpush1.bf16.msra.mxu0 %v3553
    %3663 = vmatprep.subr.bf16.mxu0 0
    %3664 = vmatpush1.bf16.msra.mxu0 %v3554
    %3665 = vmatprep.subr.bf16.mxu0 0
    %3666 = vmatpush1.bf16.msra.mxu0 %v3555
    %3667 = vmatprep.subr.bf16.mxu0 0
    %3668 = vmatpush1.bf16.msra.mxu0 %v3556
    %3669 = vmatprep.subr.bf16.mxu0 0
    %3670 = vmatpush1.bf16.msra.mxu0 0
    %3671 = vmatprep.subr.bf16.mxu0 0
    %3672 = vmatpush1.bf16.msra.mxu0 0
    %3673 = vmatprep.subr.bf16.mxu0 0
    %3674 = vmatpush1.bf16.msra.mxu0 0
    %3675 = vmatprep.subr.bf16.mxu0 0
    %3676 = vmatpush1.bf16.msra.mxu0 0
    %3677 = vmatprep.subr.bf16.mxu0 0
    %3678 = vmatpush1.bf16.msra.mxu0 0
    %3679 = vmatprep.subr.bf16.mxu0 0
    %3680 = vmatpush1.bf16.msra.mxu0 0
    %3681 = vmatprep.subr.bf16.mxu0 0
    %3682 = vmatpush1.bf16.msra.mxu0 0
    %3683 = vmatprep.subr.bf16.mxu0 0
    %3684 = vmatpush1.bf16.msra.mxu0 0
    %3685 = vmatprep.subr.bf16.mxu0 0
    %3686 = vmatpush1.bf16.msra.mxu0 0
    %3687 = vmatprep.subr.bf16.mxu0 0
    %3688 = vmatpush1.bf16.msra.mxu0 0
    %3689 = vmatprep.subr.bf16.mxu0 0
    %3690 = vmatpush1.bf16.msra.mxu0 0
    %3691 = vmatprep.subr.bf16.mxu0 0
    %3692 = vmatpush1.bf16.msra.mxu0 0
    %3693 = vmatprep.mubr.f32.mxu0 0.0
    %3694 = vmatmul.mubr.f32.gmra.mrb[0].mxu0 %v3559
    %v3695 = vpop.f32.mrb[0].mxu0
    %v3696 = vadd.f32 %v3648, %v3695
    %v3697 = vpop.f32.mrb[0].mxu0
    %3698 = vmatprep.mubr.f32.mxu0 0.0
    %3699 = vmatmul.mubr.f32.gmra.mrb[0].mxu0 %v3561
    %v3700 = vpop.f32.mrb[0].mxu0
    %v3701 = vadd.f32 %v3653, %v3700
    %v3702 = vpop.f32.mrb[0].mxu0
    %3703 = vmatprep.mubr.f32.mxu0 0.0
    %3704 = vmatmul.mubr.f32.gmra.mrb[0].mxu0 %v3563
    %v3705 = vpop.f32.mrb[0].mxu0
    %v3706 = vadd.f32 %v3658, %v3705
    %v3707 = vpop.f32.mrb[0].mxu0
    %3708 = vdwg.mxu0
    %vm3709 = vcmask 179200
    %v3711 = vsel %vm3709, %v3558, 0
    %v3714 = vsel %vm2499, %v3706, 0
    %3716 = vmatprep.subr.mxu0 0.0
    %3717 = vmatpush1.msra.mxu0 %v3696
    %3718 = vmatprep.subr.mxu0 0.0
    %3719 = vmatpush1.msra.mxu0 %v3701
    %3720 = vmatprep.subr.mxu0 0.0
    %3721 = vmatpush1.msra.mxu0 %v3714
    %3722 = vmatprep.subr.mxu0 0.0
    %3723 = vmatpush1.msra.mxu0 0.0
    %3724 = vmatprep.subr.mxu0 0.0
    %3725 = vmatpush1.msra.mxu0 0.0
    %3726 = vmatprep.subr.mxu0 0.0
    %3727 = vmatpush1.msra.mxu0 0.0
    %3728 = vmatprep.subr.mxu0 0.0
    %3729 = vmatpush1.msra.mxu0 0.0
    %3730 = vmatprep.subr.mxu0 0.0
    %3731 = vmatpush1.msra.mxu0 0.0
    %3732 = vmatprep.subr.mxu0 0.0
    %3733 = vmatpush1.msra.mxu0 0.0
    %3734 = vmatprep.subr.mxu0 0.0
    %3735 = vmatpush1.msra.mxu0 0.0
    %3736 = vmatprep.subr.mxu0 0.0
    %3737 = vmatpush1.msra.mxu0 0.0
    %3738 = vmatprep.subr.mxu0 0.0
    %3739 = vmatpush1.msra.mxu0 0.0
    %3740 = vmatprep.subr.mxu0 0.0
    %3741 = vmatpush1.msra.mxu0 0.0
    %3742 = vmatprep.subr.mxu0 0.0
    %3743 = vmatpush1.msra.mxu0 0.0
    %3744 = vmatprep.subr.mxu0 0.0
    %3745 = vmatpush1.msra.mxu0 0.0
    %3746 = vmatprep.subr.mxu0 0.0
    %3747 = vmatpush1.msra.mxu0 0.0
    %3748 = vmatprep.subr.mxu0 0.0
    %3749 = vmatpush1.msra.mxu0 0.0
    %3750 = vmatprep.subr.mxu0 0.0
    %3751 = vmatpush1.msra.mxu0 0.0
    %3752 = vmatprep.subr.mxu0 0.0
    %3753 = vmatpush1.msra.mxu0 0.0
    %3754 = vmatprep.subr.mxu0 0.0
    %3755 = vmatpush1.msra.mxu0 0.0
    %3756 = vmatprep.subr.mxu0 0.0
    %3757 = vmatpush1.msra.mxu0 0.0
    %3758 = vmatprep.subr.mxu0 0.0
    %3759 = vmatpush1.msra.mxu0 0.0
    %3760 = vmatprep.subr.mxu0 0.0
    %3761 = vmatpush1.msra.mxu0 0.0
    %3762 = vmatprep.subr.mxu0 0.0
    %3763 = vmatpush1.msra.mxu0 0.0
    %3764 = vmatprep.subr.mxu0 0.0
    %3765 = vmatpush1.msra.mxu0 0.0
    %3766 = vmatprep.subr.mxu0 0.0
    %3767 = vmatpush1.msra.mxu0 0.0
    %3768 = vmatprep.subr.mxu0 0.0
    %3769 = vmatpush1.msra.mxu0 0.0
    %3770 = vmatprep.subr.mxu0 0.0
    %3771 = vmatpush1.msra.mxu0 0.0
    %3772 = vmatprep.subr.mxu0 0.0
    %3773 = vmatpush1.msra.mxu0 0.0
    %3774 = vmatprep.subr.mxu0 0.0
    %3775 = vmatpush1.msra.mxu0 0.0
    %3776 = vmatprep.subr.mxu0 0.0
    %3777 = vmatpush1.msra.mxu0 0.0
    %3778 = vmatprep.subr.mxu0 0.0
    %3779 = vmatpush1.msra.mxu0 0.0
    %3780 = vmatprep.mubr.f32.mxu0 0.0
    %3781 = vmatmul.mubr.f32.gmra.mrb[0].mxu0 %v3711
    %v3782 = vpop.f32.mrb[0].mxu0
    %v3783 = vadd.f32 0.0, %v3782
    %v3784 = vpop.f32.mrb[0].mxu0
    %3785 = vdwg.mxu0
    %v3786 = vmul.f32 %v3783, 0.125
    %v3787 = vlaneseq
    %v3788 = vshrl.u32 %v3787, 7
    %v3789 = vsub.s32 0, %v3788
    %v3790 = vrot.slane %v3786, %v3789
    %v3791 = vsub.f32 %v3696, %v3790
    %v3792 = vsub.f32 %v3701, %v3790
    %v3793 = vsub.f32 %v3706, %v3790
    %v3794 = vmul.f32 %v3791, %v3791
    %v3795 = vmul.f32 %v3792, %v3792
    %v3796 = vmul.f32 %v3793, %v3793
    %v3798 = vsel %vm2499, %v3796, 0
    %3800 = vmatprep.subr.mxu0 0.0
    %3801 = vmatpush1.msra.mxu0 %v3794
    %3802 = vmatprep.subr.mxu0 0.0
    %3803 = vmatpush1.msra.mxu0 %v3795
    %3804 = vmatprep.subr.mxu0 0.0
    %3805 = vmatpush1.msra.mxu0 %v3798
    %3806 = vmatprep.subr.mxu0 0.0
    %3807 = vmatpush1.msra.mxu0 0.0
    %3808 = vmatprep.subr.mxu0 0.0
    %3809 = vmatpush1.msra.mxu0 0.0
    %3810 = vmatprep.subr.mxu0 0.0
    %3811 = vmatpush1.msra.mxu0 0.0
    %3812 = vmatprep.subr.mxu0 0.0
    %3813 = vmatpush1.msra.mxu0 0.0
    %3814 = vmatprep.subr.mxu0 0.0
    %3815 = vmatpush1.msra.mxu0 0.0
    %3816 = vmatprep.subr.mxu0 0.0
    %3817 = vmatpush1.msra.mxu0 0.0
    %3818 = vmatprep.subr.mxu0 0.0
    %3819 = vmatpush1.msra.mxu0 0.0
    %3820 = vmatprep.subr.mxu0 0.0
    %3821 = vmatpush1.msra.mxu0 0.0
    %3822 = vmatprep.subr.mxu0 0.0
    %3823 = vmatpush1.msra.mxu0 0.0
    %3824 = vmatprep.subr.mxu0 0.0
    %3825 = vmatpush1.msra.mxu0 0.0
    %3826 = vmatprep.subr.mxu0 0.0
    %3827 = vmatpush1.msra.mxu0 0.0
    %3828 = vmatprep.subr.mxu0 0.0
    %3829 = vmatpush1.msra.mxu0 0.0
    %3830 = vmatprep.subr.mxu0 0.0
    %3831 = vmatpush1.msra.mxu0 0.0
    %3832 = vmatprep.subr.mxu0 0.0
    %3833 = vmatpush1.msra.mxu0 0.0
    %3834 = vmatprep.subr.mxu0 0.0
    %3835 = vmatpush1.msra.mxu0 0.0
    %3836 = vmatprep.subr.mxu0 0.0
    %3837 = vmatpush1.msra.mxu0 0.0
    %3838 = vmatprep.subr.mxu0 0.0
    %3839 = vmatpush1.msra.mxu0 0.0
    %3840 = vmatprep.subr.mxu0 0.0
    %3841 = vmatpush1.msra.mxu0 0.0
    %3842 = vmatprep.subr.mxu0 0.0
    %3843 = vmatpush1.msra.mxu0 0.0
    %3844 = vmatprep.subr.mxu0 0.0
    %3845 = vmatpush1.msra.mxu0 0.0
    %3846 = vmatprep.subr.mxu0 0.0
    %3847 = vmatpush1.msra.mxu0 0.0
    %3848 = vmatprep.subr.mxu0 0.0
    %3849 = vmatpush1.msra.mxu0 0.0
    %3850 = vmatprep.subr.mxu0 0.0
    %3851 = vmatpush1.msra.mxu0 0.0
    %3852 = vmatprep.subr.mxu0 0.0
    %3853 = vmatpush1.msra.mxu0 0.0
    %3854 = vmatprep.subr.mxu0 0.0
    %3855 = vmatpush1.msra.mxu0 0.0
    %3856 = vmatprep.subr.mxu0 0.0
    %3857 = vmatpush1.msra.mxu0 0.0
    %3858 = vmatprep.subr.mxu0 0.0
    %3859 = vmatpush1.msra.mxu0 0.0
    %3860 = vmatprep.subr.mxu0 0.0
    %3861 = vmatpush1.msra.mxu0 0.0
    %3862 = vmatprep.subr.mxu0 0.0
    %3863 = vmatpush1.msra.mxu0 0.0
    %3864 = vmatprep.mubr.f32.mxu0 0.0
    %3865 = vmatmul.mubr.f32.gmra.mrb[0].mxu0 %v3711
    %v3866 = vpop.f32.mrb[0].mxu0
    %v3867 = vadd.f32 0.0, %v3866
    %v3868 = vpop.f32.mrb[0].mxu0
    %3869 = vdwg.mxu0
    %v3870 = vmul.f32 %v3867, 0.125
    %v3871 = vadd.f32 %v3870, 1e-05
    %v3872 = vrsqrt.pop %v3871
    %v3873 = vmul.f32 %v3872, %v3557
    %v3874 = vlaneseq
    %v3875 = vshrl.u32 %v3874, 7
    %v3876 = vsub.s32 0, %v3875
    %v3877 = vrot.slane %v3873, %v3876
    %v3878 = vmul.f32 %v3791, %v3877
    %v3879 = vmul.f32 %v3792, %v3877
    %v3880 = vmul.f32 %v3793, %v3877
    %v3881 = vlaneseq
    %v3882 = vshrl.u32 %v3881, 7
    %v3883 = vsub.s32 1, %v3882
    %v3884 = vrot.slane %v3557, %v3883
    %v3885 = vadd.f32 %v3878, %v3884
    %v3886 = vadd.f32 %v3879, %v3884
    %v3887 = vadd.f32 %v3880, %v3884
    %v3888 = vmax.f32 %v3885, 0.0
    %v3889 = vmax.f32 %v3886, 0.0
    %v3890 = vmax.f32 %v3887, 0.0
    %v3891 = vld [vmem:[%s9] sm:$0xf]
    %v3892 = vld [vmem:[%s9 + $0x4] sm:$0xf]
    %v3893 = vld [vmem:[%s9 + $0x8] sm:$0xf]
    %v3894 = vld [vmem:[%s9 + $0xc] sm:$0xf]
    %v3899 = vunpack.c.l.b16 %v3891
    %v3900 = vunpack.c.l.b16 %v3892
    %v3901 = vunpack.c.l.b16 %v3893
    %v3902 = vunpack.c.l.b16 %v3894
    %v3903 = vpack.c.b16 %v3900, %v3899
    %v3904 = vpack.c.b16 %v3902, %v3901
    %v3906 = vsel %vm3709, %v3903, 0
    %v3909 = vsel %vm3709, %v3904, 0
    %v3912 = vsel %vm2499, %v3890, 0
    %3914 = vmatprep.subr.mxu0 0.0
    %3915 = vmatpush1.msra.mxu0 %v3888
    %3916 = vmatprep.subr.mxu0 0.0
    %3917 = vmatpush1.msra.mxu0 %v3889
    %3918 = vmatprep.subr.mxu0 0.0
    %3919 = vmatpush1.msra.mxu0 %v3912
    %3920 = vmatprep.subr.mxu0 0.0
    %3921 = vmatpush1.msra.mxu0 0.0
    %3922 = vmatprep.subr.mxu0 0.0
    %3923 = vmatpush1.msra.mxu0 0.0
    %3924 = vmatprep.subr.mxu0 0.0
    %3925 = vmatpush1.msra.mxu0 0.0
    %3926 = vmatprep.subr.mxu0 0.0
    %3927 = vmatpush1.msra.mxu0 0.0
    %3928 = vmatprep.subr.mxu0 0.0
    %3929 = vmatpush1.msra.mxu0 0.0
    %3930 = vmatprep.subr.mxu0 0.0
    %3931 = vmatpush1.msra.mxu0 0.0
    %3932 = vmatprep.subr.mxu0 0.0
    %3933 = vmatpush1.msra.mxu0 0.0
    %3934 = vmatprep.subr.mxu0 0.0
    %3935 = vmatpush1.msra.mxu0 0.0
    %3936 = vmatprep.subr.mxu0 0.0
    %3937 = vmatpush1.msra.mxu0 0.0
    %3938 = vmatprep.subr.mxu0 0.0
    %3939 = vmatpush1.msra.mxu0 0.0
    %3940 = vmatprep.subr.mxu0 0.0
    %3941 = vmatpush1.msra.mxu0 0.0
    %3942 = vmatprep.subr.mxu0 0.0
    %3943 = vmatpush1.msra.mxu0 0.0
    %3944 = vmatprep.subr.mxu0 0.0
    %3945 = vmatpush1.msra.mxu0 0.0
    %3946 = vmatprep.subr.mxu0 0.0
    %3947 = vmatpush1.msra.mxu0 0.0
    %3948 = vmatprep.subr.mxu0 0.0
    %3949 = vmatpush1.msra.mxu0 0.0
    %3950 = vmatprep.subr.mxu0 0.0
    %3951 = vmatpush1.msra.mxu0 0.0
    %3952 = vmatprep.subr.mxu0 0.0
    %3953 = vmatpush1.msra.mxu0 0.0
    %3954 = vmatprep.subr.mxu0 0.0
    %3955 = vmatpush1.msra.mxu0 0.0
    %3956 = vmatprep.subr.mxu0 0.0
    %3957 = vmatpush1.msra.mxu0 0.0
    %3958 = vmatprep.subr.mxu0 0.0
    %3959 = vmatpush1.msra.mxu0 0.0
    %3960 = vmatprep.subr.mxu0 0.0
    %3961 = vmatpush1.msra.mxu0 0.0
    %3962 = vmatprep.subr.mxu0 0.0
    %3963 = vmatpush1.msra.mxu0 0.0
    %3964 = vmatprep.subr.mxu0 0.0
    %3965 = vmatpush1.msra.mxu0 0.0
    %3966 = vmatprep.subr.mxu0 0.0
    %3967 = vmatpush1.msra.mxu0 0.0
    %3968 = vmatprep.subr.mxu0 0.0
    %3969 = vmatpush1.msra.mxu0 0.0
    %3970 = vmatprep.subr.mxu0 0.0
    %3971 = vmatpush1.msra.mxu0 0.0
    %3972 = vmatprep.subr.mxu0 0.0
    %3973 = vmatpush1.msra.mxu0 0.0
    %3974 = vmatprep.subr.mxu0 0.0
    %3975 = vmatpush1.msra.mxu0 0.0
    %3976 = vmatprep.subr.mxu0 0.0
    %3977 = vmatpush1.msra.mxu0 0.0
    %3978 = vmatprep.mubr.bf16.mxu0 0
    %3979 = vmatmul.mubr.bf16.gmra.mrb[0].mxu0 %v3906
    %v3980 = vpop.f32.mrb[0].mxu0
    %v3981 = vadd.f32 0.0, %v3980
    %v3982 = vpop.f32.mrb[0].mxu0
    %v3983 = vpop.f32.mrb[0].mxu0
    %v3984 = vadd.f32 0.0, %v3983
    %v3985 = vpop.f32.mrb[0].mxu0
    %3986 = vmatprep.mubr.bf16.mxu0 0
    %3987 = vmatmul.mubr.bf16.gmra.mrb[0].mxu0 %v3909
    %v3988 = vpop.f32.mrb[0].mxu0
    %v3989 = vadd.f32 0.0, %v3988
    %v3990 = vpop.f32.mrb[0].mxu0
    %v3991 = vpop.f32.mrb[0].mxu0
    %v3992 = vadd.f32 0.0, %v3991
    %v3993 = vpop.f32.mrb[0].mxu0
    %3994 = vdwg.mxu0
    %s3995 = sshll.u32 %s2431, 4
    %3996 = dma.done %s366, %s3995
    %v4000 = vrot.slane %v3981, 1
    %v4001 = vrot.slane %v3984, 1
    %v4002 = vsel %vm1599, %v4000, %v4001
    %v4003 = vrot.slane %v3989, 1
    %v4004 = vsel %vm1599, %v4001, %v4003
    %4005 = vrot.lane.b32.xlu0 %v4002, 64
    %v4006 = vpop.permute.xlu0 %4005
    %4007 = vrot.lane.b32.xlu0 %v4004, 64
    %v4008 = vpop.permute.xlu0 %4007
    %4009 = vrot.lane.b32.xlu0 %v4003, 64
    %v4010 = vpop.permute.xlu0 %4009
    %v4014 = vrot.slane %v3981, 2
    %v4015 = vrot.slane %v3984, 2
    %v4016 = vsel %vm2499, %v4014, %v4015
    %v4017 = vrot.slane %v3989, 2
    %v4018 = vsel %vm2499, %v4015, %v4017
    %v4023 = vrot.slane %v3981, 4
    %v4024 = vrot.slane %v3984, 4
    %v4025 = vsel %vm3456, %v4023, %v4024
    %v4026 = vrot.slane %v3989, 4
    %v4027 = vsel %vm3456, %v4024, %v4026
    %v4028 = vrot.slane %v3992, 4
    %v4029 = vsel %vm3456, %v4026, %v4028
    %4030 = vrot.lane.b32.xlu0 %v4025, 64
    %v4031 = vpop.permute.xlu0 %4030
    %4032 = vrot.lane.b32.xlu0 %v4027, 64
    %v4033 = vpop.permute.xlu0 %4032
    %4034 = vrot.lane.b32.xlu0 %v4029, 64
    %v4035 = vpop.permute.xlu0 %4034
    %v4039 = vrot.slane %v3981, 5
    %v4040 = vrot.slane %v3984, 5
    %v4041 = vsel %vm3473, %v4039, %v4040
    %v4042 = vrot.slane %v3989, 5
    %v4043 = vsel %vm3473, %v4040, %v4042
    %v4044 = vrot.slane %v3992, 5
    %v4045 = vsel %vm3473, %v4042, %v4044
    %v4049 = vrot.slane %v3981, 6
    %v4050 = vrot.slane %v3984, 6
    %v4051 = vsel %vm749, %v4049, %v4050
    %v4052 = vrot.slane %v3989, 6
    %v4053 = vsel %vm749, %v4050, %v4052
    %v4054 = vrot.slane %v3992, 6
    %v4055 = vsel %vm749, %v4052, %v4054
    %4056 = vrot.lane.b32.xlu0 %v4051, 64
    %v4057 = vpop.permute.xlu0 %4056
    %4058 = vrot.lane.b32.xlu0 %v4053, 64
    %v4059 = vpop.permute.xlu0 %4058
    %4060 = vrot.lane.b32.xlu0 %v4055, 64
    %v4061 = vpop.permute.xlu0 %4060
    %v4065 = vrot.slane %v3992, 1
    %v4066 = vsel %vm1599, %v4003, %v4065
    %4067 = vrot.lane.b32.xlu0 %v4066, 64
    %v4068 = vpop.permute.xlu0 %4067
    %4069 = vrot.lane.b32.xlu0 %v4065, 64
    %v4070 = vpop.permute.xlu0 %4069
    %v4073 = vrot.slane %v3992, 2
    %v4074 = vsel %vm2499, %v4017, %v4073
    %v4075 = vsel %vm2635, %v3981, %v4006
    %v4076 = vsel %vm2635, %v3984, %v4008
    %v4077 = vsel %vm2635, %v3989, %v4010
    %v4078 = vsel %vm2635, %v4016, %v4031
    %v4079 = vsel %vm2635, %v4018, %v4033
    %v4080 = vsel %vm2635, %v4017, %v4035
    %v4081 = vsel %vm2635, %v4041, %v4057
    %v4082 = vsel %vm2635, %v4043, %v4059
    %v4083 = vsel %vm2635, %v4045, %v4061
    %v4084 = vsel %vm2635, %v3989, %v4068
    %v4085 = vsel %vm2635, %v3992, %v4070
    %v4086 = vld [vmem:[#allocation5] sm:$0xff]
    %v4087 = vld [vmem:[#allocation5 + $0x8] sm:$0xff]
    %v4088 = vld [vmem:[#allocation5 + $0x10] sm:$0xff]
    %v4089 = vld [vmem:[#allocation5 + $0x18] sm:$0xff]
    %v4090 = vld [vmem:[#allocation5 + $0x20] sm:$0xff]
    %v4091 = vld [vmem:[#allocation5 + $0x28] sm:$0xff]
    %v4092 = vld [vmem:[#allocation5 + $0x30] sm:$0xff]
    %v4093 = vld [vmem:[#allocation5 + $0x38] sm:$0xff]
    %v4094 = vld [vmem:[#allocation5 + $0x40] sm:$0xff]
    %v4095 = vld [vmem:[#allocation5 + $0x48] sm:$0xff]
    %v4096 = vld [vmem:[#allocation5 + $0x50] sm:$0xff]
    %v4097 = vld [vmem:[#allocation5 + $0x58] sm:$0xff]
    %v4098 = vld [vmem:[#allocation5 + $0x60] sm:$0xff]
    %v4099 = vld [vmem:[#allocation5 + $0x68] sm:$0xff]
    %v4100 = vld [vmem:[#allocation5 + $0x70] sm:$0xff]
    %v4101 = vld [vmem:[#allocation5 + $0x78] sm:$0xff]
    %v4102 = vld [vmem:[#allocation5 + $0x80] sm:$0xff]
    %v4103 = vld [vmem:[#allocation5 + $0x88] sm:$0xff]
    %v4104 = vld [vmem:[#allocation5 + $0x90] sm:$0xff]
    %v4105 = vld [vmem:[#allocation5 + $0x98] sm:$0xff]
    %v4106 = vld [vmem:[#allocation5 + $0xa0] sm:$0xff]
    %v4107 = vld [vmem:[#allocation5 + $0xa8] sm:$0xff]
    %v4108 = vld [vmem:[#allocation5 + $0xb0] sm:$0xff]
    %v4109 = vld [vmem:[#allocation5 + $0xb8] sm:$0xff]
    %v4110 = vld [vmem:[#allocation5 + $0xc0] sm:$0xff]
    %v4111 = vld [vmem:[#allocation5 + $0xc8] sm:$0xff]
    %v4112 = vld [vmem:[#allocation5 + $0xd0] sm:$0xff]
    %v4113 = vld [vmem:[#allocation5 + $0xd8] sm:$0xff]
    %v4114 = vld [vmem:[#allocation5 + $0xe0] sm:$0xff]
    %v4115 = vld [vmem:[#allocation5 + $0xe8] sm:$0xff]
    %v4116 = vld [vmem:[#allocation5 + $0xf0] sm:$0xff]
    %v4117 = vld [vmem:[#allocation5 + $0xf8] sm:$0xff]
    %v4118 = vld [vmem:[#allocation5 + $0x100] sm:$0xff]
    %v4119 = vld [vmem:[#allocation5 + $0x108] sm:$0xff]
    %v4120 = vld [vmem:[#allocation5 + $0x110] sm:$0xff]
    %v4121 = vld [vmem:[#allocation5 + $0x118] sm:$0xff]
    %v4122 = vld [vmem:[%s10] sm:$0x3]
    %v4123 = vld [vmem:[%s11] sm:$0x1]
    %v4124 = vsel %vm2635, %v4018, 0
    %v4126 = vsel %vm2635, %v4074, 0
    %v4128 = vsel %vm2635, %v4073, 0
    %4130 = vmatprep.subr.bf16.mxu0 0
    %4131 = vmatpush1.bf16.msra.mxu0 %v4086
    %4132 = vmatprep.subr.bf16.mxu0 0
    %4133 = vmatpush1.bf16.msra.mxu0 %v4087
    %4134 = vmatprep.subr.bf16.mxu0 0
    %4135 = vmatpush1.bf16.msra.mxu0 %v4088
    %4136 = vmatprep.subr.bf16.mxu0 0
    %4137 = vmatpush1.bf16.msra.mxu0 %v4089
    %4138 = vmatprep.subr.bf16.mxu0 0
    %4139 = vmatpush1.bf16.msra.mxu0 %v4090
    %4140 = vmatprep.subr.bf16.mxu0 0
    %4141 = vmatpush1.bf16.msra.mxu0 %v4091
    %4142 = vmatprep.subr.bf16.mxu0 0
    %4143 = vmatpush1.bf16.msra.mxu0 %v4092
    %4144 = vmatprep.subr.bf16.mxu0 0
    %4145 = vmatpush1.bf16.msra.mxu0 %v4093
    %4146 = vmatprep.subr.bf16.mxu0 0
    %4147 = vmatpush1.bf16.msra.mxu0 %v4094
    %4148 = vmatprep.subr.bf16.mxu0 0
    %4149 = vmatpush1.bf16.msra.mxu0 %v4095
    %4150 = vmatprep.subr.bf16.mxu0 0
    %4151 = vmatpush1.bf16.msra.mxu0 %v4096
    %4152 = vmatprep.subr.bf16.mxu0 0
    %4153 = vmatpush1.bf16.msra.mxu0 %v4097
    %4154 = vmatprep.subr.bf16.mxu0 0
    %4155 = vmatpush1.bf16.msra.mxu0 %v4098
    %4156 = vmatprep.subr.bf16.mxu0 0
    %4157 = vmatpush1.bf16.msra.mxu0 %v4099
    %4158 = vmatprep.subr.bf16.mxu0 0
    %4159 = vmatpush1.bf16.msra.mxu0 %v4100
    %4160 = vmatprep.subr.bf16.mxu0 0
    %4161 = vmatpush1.bf16.msra.mxu0 %v4101
    %4162 = vmatprep.mubr.f32.mxu0 %v4078
    %4163 = vmatmul.mubr.f32.gmra.mrb[0].mxu0 %v4075
    %v4164 = vpop.f32.mrb[0].mxu0
    %v4165 = vadd.f32 0.0, %v4164
    %v4166 = vpop.f32.mrb[0].mxu0
    %4167 = vmatprep.mubr.f32.mxu0 %v4079
    %4168 = vmatmul.mubr.f32.gmra.mrb[0].mxu0 %v4076
    %v4169 = vpop.f32.mrb[0].mxu0
    %v4170 = vadd.f32 0.0, %v4169
    %v4171 = vpop.f32.mrb[0].mxu0
    %4172 = vmatprep.mubr.f32.mxu0 %v4080
    %4173 = vmatmul.mubr.f32.gmra.mrb[0].mxu0 %v4077
    %v4174 = vpop.f32.mrb[0].mxu0
    %v4175 = vadd.f32 0.0, %v4174
    %v4176 = vpop.f32.mrb[0].mxu0
    %4177 = vdwg.mxu0
    %4178 = vmatprep.subr.bf16.mxu0 0
    %4179 = vmatpush1.bf16.msra.mxu0 %v4102
    %4180 = vmatprep.subr.bf16.mxu0 0
    %4181 = vmatpush1.bf16.msra.mxu0 %v4103
    %4182 = vmatprep.subr.bf16.mxu0 0
    %4183 = vmatpush1.bf16.msra.mxu0 %v4104
    %4184 = vmatprep.subr.bf16.mxu0 0
    %4185 = vmatpush1.bf16.msra.mxu0 %v4105
    %4186 = vmatprep.subr.bf16.mxu0 0
    %4187 = vmatpush1.bf16.msra.mxu0 %v4106
    %4188 = vmatprep.subr.bf16.mxu0 0
    %4189 = vmatpush1.bf16.msra.mxu0 %v4107
    %4190 = vmatprep.subr.bf16.mxu0 0
    %4191 = vmatpush1.bf16.msra.mxu0 %v4108
    %4192 = vmatprep.subr.bf16.mxu0 0
    %4193 = vmatpush1.bf16.msra.mxu0 %v4109
    %4194 = vmatprep.subr.bf16.mxu0 0
    %4195 = vmatpush1.bf16.msra.mxu0 %v4110
    %4196 = vmatprep.subr.bf16.mxu0 0
    %4197 = vmatpush1.bf16.msra.mxu0 %v4111
    %4198 = vmatprep.subr.bf16.mxu0 0
    %4199 = vmatpush1.bf16.msra.mxu0 %v4112
    %4200 = vmatprep.subr.bf16.mxu0 0
    %4201 = vmatpush1.bf16.msra.mxu0 %v4113
    %4202 = vmatprep.subr.bf16.mxu0 0
    %4203 = vmatpush1.bf16.msra.mxu0 %v4114
    %4204 = vmatprep.subr.bf16.mxu0 0
    %4205 = vmatpush1.bf16.msra.mxu0 %v4115
    %4206 = vmatprep.subr.bf16.mxu0 0
    %4207 = vmatpush1.bf16.msra.mxu0 %v4116
    %4208 = vmatprep.subr.bf16.mxu0 0
    %4209 = vmatpush1.bf16.msra.mxu0 %v4117
    %4210 = vmatprep.mubr.f32.mxu0 %v4076
    %4211 = vmatmul.mubr.f32.gmra.mrb[0].mxu0 %v4081
    %v4212 = vpop.f32.mrb[0].mxu0
    %v4213 = vadd.f32 %v4165, %v4212
    %v4214 = vpop.f32.mrb[0].mxu0
    %4215 = vmatprep.mubr.f32.mxu0 %v4084
    %4216 = vmatmul.mubr.f32.gmra.mrb[0].mxu0 %v4082
    %v4217 = vpop.f32.mrb[0].mxu0
    %v4218 = vadd.f32 %v4170, %v4217
    %v4219 = vpop.f32.mrb[0].mxu0
    %4220 = vmatprep.mubr.f32.mxu0 %v4085
    %4221 = vmatmul.mubr.f32.gmra.mrb[0].mxu0 %v4083
    %v4222 = vpop.f32.mrb[0].mxu0
    %v4223 = vadd.f32 %v4175, %v4222
    %v4224 = vpop.f32.mrb[0].mxu0
    %4225 = vdwg.mxu0
    %4226 = vmatprep.subr.bf16.mxu0 0
    %4227 = vmatpush1.bf16.msra.mxu0 %v4118
    %4228 = vmatprep.subr.bf16.mxu0 0
    %4229 = vmatpush1.bf16.msra.mxu0 %v4119
    %4230 = vmatprep.subr.bf16.mxu0 0
    %4231 = vmatpush1.bf16.msra.mxu0 %v4120
    %4232 = vmatprep.subr.bf16.mxu0 0
    %4233 = vmatpush1.bf16.msra.mxu0 %v4121
    %4234 = vmatprep.subr.bf16.mxu0 0
    %4235 = vmatpush1.bf16.msra.mxu0 0
    %4236 = vmatprep.subr.bf16.mxu0 0
    %4237 = vmatpush1.bf16.msra.mxu0 0
    %4238 = vmatprep.subr.bf16.mxu0 0
    %4239 = vmatpush1.bf16.msra.mxu0 0
    %4240 = vmatprep.subr.bf16.mxu0 0
    %4241 = vmatpush1.bf16.msra.mxu0 0
    %4242 = vmatprep.subr.bf16.mxu0 0
    %4243 = vmatpush1.bf16.msra.mxu0 0
    %4244 = vmatprep.subr.bf16.mxu0 0
    %4245 = vmatpush1.bf16.msra.mxu0 0
    %4246 = vmatprep.subr.bf16.mxu0 0
    %4247 = vmatpush1.bf16.msra.mxu0 0
    %4248 = vmatprep.subr.bf16.mxu0 0
    %4249 = vmatpush1.bf16.msra.mxu0 0
    %4250 = vmatprep.subr.bf16.mxu0 0
    %4251 = vmatpush1.bf16.msra.mxu0 0
    %4252 = vmatprep.subr.bf16.mxu0 0
    %4253 = vmatpush1.bf16.msra.mxu0 0
    %4254 = vmatprep.subr.bf16.mxu0 0
    %4255 = vmatpush1.bf16.msra.mxu0 0
    %4256 = vmatprep.subr.bf16.mxu0 0
    %4257 = vmatpush1.bf16.msra.mxu0 0
    %4258 = vmatprep.mubr.f32.mxu0 0.0
    %4259 = vmatmul.mubr.f32.gmra.mrb[0].mxu0 %v4124
    %v4260 = vpop.f32.mrb[0].mxu0
    %v4261 = vadd.f32 %v4213, %v4260
    %v4262 = vpop.f32.mrb[0].mxu0
    %4263 = vmatprep.mubr.f32.mxu0 0.0
    %4264 = vmatmul.mubr.f32.gmra.mrb[0].mxu0 %v4126
    %v4265 = vpop.f32.mrb[0].mxu0
    %v4266 = vadd.f32 %v4218, %v4265
    %v4267 = vpop.f32.mrb[0].mxu0
    %4268 = vmatprep.mubr.f32.mxu0 0.0
    %4269 = vmatmul.mubr.f32.gmra.mrb[0].mxu0 %v4128
    %v4270 = vpop.f32.mrb[0].mxu0
    %v4271 = vadd.f32 %v4223, %v4270
    %v4272 = vpop.f32.mrb[0].mxu0
    %4273 = vdwg.mxu0
    %v4275 = vsel %vm3709, %v4123, 0
    %v4278 = vsel %vm2499, %v4271, 0
    %4280 = vmatprep.subr.mxu0 0.0
    %4281 = vmatpush1.msra.mxu0 %v4261
    %4282 = vmatprep.subr.mxu0 0.0
    %4283 = vmatpush1.msra.mxu0 %v4266
    %4284 = vmatprep.subr.mxu0 0.0
    %4285 = vmatpush1.msra.mxu0 %v4278
    %4286 = vmatprep.subr.mxu0 0.0
    %4287 = vmatpush1.msra.mxu0 0.0
    %4288 = vmatprep.subr.mxu0 0.0
    %4289 = vmatpush1.msra.mxu0 0.0
    %4290 = vmatprep.subr.mxu0 0.0
    %4291 = vmatpush1.msra.mxu0 0.0
    %4292 = vmatprep.subr.mxu0 0.0
    %4293 = vmatpush1.msra.mxu0 0.0
    %4294 = vmatprep.subr.mxu0 0.0
    %4295 = vmatpush1.msra.mxu0 0.0
    %4296 = vmatprep.subr.mxu0 0.0
    %4297 = vmatpush1.msra.mxu0 0.0
    %4298 = vmatprep.subr.mxu0 0.0
    %4299 = vmatpush1.msra.mxu0 0.0
    %4300 = vmatprep.subr.mxu0 0.0
    %4301 = vmatpush1.msra.mxu0 0.0
    %4302 = vmatprep.subr.mxu0 0.0
    %4303 = vmatpush1.msra.mxu0 0.0
    %4304 = vmatprep.subr.mxu0 0.0
    %4305 = vmatpush1.msra.mxu0 0.0
    %4306 = vmatprep.subr.mxu0 0.0
    %4307 = vmatpush1.msra.mxu0 0.0
    %4308 = vmatprep.subr.mxu0 0.0
    %4309 = vmatpush1.msra.mxu0 0.0
    %4310 = vmatprep.subr.mxu0 0.0
    %4311 = vmatpush1.msra.mxu0 0.0
    %4312 = vmatprep.subr.mxu0 0.0
    %4313 = vmatpush1.msra.mxu0 0.0
    %4314 = vmatprep.subr.mxu0 0.0
    %4315 = vmatpush1.msra.mxu0 0.0
    %4316 = vmatprep.subr.mxu0 0.0
    %4317 = vmatpush1.msra.mxu0 0.0
    %4318 = vmatprep.subr.mxu0 0.0
    %4319 = vmatpush1.msra.mxu0 0.0
    %4320 = vmatprep.subr.mxu0 0.0
    %4321 = vmatpush1.msra.mxu0 0.0
    %4322 = vmatprep.subr.mxu0 0.0
    %4323 = vmatpush1.msra.mxu0 0.0
    %4324 = vmatprep.subr.mxu0 0.0
    %4325 = vmatpush1.msra.mxu0 0.0
    %4326 = vmatprep.subr.mxu0 0.0
    %4327 = vmatpush1.msra.mxu0 0.0
    %4328 = vmatprep.subr.mxu0 0.0
    %4329 = vmatpush1.msra.mxu0 0.0
    %4330 = vmatprep.subr.mxu0 0.0
    %4331 = vmatpush1.msra.mxu0 0.0
    %4332 = vmatprep.subr.mxu0 0.0
    %4333 = vmatpush1.msra.mxu0 0.0
    %4334 = vmatprep.subr.mxu0 0.0
    %4335 = vmatpush1.msra.mxu0 0.0
    %4336 = vmatprep.subr.mxu0 0.0
    %4337 = vmatpush1.msra.mxu0 0.0
    %4338 = vmatprep.subr.mxu0 0.0
    %4339 = vmatpush1.msra.mxu0 0.0
    %4340 = vmatprep.subr.mxu0 0.0
    %4341 = vmatpush1.msra.mxu0 0.0
    %4342 = vmatprep.subr.mxu0 0.0
    %4343 = vmatpush1.msra.mxu0 0.0
    %4344 = vmatprep.mubr.f32.mxu0 0.0
    %4345 = vmatmul.mubr.f32.gmra.mrb[0].mxu0 %v4275
    %v4346 = vpop.f32.mrb[0].mxu0
    %v4347 = vadd.f32 0.0, %v4346
    %v4348 = vpop.f32.mrb[0].mxu0
    %4349 = vdwg.mxu0
    %v4350 = vmul.f32 %v4347, 0.125
    %v4351 = vlaneseq
    %v4352 = vshrl.u32 %v4351, 7
    %v4353 = vsub.s32 0, %v4352
    %v4354 = vrot.slane %v4350, %v4353
    %v4355 = vsub.f32 %v4261, %v4354
    %v4356 = vsub.f32 %v4266, %v4354
    %v4357 = vsub.f32 %v4271, %v4354
    %v4358 = vmul.f32 %v4355, %v4355
    %v4359 = vmul.f32 %v4356, %v4356
    %v4360 = vmul.f32 %v4357, %v4357
    %v4362 = vsel %vm2499, %v4360, 0
    %4364 = vmatprep.subr.mxu0 0.0
    %4365 = vmatpush1.msra.mxu0 %v4358
    %4366 = vmatprep.subr.mxu0 0.0
    %4367 = vmatpush1.msra.mxu0 %v4359
    %4368 = vmatprep.subr.mxu0 0.0
    %4369 = vmatpush1.msra.mxu0 %v4362
    %4370 = vmatprep.subr.mxu0 0.0
    %4371 = vmatpush1.msra.mxu0 0.0
    %4372 = vmatprep.subr.mxu0 0.0
    %4373 = vmatpush1.msra.mxu0 0.0
    %4374 = vmatprep.subr.mxu0 0.0
    %4375 = vmatpush1.msra.mxu0 0.0
    %4376 = vmatprep.subr.mxu0 0.0
    %4377 = vmatpush1.msra.mxu0 0.0
    %4378 = vmatprep.subr.mxu0 0.0
    %4379 = vmatpush1.msra.mxu0 0.0
    %4380 = vmatprep.subr.mxu0 0.0
    %4381 = vmatpush1.msra.mxu0 0.0
    %4382 = vmatprep.subr.mxu0 0.0
    %4383 = vmatpush1.msra.mxu0 0.0
    %4384 = vmatprep.subr.mxu0 0.0
    %4385 = vmatpush1.msra.mxu0 0.0
    %4386 = vmatprep.subr.mxu0 0.0
    %4387 = vmatpush1.msra.mxu0 0.0
    %4388 = vmatprep.subr.mxu0 0.0
    %4389 = vmatpush1.msra.mxu0 0.0
    %4390 = vmatprep.subr.mxu0 0.0
    %4391 = vmatpush1.msra.mxu0 0.0
    %4392 = vmatprep.subr.mxu0 0.0
    %4393 = vmatpush1.msra.mxu0 0.0
    %4394 = vmatprep.subr.mxu0 0.0
    %4395 = vmatpush1.msra.mxu0 0.0
    %4396 = vmatprep.subr.mxu0 0.0
    %4397 = vmatpush1.msra.mxu0 0.0
    %4398 = vmatprep.subr.mxu0 0.0
    %4399 = vmatpush1.msra.mxu0 0.0
    %4400 = vmatprep.subr.mxu0 0.0
    %4401 = vmatpush1.msra.mxu0 0.0
    %4402 = vmatprep.subr.mxu0 0.0
    %4403 = vmatpush1.msra.mxu0 0.0
    %4404 = vmatprep.subr.mxu0 0.0
    %4405 = vmatpush1.msra.mxu0 0.0
    %4406 = vmatprep.subr.mxu0 0.0
    %4407 = vmatpush1.msra.mxu0 0.0
    %4408 = vmatprep.subr.mxu0 0.0
    %4409 = vmatpush1.msra.mxu0 0.0
    %4410 = vmatprep.subr.mxu0 0.0
    %4411 = vmatpush1.msra.mxu0 0.0
    %4412 = vmatprep.subr.mxu0 0.0
    %4413 = vmatpush1.msra.mxu0 0.0
    %4414 = vmatprep.subr.mxu0 0.0
    %4415 = vmatpush1.msra.mxu0 0.0
    %4416 = vmatprep.subr.mxu0 0.0
    %4417 = vmatpush1.msra.mxu0 0.0
    %4418 = vmatprep.subr.mxu0 0.0
    %4419 = vmatpush1.msra.mxu0 0.0
    %4420 = vmatprep.subr.mxu0 0.0
    %4421 = vmatpush1.msra.mxu0 0.0
    %4422 = vmatprep.subr.mxu0 0.0
    %4423 = vmatpush1.msra.mxu0 0.0
    %4424 = vmatprep.subr.mxu0 0.0
    %4425 = vmatpush1.msra.mxu0 0.0
    %4426 = vmatprep.subr.mxu0 0.0
    %4427 = vmatpush1.msra.mxu0 0.0
    %4428 = vmatprep.mubr.f32.mxu0 0.0
    %4429 = vmatmul.mubr.f32.gmra.mrb[0].mxu0 %v4275
    %v4430 = vpop.f32.mrb[0].mxu0
    %v4431 = vadd.f32 0.0, %v4430
    %v4432 = vpop.f32.mrb[0].mxu0
    %4433 = vdwg.mxu0
    %v4434 = vmul.f32 %v4431, 0.125
    %v4435 = vadd.f32 %v4434, 1e-05
    %v4436 = vrsqrt.pop %v4435
    %v4437 = vmul.f32 %v4436, %v4122
    %v4438 = vlaneseq
    %v4439 = vshrl.u32 %v4438, 7
    %v4440 = vsub.s32 0, %v4439
    %v4441 = vrot.slane %v4437, %v4440
    %v4442 = vmul.f32 %v4355, %v4441
    %v4443 = vmul.f32 %v4356, %v4441
    %v4444 = vmul.f32 %v4357, %v4441
    %v4445 = vlaneseq
    %v4446 = vshrl.u32 %v4445, 7
    %v4447 = vsub.s32 1, %v4446
    %v4448 = vrot.slane %v4122, %v4447
    %v4449 = vadd.f32 %v4442, %v4448
    %v4450 = vadd.f32 %v4443, %v4448
    %v4451 = vadd.f32 %v4444, %v4448
    %v4452 = vmax.f32 %v4449, 0.0
    %v4453 = vmax.f32 %v4450, 0.0
    %v4454 = vmax.f32 %v4451, 0.0
    %v4455 = vld [vmem:[%s12] sm:$0xf]
    %v4457 = vsel %vm3709, %v4455, 0
    %v4460 = vsel %vm2499, %v4454, 0
    %4462 = vmatprep.subr.mxu0 0.0
    %4463 = vmatpush1.msra.mxu0 %v4452
    %4464 = vmatprep.subr.mxu0 0.0
    %4465 = vmatpush1.msra.mxu0 %v4453
    %4466 = vmatprep.subr.mxu0 0.0
    %4467 = vmatpush1.msra.mxu0 %v4460
    %4468 = vmatprep.subr.mxu0 0.0
    %4469 = vmatpush1.msra.mxu0 0.0
    %4470 = vmatprep.subr.mxu0 0.0
    %4471 = vmatpush1.msra.mxu0 0.0
    %4472 = vmatprep.subr.mxu0 0.0
    %4473 = vmatpush1.msra.mxu0 0.0
    %4474 = vmatprep.subr.mxu0 0.0
    %4475 = vmatpush1.msra.mxu0 0.0
    %4476 = vmatprep.subr.mxu0 0.0
    %4477 = vmatpush1.msra.mxu0 0.0
    %4478 = vmatprep.subr.mxu0 0.0
    %4479 = vmatpush1.msra.mxu0 0.0
    %4480 = vmatprep.subr.mxu0 0.0
    %4481 = vmatpush1.msra.mxu0 0.0
    %4482 = vmatprep.subr.mxu0 0.0
    %4483 = vmatpush1.msra.mxu0 0.0
    %4484 = vmatprep.subr.mxu0 0.0
    %4485 = vmatpush1.msra.mxu0 0.0
    %4486 = vmatprep.subr.mxu0 0.0
    %4487 = vmatpush1.msra.mxu0 0.0
    %4488 = vmatprep.subr.mxu0 0.0
    %4489 = vmatpush1.msra.mxu0 0.0
    %4490 = vmatprep.subr.mxu0 0.0
    %4491 = vmatpush1.msra.mxu0 0.0
    %4492 = vmatprep.subr.mxu0 0.0
    %4493 = vmatpush1.msra.mxu0 0.0
    %4494 = vmatprep.subr.mxu0 0.0
    %4495 = vmatpush1.msra.mxu0 0.0
    %4496 = vmatprep.subr.mxu0 0.0
    %4497 = vmatpush1.msra.mxu0 0.0
    %4498 = vmatprep.subr.mxu0 0.0
    %4499 = vmatpush1.msra.mxu0 0.0
    %4500 = vmatprep.subr.mxu0 0.0
    %4501 = vmatpush1.msra.mxu0 0.0
    %4502 = vmatprep.subr.mxu0 0.0
    %4503 = vmatpush1.msra.mxu0 0.0
    %4504 = vmatprep.subr.mxu0 0.0
    %4505 = vmatpush1.msra.mxu0 0.0
    %4506 = vmatprep.subr.mxu0 0.0
    %4507 = vmatpush1.msra.mxu0 0.0
    %4508 = vmatprep.subr.mxu0 0.0
    %4509 = vmatpush1.msra.mxu0 0.0
    %4510 = vmatprep.subr.mxu0 0.0
    %4511 = vmatpush1.msra.mxu0 0.0
    %4512 = vmatprep.subr.mxu0 0.0
    %4513 = vmatpush1.msra.mxu0 0.0
    %4514 = vmatprep.subr.mxu0 0.0
    %4515 = vmatpush1.msra.mxu0 0.0
    %4516 = vmatprep.subr.mxu0 0.0
    %4517 = vmatpush1.msra.mxu0 0.0
    %4518 = vmatprep.subr.mxu0 0.0
    %4519 = vmatpush1.msra.mxu0 0.0
    %4520 = vmatprep.subr.mxu0 0.0
    %4521 = vmatpush1.msra.mxu0 0.0
    %4522 = vmatprep.subr.mxu0 0.0
    %4523 = vmatpush1.msra.mxu0 0.0
    %4524 = vmatprep.subr.mxu0 0.0
    %4525 = vmatpush1.msra.mxu0 0.0
    %4526 = vmatprep.mubr.bf16.mxu0 0
    %4527 = vmatmul.mubr.bf16.gmra.mrb[0].mxu0 %v4457
    %v4528 = vpop.f32.mrb[0].mxu0
    %v4529 = vadd.f32 0.0, %v4528
    %v4530 = vpop.f32.mrb[0].mxu0
    %v4531 = vpop.f32.mrb[0].mxu0
    %v4532 = vpop.f32.mrb[0].mxu0
    %4533 = vdwg.mxu0
    %v4535 = vrot.slane %v4529, 4
    %4536 = vrot.lane.b32.xlu0 %v4535, 64
    %v4537 = vpop.permute.xlu0 %4536
    %v4539 = vsel %vm2635, %v4529, %v4537
    %4540 = vst [vmem:[#allocation7] sm:$0xf] %v4539
    // Predicated region
    $region193: #{tpu_custom_call.1} parent=1 // pred_check
      _
    $region194: #{tpu_custom_call.1} parent=1 // pred_check_branch
      %4542 = sbr.rel (0) target = $region196
    $region195: #{tpu_custom_call.1} parent=1 // pred_region
      %s4544 = ssub.s32 64, 64
      %4545 = vsyncadd [#allocation8], %s4544
      %s4547 = sshll.u32 [#allocation7], 4
      %s4548 = int_to_ptr.vmem [resolvable:$true] %s4547
      %4550 = dma.vmem_to_hbm [thread:$0]  %s4548, 64, %s17, [#allocation8]
    $region196: #{tpu_custom_call.1} parent=1 // pred_fallthru
      _
    // Predicated region
    $region197: #{tpu_custom_call.1} parent=1 // pred_check
      _
    $region198: #{tpu_custom_call.1} parent=1 // pred_check_branch
      %4552 = sbr.rel (0) target = $region200
    $region199: #{tpu_custom_call.1} parent=1 // pred_region
      %4553 = dma.done [#allocation8], 64
    $region200: #{tpu_custom_call.1} parent=1 // pred_fallthru
      _
    %4554 = vsyncpa [#allocation8], 1
  %4555 = vsyncmov [#allocation6]
  %s4556 = vpop.sfrf %4555
  %p4557 = scmp.eq.s32.totalorder %s4556, 0
  %p4558 = pneg %p4557
  %4560 = shalt.err (%p4558)
  %s4561 = scalar_lea.sflag [#allocation6], 1
  %4562 = vsyncmov %s4561
  %s4563 = vpop.sfrf %4562
  %p4564 = scmp.eq.s32.totalorder %s4563, 0
  %p4565 = pneg %p4564
  %4567 = shalt.err (%p4565)
  %s4568 = scalar_lea.sflag [#allocation6], 2
  %4569 = vsyncmov %s4568
  %s4570 = vpop.sfrf %4569
  %p4571 = scmp.eq.s32.totalorder %s4570, 0
  %p4572 = pneg %p4571
  %4574 = shalt.err (%p4572)
  %s4575 = scalar_lea.sflag [#allocation6], 3
  %4576 = vsyncmov %s4575
  %s4577 = vpop.sfrf %4576
  %p4578 = scmp.eq.s32.totalorder %s4577, 0
  %p4579 = pneg %p4578
  %4581 = shalt.err (%p4579)

</llo_original>
